<compile_context>
chip_gen: v6e
topology: v6e:2x2x1
jax: 0.10.0
libtpu: 0.0.40
codegen_flags: <defaults>
</compile_context>

<pallas_src>
import functools
import math

import jax
import jax.numpy as jnp
from jax.experimental import pallas as pl
from jax.experimental.pallas import tpu as pltpu

LANES = 128


# ----------------------------- shared math helpers -----------------------------
def _layer_norm(x, g, b, eps=1e-6):
    mu = jnp.mean(x, axis=-1, keepdims=True)
    xc = x - mu
    var = jnp.mean(xc * xc, axis=-1, keepdims=True)
    return xc * jax.lax.rsqrt(var + eps) * g + b


def _gelu(x):
    # TODO(synk): tanh approximation; torchvision nn.GELU default is exact erf GELU.
    c = math.sqrt(2.0 / math.pi)
    return 0.5 * x * (1.0 + jnp.tanh(c * (x + 0.044715 * x * x * x)))


def _preprocess(x, image_size, patch_size):
    """ViTForCIFAR.forward input fixup + conv_proj patchification.

    TODO(synk): permute / gray->RGB repeat / bilinear resize (F.interpolate,
    align_corners=False) are one-time gather-style layout ops kept in XLA.
    """
    if x.ndim == 3:
        x = x[:, None, :, :]
    if x.shape[3] == 3 or x.shape[3] == 1:
        x = jnp.transpose(x, (0, 3, 1, 2))
    if x.shape[1] == 1:
        x = jnp.tile(x, (1, 3, 1, 1))
    B, C, H, W = x.shape
    if H != image_size or W != image_size:
        x = jax.image.resize(x, (B, C, image_size, image_size), method="bilinear")
    P = patch_size
    n = image_size // P
    # conv_proj with kernel == stride == P  ==  non-overlapping patch matmul.
    patches = x.reshape(B, C, n, P, n, P)
    patches = jnp.transpose(patches, (0, 2, 4, 1, 3, 5)).reshape(B, n * n, C * P * P)
    return patches


# --------------------------------- the kernel ---------------------------------
def vit_encoder_kernel(
    patches_ref,                 # (B*N, PPC)          f32
    wp_ref, bp_ref,              # (PPC, D) bf16, (1, D) f32
    cls_ref, pcls_ref, ppat_ref, # (1, D), (1, D), (N, D) f32
    ln1g_ref, ln1b_ref,          # (1, 1, D)           f32
    wqkv_ref, bqkv_ref,          # (1, D, 3D) bf16, (1, 1, 3D) f32
    wo_ref, bo_ref,              # (1, D, D)  bf16, (1, 1, D)  f32
    ln2g_ref, ln2b_ref,          # (1, 1, D)           f32
    wfc1_ref, bfc1_ref,          # (1, D, M)  bf16, (1, 1, M)  f32
    wfc2_ref, bfc2_ref,          # (1, M, D)  bf16, (1, 1, D)  f32
    lnfg_ref, lnfb_ref,          # (1, D)              f32
    wh_ref, bh_ref,              # (D, LANES) bf16, (1, LANES) f32 (zero-padded head)
    o_ref,                       # (B*S_pad, LANES)    f32
    tok_ref,                     # scratch (B*S_pad, D) f32 — residual token stream
    *, batch, num_heads,
):
    B = batch
    BN, _ = patches_ref.shape
    N = BN // B
    S = N + 1
    D = wp_ref.shape[1]
    S_pad = tok_ref.shape[0] // B
    nh = num_heads
    dh = D // nh
    layer = pl.program_id(0)

    # ---- prologue (layer 0): patch embedding + [CLS] + positional embedding ----
    @pl.when(layer == 0)
    def _embed():
        emb = (jnp.dot(patches_ref[...].astype(jnp.bfloat16), wp_ref[...],
                       preferred_element_type=jnp.float32) + bp_ref[...])   # (B*N, D)
        cls_row = cls_ref[...] + pcls_ref[...]                               # (1, D)
        pos_p = ppat_ref[...]                                                # (N, D)
        tok_ref[...] = jnp.zeros((B * S_pad, D), jnp.float32)                # incl. pad rows
        for bi in range(B):                                                  # one-time stores
            base = bi * S_pad
            tok_ref[base:base + 1, :] = cls_row
            tok_ref[base + 1:base + S, :] = emb[bi * N:(bi + 1) * N, :] + pos_p

    # ------------------------------ encoder layer ------------------------------
    x = tok_ref[...]                                                # (B*S_pad, D) f32
    h1 = _layer_norm(x, ln1g_ref[0], ln1b_ref[0])
    qkv = (jnp.dot(h1.astype(jnp.bfloat16), wqkv_ref[0],
                   preferred_element_type=jnp.float32) + bqkv_ref[0])       # (B*S_pad, 3D)
    q, k, v = qkv[:, :D], qkv[:, D:2 * D], qkv[:, 2 * D:]

    # Additive mask killing the padded key columns (S .. S_pad-1).
    col = jax.lax.broadcasted_iota(jnp.int32, (1, S_pad), 1)
    kmask = jnp.where(col < S, 0.0, -1e9).astype(jnp.float32)

    scale = 1.0 / math.sqrt(dh)
    ctx_blocks = []
    for bi in range(B):                             # B and nh are tiny: static unroll
        rows = slice(bi * S_pad, (bi + 1) * S_pad)  # 8-aligned row window
        q_b = q[rows, :].astype(jnp.bfloat16)       # (S_pad, D)
        kT_b = k[rows, :].T.astype(jnp.bfloat16)    # (D, S_pad): ONE transpose / batch
        v_b = v[rows, :].astype(jnp.bfloat16)       # (S_pad, D)
        heads = []
        for hi in range(nh):
            hs = slice(hi * dh, (hi + 1) * dh)      # dh=32: 8-aligned sublane slice of k^T
            s = (jnp.dot(q_b[:, hs], kT_b[hs, :],
                         preferred_element_type=jnp.float32) * scale + kmask)
            s = s - jnp.max(s, axis=-1, keepdims=True)
            e = jnp.exp(s)
            a = e / jnp.sum(e, axis=-1, keepdims=True)
            heads.append(jnp.dot(a.astype(jnp.bfloat16), v_b[:, hs],
                                 preferred_element_type=jnp.float32))       # (S_pad, dh)
        ctx_blocks.append(jnp.concatenate(heads, axis=-1))   # lane-dense (S_pad, D)
    ctx = jnp.concatenate(ctx_blocks, axis=0)                 # (B*S_pad, D), register-resident

    attn = (jnp.dot(ctx.astype(jnp.bfloat16), wo_ref[0],
                    preferred_element_type=jnp.float32) + bo_ref[0])
    x = x + attn                                              # residual 1

    h2 = _layer_norm(x, ln2g_ref[0], ln2b_ref[0])
    m = (jnp.dot(h2.astype(jnp.bfloat16), wfc1_ref[0],
                 preferred_element_type=jnp.float32) + bfc1_ref[0])
    m = _gelu(m)
    m = (jnp.dot(m.astype(jnp.bfloat16), wfc2_ref[0],
                 preferred_element_type=jnp.float32) + bfc2_ref[0])
    tok_ref[...] = x + m                                      # residual 2

    # ---- epilogue (last layer): final LN + binary head, fully vectorized ----
    # (torchvision applies the final LN to the whole sequence and then takes
    #  token 0; we do the same and slice the CLS rows in the wrapper.)
    @pl.when(layer == pl.num_programs(0) - 1)
    def _head():
        y = _layer_norm(tok_ref[...], lnfg_ref[...], lnfb_ref[...])          # (B*S_pad, D)
        o_ref[...] = (jnp.dot(y.astype(jnp.bfloat16), wh_ref[...],
                              preferred_element_type=jnp.float32) + bh_ref[...])


# ---------------------------------- wrapper -----------------------------------
def vit_forward(x, params, *, image_size, patch_size, num_heads):
    patches = _preprocess(x, image_size, patch_size)          # (B, N, PPC) f32
    B, N, PPC = patches.shape
    patches = patches.reshape(B * N, PPC)                     # pre-flatten host-side
    D = params["w_patch"].shape[1]
    S = N + 1
    S_pad = -(-S // 8) * 8                                    # pad to 8-sublane multiple
    L = params["w_qkv"].shape[0]

    bf16, f32 = jnp.bfloat16, jnp.float32
    # bf16 MXU operands: store the big weights bf16 in HBM (halves streaming).
    w_patch = params["w_patch"].astype(bf16)
    w_qkv = params["w_qkv"].astype(bf16)
    w_out = params["w_out"].astype(bf16)
    w_fc1 = params["w_fc1"].astype(bf16)
    w_fc2 = params["w_fc2"].astype(bf16)
    # Head padded to a lane-dense (D, 128) block; wrapper slices column 0.
    w_head = jnp.zeros((D, LANES), f32).at[:, :1].set(params["w_head"]).astype(bf16)
    b_head = jnp.zeros((1, LANES), f32).at[:, :1].set(params["b_head"])
    pos_cls = params["pos_emb"][:1]
    pos_patch = params["pos_emb"][1:]

    const = lambda a: pl.BlockSpec(a.shape, lambda l, _r=a.ndim: (0,) * _r)
    perlayer = lambda a: pl.BlockSpec((1,) + a.shape[1:], lambda l: (l, 0, 0))

    in_specs = [
        const(patches),
        const(w_patch), const(params["b_patch"]),
        const(params["cls_token"]), const(pos_cls), const(pos_patch),
        perlayer(params["ln1_g"]), perlayer(params["ln1_b"]),
        perlayer(w_qkv), perlayer(params["b_qkv"]),
        perlayer(w_out), perlayer(params["b_out"]),
        perlayer(params["ln2_g"]), perlayer(params["ln2_b"]),
        perlayer(w_fc1), perlayer(params["b_fc1"]),
        perlayer(w_fc2), perlayer(params["b_fc2"]),
        const(params["lnf_g"]), const(params["lnf_b"]),
        const(w_head), const(b_head),
    ]

    kernel = functools.partial(vit_encoder_kernel, batch=B, num_heads=num_heads)

    out = pl.pallas_call(
        kernel,
        out_shape=jax.ShapeDtypeStruct((B * S_pad, LANES), f32),
        grid=(L,),
        in_specs=in_specs,
        out_specs=pl.BlockSpec((B * S_pad, LANES), lambda l: (0, 0)),
        scratch_shapes=[pltpu.VMEM((B * S_pad, D), f32)],     # residual token stream
        compiler_params=pltpu.CompilerParams(
            dimension_semantics=("arbitrary",)),              # layer loop is sequential
    )(
        patches,
        w_patch, params["b_patch"],
        params["cls_token"], pos_cls, pos_patch,
        params["ln1_g"], params["ln1_b"],
        w_qkv, params["b_qkv"],
        w_out, params["b_out"],
        params["ln2_g"], params["ln2_b"],
        w_fc1, params["b_fc1"],
        w_fc2, params["b_fc2"],
        params["lnf_g"], params["lnf_b"],
        w_head, b_head,
    )
    # CLS logits: row 0 of each padded per-batch block, column 0 of the padded head.
    return out.reshape(B, S_pad, LANES)[:, 0, :1]


# ------------------------------ params + reference ------------------------------
def make_params(key, *, num_layers, hidden, mlp_dim, patch_size, num_patches, in_ch=3):
    L, D, M = num_layers, hidden, mlp_dim
    PPC = in_ch * patch_size * patch_size
    S = num_patches + 1
    keys = iter(jax.random.split(key, 24))

    def nrm(shape, s=0.02):
        return s * jax.random.normal(next(keys), shape, jnp.float32)

    return {
        "w_patch": nrm((PPC, D)), "b_patch": nrm((1, D)),
        "cls_token": nrm((1, D)), "pos_emb": nrm((S, D)),
        "ln1_g": 1.0 + nrm((L, 1, D), 0.05), "ln1_b": nrm((L, 1, D), 0.05),
        "w_qkv": nrm((L, D, 3 * D)), "b_qkv": nrm((L, 1, 3 * D)),
        "w_out": nrm((L, D, D)), "b_out": nrm((L, 1, D)),
        "ln2_g": 1.0 + nrm((L, 1, D), 0.05), "ln2_b": nrm((L, 1, D), 0.05),
        "w_fc1": nrm((L, D, M)), "b_fc1": nrm((L, 1, M)),
        "w_fc2": nrm((L, M, D)), "b_fc2": nrm((L, 1, D)),
        "lnf_g": 1.0 + nrm((1, D), 0.05), "lnf_b": nrm((1, D), 0.05),
        "w_head": nrm((D, 1)), "b_head": nrm((1, 1)),
    }


def reference_forward(x, params, *, image_size, patch_size, num_heads):
    """Pure-JAX (XLA) reference of the same scaled-down ViT, inference mode."""
    patches = _preprocess(x, image_size, patch_size)
    B, N, _ = patches.shape
    D = params["w_patch"].shape[1]
    S = N + 1
    L = params["w_qkv"].shape[0]
    nh, dh = num_heads, D // num_heads

    emb = patches @ params["w_patch"] + params["b_patch"]            # (B, N, D)
    cls = jnp.broadcast_to(params["cls_token"][None], (B, 1, D))
    tok = jnp.concatenate([cls, emb], axis=1) + params["pos_emb"][None]

    def split_heads(t):                                              # (B,S,D)->(B,nh,S,dh)
        return jnp.transpose(t.reshape(B, S, nh, dh), (0, 2, 1, 3))

    for l in range(L):
        h1 = _layer_norm(tok, params["ln1_g"][l, 0], params["ln1_b"][l, 0])
        qkv = h1 @ params["w_qkv"][l] + params["b_qkv"][l, 0]
        q, k, v = jnp.split(qkv, 3, axis=-1)
        qh, kh, vh = split_heads(q), split_heads(k), split_heads(v)
        s = jnp.einsum("bhqd,bhkd->bhqk", qh, kh) / math.sqrt(dh)
        s = s - jnp.max(s, axis=-1, keepdims=True)
        e = jnp.exp(s)
        a = e / jnp.sum(e, axis=-1, keepdims=True)
        c = jnp.einsum("bhqk,bhkd->bhqd", a, vh)
        c = jnp.transpose(c, (0, 2, 1, 3)).reshape(B, S, D)
        tok = tok + c @ params["w_out"][l] + params["b_out"][l, 0]
        h2 = _layer_norm(tok, params["ln2_g"][l, 0], params["ln2_b"][l, 0])
        m = _gelu(h2 @ params["w_fc1"][l] + params["b_fc1"][l, 0])
        m = m @ params["w_fc2"][l] + params["b_fc2"][l, 0]
        tok = tok + m

    y = _layer_norm(tok, params["lnf_g"], params["lnf_b"])
    return y[:, 0] @ params["w_head"] + params["b_head"]


if __name__ == "__main__":
    IMG, PATCH, HIDDEN, HEADS, MLP, LAYERS = 32, 8, 128, 4, 256, 2
    NUM_PATCHES = (IMG // PATCH) ** 2

    key = jax.random.PRNGKey(0)
    kx, kp = jax.random.split(key)
    # Channels-last "CIFAR-ish" input at a non-native resolution: exercises the
    # permute and bilinear-resize branches of ViTForCIFAR.forward.
    x = jax.random.normal(kx, (2, 16, 16, 3), jnp.float32)
    params = make_params(kp, num_layers=LAYERS, hidden=HIDDEN, mlp_dim=MLP,
                         patch_size=PATCH, num_patches=NUM_PATCHES)

    out = jax.block_until_ready(
        vit_forward(x, params, image_size=IMG, patch_size=PATCH, num_heads=HEADS))
    ref = jax.block_until_ready(
        reference_forward(x, params, image_size=IMG, patch_size=PATCH, num_heads=HEADS))

    assert out.shape == (2, 1), out.shape
    # bf16 MXU operands in the kernel vs default-precision f32 reference.
    err = float(jnp.max(jnp.abs(out - ref)))
    assert err < 2e-2, f"max abs err {err}"
    print("KERNEL_OK")
</pallas_src>

<mosaic_0001>
module attributes {stable_mosaic.version = 11 : i64} {
  func.func @vit_encoder_kernel(%arg0: i32, %arg1: memref<32x192xf32, #tpu.memory_space<vmem>>, %arg2: memref<192x128xbf16, #tpu.memory_space<vmem>>, %arg3: memref<1x128xf32, #tpu.memory_space<vmem>>, %arg4: memref<1x128xf32, #tpu.memory_space<vmem>>, %arg5: memref<1x128xf32, #tpu.memory_space<vmem>>, %arg6: memref<16x128xf32, #tpu.memory_space<vmem>>, %arg7: memref<1x1x128xf32, #tpu.memory_space<vmem>>, %arg8: memref<1x1x128xf32, #tpu.memory_space<vmem>>, %arg9: memref<1x128x384xbf16, #tpu.memory_space<vmem>>, %arg10: memref<1x1x384xf32, #tpu.memory_space<vmem>>, %arg11: memref<1x128x128xbf16, #tpu.memory_space<vmem>>, %arg12: memref<1x1x128xf32, #tpu.memory_space<vmem>>, %arg13: memref<1x1x128xf32, #tpu.memory_space<vmem>>, %arg14: memref<1x1x128xf32, #tpu.memory_space<vmem>>, %arg15: memref<1x128x256xbf16, #tpu.memory_space<vmem>>, %arg16: memref<1x1x256xf32, #tpu.memory_space<vmem>>, %arg17: memref<1x256x128xbf16, #tpu.memory_space<vmem>>, %arg18: memref<1x1x128xf32, #tpu.memory_space<vmem>>, %arg19: memref<1x128xf32, #tpu.memory_space<vmem>>, %arg20: memref<1x128xf32, #tpu.memory_space<vmem>>, %arg21: memref<128x128xbf16, #tpu.memory_space<vmem>>, %arg22: memref<1x128xf32, #tpu.memory_space<vmem>>, %arg23: memref<48x128xf32, #tpu.memory_space<vmem>>, %arg24: memref<48x128xf32, #tpu.memory_space<vmem>>) attributes {dimension_semantics = [#tpu.dimension_semantics<arbitrary>], iteration_bounds = array<i64: 2>, scalar_prefetch = 0 : i64, scratch_operands = 1 : i64, tpu.core_type = #tpu.core_type<tc>, window_params = [{pipeline_mode = #tpu.pipeline_mode<synchronous>, transform_indices = @transform_0, window_bounds = array<i64: 32, 192>}, {pipeline_mode = #tpu.pipeline_mode<synchronous>, transform_indices = @transform_1, window_bounds = array<i64: 192, 128>}, {pipeline_mode = #tpu.pipeline_mode<synchronous>, transform_indices = @transform_2, window_bounds = array<i64: 1, 128>}, {pipeline_mode = #tpu.pipeline_mode<synchronous>, transform_indices = @transform_3, window_bounds = array<i64: 1, 128>}, {pipeline_mode = #tpu.pipeline_mode<synchronous>, transform_indices = @transform_4, window_bounds = array<i64: 1, 128>}, {pipeline_mode = #tpu.pipeline_mode<synchronous>, transform_indices = @transform_5, window_bounds = array<i64: 16, 128>}, {transform_indices = @transform_6, window_bounds = array<i64: 1, 1, 128>}, {transform_indices = @transform_7, window_bounds = array<i64: 1, 1, 128>}, {transform_indices = @transform_8, window_bounds = array<i64: 1, 128, 384>}, {transform_indices = @transform_9, window_bounds = array<i64: 1, 1, 384>}, {transform_indices = @transform_10, window_bounds = array<i64: 1, 128, 128>}, {transform_indices = @transform_11, window_bounds = array<i64: 1, 1, 128>}, {transform_indices = @transform_12, window_bounds = array<i64: 1, 1, 128>}, {transform_indices = @transform_13, window_bounds = array<i64: 1, 1, 128>}, {transform_indices = @transform_14, window_bounds = array<i64: 1, 128, 256>}, {transform_indices = @transform_15, window_bounds = array<i64: 1, 1, 256>}, {transform_indices = @transform_16, window_bounds = array<i64: 1, 256, 128>}, {transform_indices = @transform_17, window_bounds = array<i64: 1, 1, 128>}, {pipeline_mode = #tpu.pipeline_mode<synchronous>, transform_indices = @transform_18, window_bounds = array<i64: 1, 128>}, {pipeline_mode = #tpu.pipeline_mode<synchronous>, transform_indices = @transform_19, window_bounds = array<i64: 1, 128>}, {pipeline_mode = #tpu.pipeline_mode<synchronous>, transform_indices = @transform_20, window_bounds = array<i64: 128, 128>}, {pipeline_mode = #tpu.pipeline_mode<synchronous>, transform_indices = @transform_21, window_bounds = array<i64: 1, 128>}, {pipeline_mode = #tpu.pipeline_mode<synchronous>, transform_indices = @transform_22, window_bounds = array<i64: 48, 128>}]} {
    %c0_i32 = arith.constant 0 : i32
    %0 = arith.cmpi eq, %arg0, %c0_i32 : i32
    %1 = arith.extui %0 : i1 to i32
    %c0_i32_0 = arith.constant 0 : i32
    %2 = arith.cmpi ne, %1, %c0_i32_0 : i32
    scf.if %2 {
      %c0_100 = arith.constant 0 : index
      %c0_101 = arith.constant 0 : index
      %281 = vector.load %arg1[%c0_100, %c0_101] : memref<32x192xf32, #tpu.memory_space<vmem>>, vector<32x192xf32>
      %282 = arith.truncf %281 : vector<32x192xf32> to vector<32x192xbf16>
      %c0_102 = arith.constant 0 : index
      %c0_103 = arith.constant 0 : index
      %283 = vector.load %arg2[%c0_102, %c0_103] : memref<192x128xbf16, #tpu.memory_space<vmem>>, vector<192x128xbf16>
      %cst_104 = arith.constant dense<0.000000e+00> : vector<32x128xf32>
      %284 = tpu.matmul %282, %283, %cst_104 {dimension_numbers = #tpu.dot_dimension_numbers<[1], [0], [0], [1], [0, 0, 1, 1], [], []>} : vector<32x192xbf16>, vector<192x128xbf16>, vector<32x128xf32> -> vector<32x128xf32>
      %c0_105 = arith.constant 0 : index
      %c0_106 = arith.constant 0 : index
      %285 = vector.load %arg3[%c0_105, %c0_106] : memref<1x128xf32, #tpu.memory_space<vmem>>, vector<1x128xf32>
      %286 = vector.broadcast %285 : vector<1x128xf32> to vector<32x128xf32>
      %287 = arith.addf %284, %286 : vector<32x128xf32>
      %c0_107 = arith.constant 0 : index
      %c0_108 = arith.constant 0 : index
      %288 = vector.load %arg4[%c0_107, %c0_108] : memref<1x128xf32, #tpu.memory_space<vmem>>, vector<1x128xf32>
      %c0_109 = arith.constant 0 : index
      %c0_110 = arith.constant 0 : index
      %289 = vector.load %arg5[%c0_109, %c0_110] : memref<1x128xf32, #tpu.memory_space<vmem>>, vector<1x128xf32>
      %290 = arith.addf %288, %289 : vector<1x128xf32>
      %c0_111 = arith.constant 0 : index
      %c0_112 = arith.constant 0 : index
      %291 = vector.load %arg6[%c0_111, %c0_112] : memref<16x128xf32, #tpu.memory_space<vmem>>, vector<16x128xf32>
      %cst_113 = arith.constant 0.000000e+00 : f32
      %292 = vector.broadcast %cst_113 : f32 to vector<48x128xf32>
      %c0_114 = arith.constant 0 : index
      %c0_115 = arith.constant 0 : index
      %293 = vector.load %arg24[%c0_114, %c0_115] : memref<48x128xf32, #tpu.memory_space<vmem>>, vector<48x128xf32>
      tpu.vector_store %arg24[%c0_114, %c0_115], %292 {strides = array<i32>} : memref<48x128xf32, #tpu.memory_space<vmem>>, vector<48x128xf32>,
      %c0_116 = arith.constant 0 : index
      %c0_117 = arith.constant 0 : index
      %294 = vector.load %arg24[%c0_116, %c0_117] : memref<48x128xf32, #tpu.memory_space<vmem>>, vector<1x128xf32>
      tpu.vector_store %arg24[%c0_116, %c0_117], %290 {strides = array<i32>} : memref<48x128xf32, #tpu.memory_space<vmem>>, vector<1x128xf32>,
      %295 = vector.extract_strided_slice %287 {offsets = [0, 0], sizes = [16, 128], strides = [1, 1]} : vector<32x128xf32> to vector<16x128xf32>
      %296 = arith.addf %295, %291 : vector<16x128xf32>
      %c1 = arith.constant 1 : index
      %c0_118 = arith.constant 0 : index
      %297 = vector.load %arg24[%c1, %c0_118] : memref<48x128xf32, #tpu.memory_space<vmem>>, vector<16x128xf32>
      tpu.vector_store %arg24[%c1, %c0_118], %296 {strides = array<i32>} : memref<48x128xf32, #tpu.memory_space<vmem>>, vector<16x128xf32>,
      %c24 = arith.constant 24 : index
      %c0_119 = arith.constant 0 : index
      %298 = vector.load %arg24[%c24, %c0_119] : memref<48x128xf32, #tpu.memory_space<vmem>>, vector<1x128xf32>
      tpu.vector_store %arg24[%c24, %c0_119], %290 {strides = array<i32>} : memref<48x128xf32, #tpu.memory_space<vmem>>, vector<1x128xf32>,
      %299 = vector.extract_strided_slice %287 {offsets = [16, 0], sizes = [16, 128], strides = [1, 1]} : vector<32x128xf32> to vector<16x128xf32>
      %300 = arith.addf %299, %291 : vector<16x128xf32>
      %c25 = arith.constant 25 : index
      %c0_120 = arith.constant 0 : index
      %301 = vector.load %arg24[%c25, %c0_120] : memref<48x128xf32, #tpu.memory_space<vmem>>, vector<16x128xf32>
      tpu.vector_store %arg24[%c25, %c0_120], %300 {strides = array<i32>} : memref<48x128xf32, #tpu.memory_space<vmem>>, vector<16x128xf32>,
    } else {
    }
    %c0 = arith.constant 0 : index
    %c0_1 = arith.constant 0 : index
    %3 = vector.load %arg24[%c0, %c0_1] : memref<48x128xf32, #tpu.memory_space<vmem>>, vector<48x128xf32>
    %c0_2 = arith.constant 0 : index
    %c0_3 = arith.constant 0 : index
    %c0_4 = arith.constant 0 : index
    %4 = vector.load %arg7[%c0_2, %c0_3, %c0_4] : memref<1x1x128xf32, #tpu.memory_space<vmem>>, vector<1x1x128xf32>
    %5 = vector.shape_cast %4 : vector<1x1x128xf32> to vector<1x128xf32>
    %c0_5 = arith.constant 0 : index
    %c0_6 = arith.constant 0 : index
    %c0_7 = arith.constant 0 : index
    %6 = vector.load %arg8[%c0_5, %c0_6, %c0_7] : memref<1x1x128xf32, #tpu.memory_space<vmem>>, vector<1x1x128xf32>
    %7 = vector.shape_cast %6 : vector<1x1x128xf32> to vector<1x128xf32>
    %cst = arith.constant dense<0.000000e+00> : vector<48xf32>
    %8 = vector.multi_reduction <add>, %3, %cst [1] : vector<48x128xf32> to vector<48xf32>
    %9 = vector.shape_cast %8 : vector<48xf32> to vector<48x1xf32>
    %cst_8 = arith.constant 1.280000e+02 : f32
    %10 = vector.broadcast %cst_8 : f32 to vector<48x1xf32>
    %11 = arith.divf %9, %10 : vector<48x1xf32>
    %12 = vector.broadcast %11 : vector<48x1xf32> to vector<48x128xf32>
    %13 = arith.subf %3, %12 : vector<48x128xf32>
    %14 = arith.mulf %13, %13 : vector<48x128xf32>
    %cst_9 = arith.constant dense<0.000000e+00> : vector<48xf32>
    %15 = vector.multi_reduction <add>, %14, %cst_9 [1] : vector<48x128xf32> to vector<48xf32>
    %16 = vector.shape_cast %15 : vector<48xf32> to vector<48x1xf32>
    %cst_10 = arith.constant 1.280000e+02 : f32
    %17 = vector.broadcast %cst_10 : f32 to vector<48x1xf32>
    %18 = arith.divf %16, %17 : vector<48x1xf32>
    %cst_11 = arith.constant 9.99999997E-7 : f32
    %19 = vector.broadcast %cst_11 : f32 to vector<48x1xf32>
    %20 = arith.addf %18, %19 : vector<48x1xf32>
    %21 = math.rsqrt %20 : vector<48x1xf32>
    %22 = vector.broadcast %21 : vector<48x1xf32> to vector<48x128xf32>
    %23 = arith.mulf %13, %22 : vector<48x128xf32>
    %24 = vector.broadcast %5 : vector<1x128xf32> to vector<48x128xf32>
    %25 = arith.mulf %23, %24 : vector<48x128xf32>
    %26 = vector.broadcast %7 : vector<1x128xf32> to vector<48x128xf32>
    %27 = arith.addf %25, %26 : vector<48x128xf32>
    %28 = arith.truncf %27 : vector<48x128xf32> to vector<48x128xbf16>
    %c0_12 = arith.constant 0 : index
    %c0_13 = arith.constant 0 : index
    %c0_14 = arith.constant 0 : index
    %29 = vector.load %arg9[%c0_12, %c0_13, %c0_14] : memref<1x128x384xbf16, #tpu.memory_space<vmem>>, vector<1x128x384xbf16>
    %30 = vector.shape_cast %29 : vector<1x128x384xbf16> to vector<128x384xbf16>
    %cst_15 = arith.constant dense<0.000000e+00> : vector<48x384xf32>
    %31 = tpu.matmul %28, %30, %cst_15 {dimension_numbers = #tpu.dot_dimension_numbers<[1], [0], [0], [1], [0, 0, 1, 1], [], []>} : vector<48x128xbf16>, vector<128x384xbf16>, vector<48x384xf32> -> vector<48x384xf32>
    %c0_16 = arith.constant 0 : index
    %c0_17 = arith.constant 0 : index
    %c0_18 = arith.constant 0 : index
    %32 = vector.load %arg10[%c0_16, %c0_17, %c0_18] : memref<1x1x384xf32, #tpu.memory_space<vmem>>, vector<1x1x384xf32>
    %33 = vector.shape_cast %32 : vector<1x1x384xf32> to vector<1x384xf32>
    %34 = vector.broadcast %33 : vector<1x384xf32> to vector<48x384xf32>
    %35 = arith.addf %31, %34 : vector<48x384xf32>
    %36 = vector.extract_strided_slice %35 {offsets = [0, 0], sizes = [48, 128], strides = [1, 1]} : vector<48x384xf32> to vector<48x128xf32>
    %37 = vector.extract_strided_slice %35 {offsets = [0, 128], sizes = [48, 128], strides = [1, 1]} : vector<48x384xf32> to vector<48x128xf32>
    %38 = vector.extract_strided_slice %35 {offsets = [0, 256], sizes = [48, 128], strides = [1, 1]} : vector<48x384xf32> to vector<48x128xf32>
    %39 = tpu.iota {dimensions = array<i32: 1>} : vector<1x24xi32>
    %c17_i32 = arith.constant 17 : i32
    %40 = vector.broadcast %c17_i32 : i32 to vector<1x24xi32>
    %41 = arith.cmpi slt, %39, %40 : vector<1x24xi32>
    %cst_19 = arith.constant 0.000000e+00 : f32
    %cst_20 = arith.constant -1.000000e+09 : f32
    %42 = vector.broadcast %cst_19 : f32 to vector<1x24xf32>
    %43 = vector.broadcast %cst_20 : f32 to vector<1x24xf32>
    %44 = arith.select %41, %42, %43 : vector<1x24xi1>, vector<1x24xf32>
    %45 = vector.extract_strided_slice %36 {offsets = [0, 0], sizes = [24, 128], strides = [1, 1]} : vector<48x128xf32> to vector<24x128xf32>
    %46 = arith.truncf %45 : vector<24x128xf32> to vector<24x128xbf16>
    %47 = vector.extract_strided_slice %37 {offsets = [0, 0], sizes = [24, 128], strides = [1, 1]} : vector<48x128xf32> to vector<24x128xf32>
    %48 = tpu.transpose %47, [1, 0] : vector<24x128xf32> -> vector<128x24xf32>
    %49 = arith.truncf %48 : vector<128x24xf32> to vector<128x24xbf16>
    %50 = vector.extract_strided_slice %38 {offsets = [0, 0], sizes = [24, 128], strides = [1, 1]} : vector<48x128xf32> to vector<24x128xf32>
    %51 = arith.truncf %50 : vector<24x128xf32> to vector<24x128xbf16>
    %52 = vector.extract_strided_slice %46 {offsets = [0, 0], sizes = [24, 32], strides = [1, 1]} : vector<24x128xbf16> to vector<24x32xbf16>
    %53 = vector.extract_strided_slice %49 {offsets = [0, 0], sizes = [32, 24], strides = [1, 1]} : vector<128x24xbf16> to vector<32x24xbf16>
    %cst_21 = arith.constant dense<0.000000e+00> : vector<24x24xf32>
    %54 = tpu.matmul %52, %53, %cst_21 {dimension_numbers = #tpu.dot_dimension_numbers<[1], [0], [0], [1], [0, 0, 1, 1], [], []>} : vector<24x32xbf16>, vector<32x24xbf16>, vector<24x24xf32> -> vector<24x24xf32>
    %cst_22 = arith.constant 0.176776692 : f32
    %55 = vector.broadcast %cst_22 : f32 to vector<24x24xf32>
    %56 = arith.mulf %54, %55 : vector<24x24xf32>
    %57 = vector.broadcast %44 : vector<1x24xf32> to vector<24x24xf32>
    %58 = arith.addf %56, %57 : vector<24x24xf32>
    %cst_23 = arith.constant dense<0xFF800000> : vector<24xf32>
    %59 = vector.multi_reduction <maximumf>, %58, %cst_23 [1] : vector<24x24xf32> to vector<24xf32>
    %60 = vector.shape_cast %59 : vector<24xf32> to vector<24x1xf32>
    %61 = vector.broadcast %60 : vector<24x1xf32> to vector<24x24xf32>
    %62 = arith.subf %58, %61 : vector<24x24xf32>
    %63 = math.exp %62 : vector<24x24xf32>
    %cst_24 = arith.constant dense<0.000000e+00> : vector<24xf32>
    %64 = vector.multi_reduction <add>, %63, %cst_24 [1] : vector<24x24xf32> to vector<24xf32>
    %65 = vector.shape_cast %64 : vector<24xf32> to vector<24x1xf32>
    %66 = vector.broadcast %65 : vector<24x1xf32> to vector<24x24xf32>
    %67 = arith.divf %63, %66 : vector<24x24xf32>
    %68 = arith.truncf %67 : vector<24x24xf32> to vector<24x24xbf16>
    %69 = vector.extract_strided_slice %51 {offsets = [0, 0], sizes = [24, 32], strides = [1, 1]} : vector<24x128xbf16> to vector<24x32xbf16>
    %cst_25 = arith.constant dense<0.000000e+00> : vector<24x32xf32>
    %70 = tpu.matmul %68, %69, %cst_25 {dimension_numbers = #tpu.dot_dimension_numbers<[1], [0], [0], [1], [0, 0, 1, 1], [], []>} : vector<24x24xbf16>, vector<24x32xbf16>, vector<24x32xf32> -> vector<24x32xf32>
    %71 = vector.extract_strided_slice %46 {offsets = [0, 32], sizes = [24, 32], strides = [1, 1]} : vector<24x128xbf16> to vector<24x32xbf16>
    %72 = vector.extract_strided_slice %49 {offsets = [32, 0], sizes = [32, 24], strides = [1, 1]} : vector<128x24xbf16> to vector<32x24xbf16>
    %cst_26 = arith.constant dense<0.000000e+00> : vector<24x24xf32>
    %73 = tpu.matmul %71, %72, %cst_26 {dimension_numbers = #tpu.dot_dimension_numbers<[1], [0], [0], [1], [0, 0, 1, 1], [], []>} : vector<24x32xbf16>, vector<32x24xbf16>, vector<24x24xf32> -> vector<24x24xf32>
    %cst_27 = arith.constant 0.176776692 : f32
    %74 = vector.broadcast %cst_27 : f32 to vector<24x24xf32>
    %75 = arith.mulf %73, %74 : vector<24x24xf32>
    %76 = vector.broadcast %44 : vector<1x24xf32> to vector<24x24xf32>
    %77 = arith.addf %75, %76 : vector<24x24xf32>
    %cst_28 = arith.constant dense<0xFF800000> : vector<24xf32>
    %78 = vector.multi_reduction <maximumf>, %77, %cst_28 [1] : vector<24x24xf32> to vector<24xf32>
    %79 = vector.shape_cast %78 : vector<24xf32> to vector<24x1xf32>
    %80 = vector.broadcast %79 : vector<24x1xf32> to vector<24x24xf32>
    %81 = arith.subf %77, %80 : vector<24x24xf32>
    %82 = math.exp %81 : vector<24x24xf32>
    %cst_29 = arith.constant dense<0.000000e+00> : vector<24xf32>
    %83 = vector.multi_reduction <add>, %82, %cst_29 [1] : vector<24x24xf32> to vector<24xf32>
    %84 = vector.shape_cast %83 : vector<24xf32> to vector<24x1xf32>
    %85 = vector.broadcast %84 : vector<24x1xf32> to vector<24x24xf32>
    %86 = arith.divf %82, %85 : vector<24x24xf32>
    %87 = arith.truncf %86 : vector<24x24xf32> to vector<24x24xbf16>
    %88 = vector.extract_strided_slice %51 {offsets = [0, 32], sizes = [24, 32], strides = [1, 1]} : vector<24x128xbf16> to vector<24x32xbf16>
    %cst_30 = arith.constant dense<0.000000e+00> : vector<24x32xf32>
    %89 = tpu.matmul %87, %88, %cst_30 {dimension_numbers = #tpu.dot_dimension_numbers<[1], [0], [0], [1], [0, 0, 1, 1], [], []>} : vector<24x24xbf16>, vector<24x32xbf16>, vector<24x32xf32> -> vector<24x32xf32>
    %90 = vector.extract_strided_slice %46 {offsets = [0, 64], sizes = [24, 32], strides = [1, 1]} : vector<24x128xbf16> to vector<24x32xbf16>
    %91 = vector.extract_strided_slice %49 {offsets = [64, 0], sizes = [32, 24], strides = [1, 1]} : vector<128x24xbf16> to vector<32x24xbf16>
    %cst_31 = arith.constant dense<0.000000e+00> : vector<24x24xf32>
    %92 = tpu.matmul %90, %91, %cst_31 {dimension_numbers = #tpu.dot_dimension_numbers<[1], [0], [0], [1], [0, 0, 1, 1], [], []>} : vector<24x32xbf16>, vector<32x24xbf16>, vector<24x24xf32> -> vector<24x24xf32>
    %cst_32 = arith.constant 0.176776692 : f32
    %93 = vector.broadcast %cst_32 : f32 to vector<24x24xf32>
    %94 = arith.mulf %92, %93 : vector<24x24xf32>
    %95 = vector.broadcast %44 : vector<1x24xf32> to vector<24x24xf32>
    %96 = arith.addf %94, %95 : vector<24x24xf32>
    %cst_33 = arith.constant dense<0xFF800000> : vector<24xf32>
    %97 = vector.multi_reduction <maximumf>, %96, %cst_33 [1] : vector<24x24xf32> to vector<24xf32>
    %98 = vector.shape_cast %97 : vector<24xf32> to vector<24x1xf32>
    %99 = vector.broadcast %98 : vector<24x1xf32> to vector<24x24xf32>
    %100 = arith.subf %96, %99 : vector<24x24xf32>
    %101 = math.exp %100 : vector<24x24xf32>
    %cst_34 = arith.constant dense<0.000000e+00> : vector<24xf32>
    %102 = vector.multi_reduction <add>, %101, %cst_34 [1] : vector<24x24xf32> to vector<24xf32>
    %103 = vector.shape_cast %102 : vector<24xf32> to vector<24x1xf32>
    %104 = vector.broadcast %103 : vector<24x1xf32> to vector<24x24xf32>
    %105 = arith.divf %101, %104 : vector<24x24xf32>
    %106 = arith.truncf %105 : vector<24x24xf32> to vector<24x24xbf16>
    %107 = vector.extract_strided_slice %51 {offsets = [0, 64], sizes = [24, 32], strides = [1, 1]} : vector<24x128xbf16> to vector<24x32xbf16>
    %cst_35 = arith.constant dense<0.000000e+00> : vector<24x32xf32>
    %108 = tpu.matmul %106, %107, %cst_35 {dimension_numbers = #tpu.dot_dimension_numbers<[1], [0], [0], [1], [0, 0, 1, 1], [], []>} : vector<24x24xbf16>, vector<24x32xbf16>, vector<24x32xf32> -> vector<24x32xf32>
    %109 = vector.extract_strided_slice %46 {offsets = [0, 96], sizes = [24, 32], strides = [1, 1]} : vector<24x128xbf16> to vector<24x32xbf16>
    %110 = vector.extract_strided_slice %49 {offsets = [96, 0], sizes = [32, 24], strides = [1, 1]} : vector<128x24xbf16> to vector<32x24xbf16>
    %cst_36 = arith.constant dense<0.000000e+00> : vector<24x24xf32>
    %111 = tpu.matmul %109, %110, %cst_36 {dimension_numbers = #tpu.dot_dimension_numbers<[1], [0], [0], [1], [0, 0, 1, 1], [], []>} : vector<24x32xbf16>, vector<32x24xbf16>, vector<24x24xf32> -> vector<24x24xf32>
    %cst_37 = arith.constant 0.176776692 : f32
    %112 = vector.broadcast %cst_37 : f32 to vector<24x24xf32>
    %113 = arith.mulf %111, %112 : vector<24x24xf32>
    %114 = vector.broadcast %44 : vector<1x24xf32> to vector<24x24xf32>
    %115 = arith.addf %113, %114 : vector<24x24xf32>
    %cst_38 = arith.constant dense<0xFF800000> : vector<24xf32>
    %116 = vector.multi_reduction <maximumf>, %115, %cst_38 [1] : vector<24x24xf32> to vector<24xf32>
    %117 = vector.shape_cast %116 : vector<24xf32> to vector<24x1xf32>
    %118 = vector.broadcast %117 : vector<24x1xf32> to vector<24x24xf32>
    %119 = arith.subf %115, %118 : vector<24x24xf32>
    %120 = math.exp %119 : vector<24x24xf32>
    %cst_39 = arith.constant dense<0.000000e+00> : vector<24xf32>
    %121 = vector.multi_reduction <add>, %120, %cst_39 [1] : vector<24x24xf32> to vector<24xf32>
    %122 = vector.shape_cast %121 : vector<24xf32> to vector<24x1xf32>
    %123 = vector.broadcast %122 : vector<24x1xf32> to vector<24x24xf32>
    %124 = arith.divf %120, %123 : vector<24x24xf32>
    %125 = arith.truncf %124 : vector<24x24xf32> to vector<24x24xbf16>
    %126 = vector.extract_strided_slice %51 {offsets = [0, 96], sizes = [24, 32], strides = [1, 1]} : vector<24x128xbf16> to vector<24x32xbf16>
    %cst_40 = arith.constant dense<0.000000e+00> : vector<24x32xf32>
    %127 = tpu.matmul %125, %126, %cst_40 {dimension_numbers = #tpu.dot_dimension_numbers<[1], [0], [0], [1], [0, 0, 1, 1], [], []>} : vector<24x24xbf16>, vector<24x32xbf16>, vector<24x32xf32> -> vector<24x32xf32>
    %128 = tpu.concatenate %70, %89, %108, %127 in 1 : vector<24x32xf32>, vector<24x32xf32>, vector<24x32xf32>, vector<24x32xf32> -> vector<24x128xf32>
    %129 = vector.extract_strided_slice %36 {offsets = [24, 0], sizes = [24, 128], strides = [1, 1]} : vector<48x128xf32> to vector<24x128xf32>
    %130 = arith.truncf %129 : vector<24x128xf32> to vector<24x128xbf16>
    %131 = vector.extract_strided_slice %37 {offsets = [24, 0], sizes = [24, 128], strides = [1, 1]} : vector<48x128xf32> to vector<24x128xf32>
    %132 = tpu.transpose %131, [1, 0] : vector<24x128xf32> -> vector<128x24xf32>
    %133 = arith.truncf %132 : vector<128x24xf32> to vector<128x24xbf16>
    %134 = vector.extract_strided_slice %38 {offsets = [24, 0], sizes = [24, 128], strides = [1, 1]} : vector<48x128xf32> to vector<24x128xf32>
    %135 = arith.truncf %134 : vector<24x128xf32> to vector<24x128xbf16>
    %136 = vector.extract_strided_slice %130 {offsets = [0, 0], sizes = [24, 32], strides = [1, 1]} : vector<24x128xbf16> to vector<24x32xbf16>
    %137 = vector.extract_strided_slice %133 {offsets = [0, 0], sizes = [32, 24], strides = [1, 1]} : vector<128x24xbf16> to vector<32x24xbf16>
    %cst_41 = arith.constant dense<0.000000e+00> : vector<24x24xf32>
    %138 = tpu.matmul %136, %137, %cst_41 {dimension_numbers = #tpu.dot_dimension_numbers<[1], [0], [0], [1], [0, 0, 1, 1], [], []>} : vector<24x32xbf16>, vector<32x24xbf16>, vector<24x24xf32> -> vector<24x24xf32>
    %cst_42 = arith.constant 0.176776692 : f32
    %139 = vector.broadcast %cst_42 : f32 to vector<24x24xf32>
    %140 = arith.mulf %138, %139 : vector<24x24xf32>
    %141 = vector.broadcast %44 : vector<1x24xf32> to vector<24x24xf32>
    %142 = arith.addf %140, %141 : vector<24x24xf32>
    %cst_43 = arith.constant dense<0xFF800000> : vector<24xf32>
    %143 = vector.multi_reduction <maximumf>, %142, %cst_43 [1] : vector<24x24xf32> to vector<24xf32>
    %144 = vector.shape_cast %143 : vector<24xf32> to vector<24x1xf32>
    %145 = vector.broadcast %144 : vector<24x1xf32> to vector<24x24xf32>
    %146 = arith.subf %142, %145 : vector<24x24xf32>
    %147 = math.exp %146 : vector<24x24xf32>
    %cst_44 = arith.constant dense<0.000000e+00> : vector<24xf32>
    %148 = vector.multi_reduction <add>, %147, %cst_44 [1] : vector<24x24xf32> to vector<24xf32>
    %149 = vector.shape_cast %148 : vector<24xf32> to vector<24x1xf32>
    %150 = vector.broadcast %149 : vector<24x1xf32> to vector<24x24xf32>
    %151 = arith.divf %147, %150 : vector<24x24xf32>
    %152 = arith.truncf %151 : vector<24x24xf32> to vector<24x24xbf16>
    %153 = vector.extract_strided_slice %135 {offsets = [0, 0], sizes = [24, 32], strides = [1, 1]} : vector<24x128xbf16> to vector<24x32xbf16>
    %cst_45 = arith.constant dense<0.000000e+00> : vector<24x32xf32>
    %154 = tpu.matmul %152, %153, %cst_45 {dimension_numbers = #tpu.dot_dimension_numbers<[1], [0], [0], [1], [0, 0, 1, 1], [], []>} : vector<24x24xbf16>, vector<24x32xbf16>, vector<24x32xf32> -> vector<24x32xf32>
    %155 = vector.extract_strided_slice %130 {offsets = [0, 32], sizes = [24, 32], strides = [1, 1]} : vector<24x128xbf16> to vector<24x32xbf16>
    %156 = vector.extract_strided_slice %133 {offsets = [32, 0], sizes = [32, 24], strides = [1, 1]} : vector<128x24xbf16> to vector<32x24xbf16>
    %cst_46 = arith.constant dense<0.000000e+00> : vector<24x24xf32>
    %157 = tpu.matmul %155, %156, %cst_46 {dimension_numbers = #tpu.dot_dimension_numbers<[1], [0], [0], [1], [0, 0, 1, 1], [], []>} : vector<24x32xbf16>, vector<32x24xbf16>, vector<24x24xf32> -> vector<24x24xf32>
    %cst_47 = arith.constant 0.176776692 : f32
    %158 = vector.broadcast %cst_47 : f32 to vector<24x24xf32>
    %159 = arith.mulf %157, %158 : vector<24x24xf32>
    %160 = vector.broadcast %44 : vector<1x24xf32> to vector<24x24xf32>
    %161 = arith.addf %159, %160 : vector<24x24xf32>
    %cst_48 = arith.constant dense<0xFF800000> : vector<24xf32>
    %162 = vector.multi_reduction <maximumf>, %161, %cst_48 [1] : vector<24x24xf32> to vector<24xf32>
    %163 = vector.shape_cast %162 : vector<24xf32> to vector<24x1xf32>
    %164 = vector.broadcast %163 : vector<24x1xf32> to vector<24x24xf32>
    %165 = arith.subf %161, %164 : vector<24x24xf32>
    %166 = math.exp %165 : vector<24x24xf32>
    %cst_49 = arith.constant dense<0.000000e+00> : vector<24xf32>
    %167 = vector.multi_reduction <add>, %166, %cst_49 [1] : vector<24x24xf32> to vector<24xf32>
    %168 = vector.shape_cast %167 : vector<24xf32> to vector<24x1xf32>
    %169 = vector.broadcast %168 : vector<24x1xf32> to vector<24x24xf32>
    %170 = arith.divf %166, %169 : vector<24x24xf32>
    %171 = arith.truncf %170 : vector<24x24xf32> to vector<24x24xbf16>
    %172 = vector.extract_strided_slice %135 {offsets = [0, 32], sizes = [24, 32], strides = [1, 1]} : vector<24x128xbf16> to vector<24x32xbf16>
    %cst_50 = arith.constant dense<0.000000e+00> : vector<24x32xf32>
    %173 = tpu.matmul %171, %172, %cst_50 {dimension_numbers = #tpu.dot_dimension_numbers<[1], [0], [0], [1], [0, 0, 1, 1], [], []>} : vector<24x24xbf16>, vector<24x32xbf16>, vector<24x32xf32> -> vector<24x32xf32>
    %174 = vector.extract_strided_slice %130 {offsets = [0, 64], sizes = [24, 32], strides = [1, 1]} : vector<24x128xbf16> to vector<24x32xbf16>
    %175 = vector.extract_strided_slice %133 {offsets = [64, 0], sizes = [32, 24], strides = [1, 1]} : vector<128x24xbf16> to vector<32x24xbf16>
    %cst_51 = arith.constant dense<0.000000e+00> : vector<24x24xf32>
    %176 = tpu.matmul %174, %175, %cst_51 {dimension_numbers = #tpu.dot_dimension_numbers<[1], [0], [0], [1], [0, 0, 1, 1], [], []>} : vector<24x32xbf16>, vector<32x24xbf16>, vector<24x24xf32> -> vector<24x24xf32>
    %cst_52 = arith.constant 0.176776692 : f32
    %177 = vector.broadcast %cst_52 : f32 to vector<24x24xf32>
    %178 = arith.mulf %176, %177 : vector<24x24xf32>
    %179 = vector.broadcast %44 : vector<1x24xf32> to vector<24x24xf32>
    %180 = arith.addf %178, %179 : vector<24x24xf32>
    %cst_53 = arith.constant dense<0xFF800000> : vector<24xf32>
    %181 = vector.multi_reduction <maximumf>, %180, %cst_53 [1] : vector<24x24xf32> to vector<24xf32>
    %182 = vector.shape_cast %181 : vector<24xf32> to vector<24x1xf32>
    %183 = vector.broadcast %182 : vector<24x1xf32> to vector<24x24xf32>
    %184 = arith.subf %180, %183 : vector<24x24xf32>
    %185 = math.exp %184 : vector<24x24xf32>
    %cst_54 = arith.constant dense<0.000000e+00> : vector<24xf32>
    %186 = vector.multi_reduction <add>, %185, %cst_54 [1] : vector<24x24xf32> to vector<24xf32>
    %187 = vector.shape_cast %186 : vector<24xf32> to vector<24x1xf32>
    %188 = vector.broadcast %187 : vector<24x1xf32> to vector<24x24xf32>
    %189 = arith.divf %185, %188 : vector<24x24xf32>
    %190 = arith.truncf %189 : vector<24x24xf32> to vector<24x24xbf16>
    %191 = vector.extract_strided_slice %135 {offsets = [0, 64], sizes = [24, 32], strides = [1, 1]} : vector<24x128xbf16> to vector<24x32xbf16>
    %cst_55 = arith.constant dense<0.000000e+00> : vector<24x32xf32>
    %192 = tpu.matmul %190, %191, %cst_55 {dimension_numbers = #tpu.dot_dimension_numbers<[1], [0], [0], [1], [0, 0, 1, 1], [], []>} : vector<24x24xbf16>, vector<24x32xbf16>, vector<24x32xf32> -> vector<24x32xf32>
    %193 = vector.extract_strided_slice %130 {offsets = [0, 96], sizes = [24, 32], strides = [1, 1]} : vector<24x128xbf16> to vector<24x32xbf16>
    %194 = vector.extract_strided_slice %133 {offsets = [96, 0], sizes = [32, 24], strides = [1, 1]} : vector<128x24xbf16> to vector<32x24xbf16>
    %cst_56 = arith.constant dense<0.000000e+00> : vector<24x24xf32>
    %195 = tpu.matmul %193, %194, %cst_56 {dimension_numbers = #tpu.dot_dimension_numbers<[1], [0], [0], [1], [0, 0, 1, 1], [], []>} : vector<24x32xbf16>, vector<32x24xbf16>, vector<24x24xf32> -> vector<24x24xf32>
    %cst_57 = arith.constant 0.176776692 : f32
    %196 = vector.broadcast %cst_57 : f32 to vector<24x24xf32>
    %197 = arith.mulf %195, %196 : vector<24x24xf32>
    %198 = vector.broadcast %44 : vector<1x24xf32> to vector<24x24xf32>
    %199 = arith.addf %197, %198 : vector<24x24xf32>
    %cst_58 = arith.constant dense<0xFF800000> : vector<24xf32>
    %200 = vector.multi_reduction <maximumf>, %199, %cst_58 [1] : vector<24x24xf32> to vector<24xf32>
    %201 = vector.shape_cast %200 : vector<24xf32> to vector<24x1xf32>
    %202 = vector.broadcast %201 : vector<24x1xf32> to vector<24x24xf32>
    %203 = arith.subf %199, %202 : vector<24x24xf32>
    %204 = math.exp %203 : vector<24x24xf32>
    %cst_59 = arith.constant dense<0.000000e+00> : vector<24xf32>
    %205 = vector.multi_reduction <add>, %204, %cst_59 [1] : vector<24x24xf32> to vector<24xf32>
    %206 = vector.shape_cast %205 : vector<24xf32> to vector<24x1xf32>
    %207 = vector.broadcast %206 : vector<24x1xf32> to vector<24x24xf32>
    %208 = arith.divf %204, %207 : vector<24x24xf32>
    %209 = arith.truncf %208 : vector<24x24xf32> to vector<24x24xbf16>
    %210 = vector.extract_strided_slice %135 {offsets = [0, 96], sizes = [24, 32], strides = [1, 1]} : vector<24x128xbf16> to vector<24x32xbf16>
    %cst_60 = arith.constant dense<0.000000e+00> : vector<24x32xf32>
    %211 = tpu.matmul %209, %210, %cst_60 {dimension_numbers = #tpu.dot_dimension_numbers<[1], [0], [0], [1], [0, 0, 1, 1], [], []>} : vector<24x24xbf16>, vector<24x32xbf16>, vector<24x32xf32> -> vector<24x32xf32>
    %212 = tpu.concatenate %154, %173, %192, %211 in 1 : vector<24x32xf32>, vector<24x32xf32>, vector<24x32xf32>, vector<24x32xf32> -> vector<24x128xf32>
    %213 = tpu.concatenate %128, %212 in 0 : vector<24x128xf32>, vector<24x128xf32> -> vector<48x128xf32>
    %214 = arith.truncf %213 : vector<48x128xf32> to vector<48x128xbf16>
    %c0_61 = arith.constant 0 : index
    %c0_62 = arith.constant 0 : index
    %c0_63 = arith.constant 0 : index
    %215 = vector.load %arg11[%c0_61, %c0_62, %c0_63] : memref<1x128x128xbf16, #tpu.memory_space<vmem>>, vector<1x128x128xbf16>
    %216 = vector.shape_cast %215 : vector<1x128x128xbf16> to vector<128x128xbf16>
    %cst_64 = arith.constant dense<0.000000e+00> : vector<48x128xf32>
    %217 = tpu.matmul %214, %216, %cst_64 {dimension_numbers = #tpu.dot_dimension_numbers<[1], [0], [0], [1], [0, 0, 1, 1], [], []>} : vector<48x128xbf16>, vector<128x128xbf16>, vector<48x128xf32> -> vector<48x128xf32>
    %c0_65 = arith.constant 0 : index
    %c0_66 = arith.constant 0 : index
    %c0_67 = arith.constant 0 : index
    %218 = vector.load %arg12[%c0_65, %c0_66, %c0_67] : memref<1x1x128xf32, #tpu.memory_space<vmem>>, vector<1x1x128xf32>
    %219 = vector.shape_cast %218 : vector<1x1x128xf32> to vector<1x128xf32>
    %220 = vector.broadcast %219 : vector<1x128xf32> to vector<48x128xf32>
    %221 = arith.addf %217, %220 : vector<48x128xf32>
    %222 = arith.addf %3, %221 : vector<48x128xf32>
    %c0_68 = arith.constant 0 : index
    %c0_69 = arith.constant 0 : index
    %c0_70 = arith.constant 0 : index
    %223 = vector.load %arg13[%c0_68, %c0_69, %c0_70] : memref<1x1x128xf32, #tpu.memory_space<vmem>>, vector<1x1x128xf32>
    %224 = vector.shape_cast %223 : vector<1x1x128xf32> to vector<1x128xf32>
    %c0_71 = arith.constant 0 : index
    %c0_72 = arith.constant 0 : index
    %c0_73 = arith.constant 0 : index
    %225 = vector.load %arg14[%c0_71, %c0_72, %c0_73] : memref<1x1x128xf32, #tpu.memory_space<vmem>>, vector<1x1x128xf32>
    %226 = vector.shape_cast %225 : vector<1x1x128xf32> to vector<1x128xf32>
    %cst_74 = arith.constant dense<0.000000e+00> : vector<48xf32>
    %227 = vector.multi_reduction <add>, %222, %cst_74 [1] : vector<48x128xf32> to vector<48xf32>
    %228 = vector.shape_cast %227 : vector<48xf32> to vector<48x1xf32>
    %cst_75 = arith.constant 1.280000e+02 : f32
    %229 = vector.broadcast %cst_75 : f32 to vector<48x1xf32>
    %230 = arith.divf %228, %229 : vector<48x1xf32>
    %231 = vector.broadcast %230 : vector<48x1xf32> to vector<48x128xf32>
    %232 = arith.subf %222, %231 : vector<48x128xf32>
    %233 = arith.mulf %232, %232 : vector<48x128xf32>
    %cst_76 = arith.constant dense<0.000000e+00> : vector<48xf32>
    %234 = vector.multi_reduction <add>, %233, %cst_76 [1] : vector<48x128xf32> to vector<48xf32>
    %235 = vector.shape_cast %234 : vector<48xf32> to vector<48x1xf32>
    %cst_77 = arith.constant 1.280000e+02 : f32
    %236 = vector.broadcast %cst_77 : f32 to vector<48x1xf32>
    %237 = arith.divf %235, %236 : vector<48x1xf32>
    %cst_78 = arith.constant 9.99999997E-7 : f32
    %238 = vector.broadcast %cst_78 : f32 to vector<48x1xf32>
    %239 = arith.addf %237, %238 : vector<48x1xf32>
    %240 = math.rsqrt %239 : vector<48x1xf32>
    %241 = vector.broadcast %240 : vector<48x1xf32> to vector<48x128xf32>
    %242 = arith.mulf %232, %241 : vector<48x128xf32>
    %243 = vector.broadcast %224 : vector<1x128xf32> to vector<48x128xf32>
    %244 = arith.mulf %242, %243 : vector<48x128xf32>
    %245 = vector.broadcast %226 : vector<1x128xf32> to vector<48x128xf32>
    %246 = arith.addf %244, %245 : vector<48x128xf32>
    %247 = arith.truncf %246 : vector<48x128xf32> to vector<48x128xbf16>
    %c0_79 = arith.constant 0 : index
    %c0_80 = arith.constant 0 : index
    %c0_81 = arith.constant 0 : index
    %248 = vector.load %arg15[%c0_79, %c0_80, %c0_81] : memref<1x128x256xbf16, #tpu.memory_space<vmem>>, vector<1x128x256xbf16>
    %249 = vector.shape_cast %248 : vector<1x128x256xbf16> to vector<128x256xbf16>
    %cst_82 = arith.constant dense<0.000000e+00> : vector<48x256xf32>
    %250 = tpu.matmul %247, %249, %cst_82 {dimension_numbers = #tpu.dot_dimension_numbers<[1], [0], [0], [1], [0, 0, 1, 1], [], []>} : vector<48x128xbf16>, vector<128x256xbf16>, vector<48x256xf32> -> vector<48x256xf32>
    %c0_83 = arith.constant 0 : index
    %c0_84 = arith.constant 0 : index
    %c0_85 = arith.constant 0 : index
    %251 = vector.load %arg16[%c0_83, %c0_84, %c0_85] : memref<1x1x256xf32, #tpu.memory_space<vmem>>, vector<1x1x256xf32>
    %252 = vector.shape_cast %251 : vector<1x1x256xf32> to vector<1x256xf32>
    %253 = vector.broadcast %252 : vector<1x256xf32> to vector<48x256xf32>
    %254 = arith.addf %250, %253 : vector<48x256xf32>
    %cst_86 = arith.constant 5.000000e-01 : f32
    %255 = vector.broadcast %cst_86 : f32 to vector<48x256xf32>
    %256 = arith.mulf %255, %254 : vector<48x256xf32>
    %cst_87 = arith.constant 4.471500e-02 : f32
    %257 = vector.broadcast %cst_87 : f32 to vector<48x256xf32>
    %258 = arith.mulf %257, %254 : vector<48x256xf32>
    %259 = arith.mulf %258, %254 : vector<48x256xf32>
    %260 = arith.mulf %259, %254 : vector<48x256xf32>
    %261 = arith.addf %254, %260 : vector<48x256xf32>
    %cst_88 = arith.constant 0.797884583 : f32
    %262 = vector.broadcast %cst_88 : f32 to vector<48x256xf32>
    %263 = arith.mulf %262, %261 : vector<48x256xf32>
    %264 = math.tanh %263 : vector<48x256xf32>
    %cst_89 = arith.constant 1.000000e+00 : f32
    %265 = vector.broadcast %cst_89 : f32 to vector<48x256xf32>
    %266 = arith.addf %265, %264 : vector<48x256xf32>
    %267 = arith.mulf %256, %266 : vector<48x256xf32>
    %268 = arith.truncf %267 : vector<48x256xf32> to vector<48x256xbf16>
    %c0_90 = arith.constant 0 : index
    %c0_91 = arith.constant 0 : index
    %c0_92 = arith.constant 0 : index
    %269 = vector.load %arg17[%c0_90, %c0_91, %c0_92] : memref<1x256x128xbf16, #tpu.memory_space<vmem>>, vector<1x256x128xbf16>
    %270 = vector.shape_cast %269 : vector<1x256x128xbf16> to vector<256x128xbf16>
    %cst_93 = arith.constant dense<0.000000e+00> : vector<48x128xf32>
    %271 = tpu.matmul %268, %270, %cst_93 {dimension_numbers = #tpu.dot_dimension_numbers<[1], [0], [0], [1], [0, 0, 1, 1], [], []>} : vector<48x256xbf16>, vector<256x128xbf16>, vector<48x128xf32> -> vector<48x128xf32>
    %c0_94 = arith.constant 0 : index
    %c0_95 = arith.constant 0 : index
    %c0_96 = arith.constant 0 : index
    %272 = vector.load %arg18[%c0_94, %c0_95, %c0_96] : memref<1x1x128xf32, #tpu.memory_space<vmem>>, vector<1x1x128xf32>
    %273 = vector.shape_cast %272 : vector<1x1x128xf32> to vector<1x128xf32>
    %274 = vector.broadcast %273 : vector<1x128xf32> to vector<48x128xf32>
    %275 = arith.addf %271, %274 : vector<48x128xf32>
    %276 = arith.addf %222, %275 : vector<48x128xf32>
    %c0_97 = arith.constant 0 : index
    %c0_98 = arith.constant 0 : index
    %277 = vector.load %arg24[%c0_97, %c0_98] : memref<48x128xf32, #tpu.memory_space<vmem>>, vector<48x128xf32>
    tpu.vector_store %arg24[%c0_97, %c0_98], %276 {strides = array<i32>} : memref<48x128xf32, #tpu.memory_space<vmem>>, vector<48x128xf32>,
    %c1_i32 = arith.constant 1 : i32
    %278 = arith.cmpi eq, %arg0, %c1_i32 : i32
    %279 = arith.extui %278 : i1 to i32
    %c0_i32_99 = arith.constant 0 : i32
    %280 = arith.cmpi ne, %279, %c0_i32_99 : i32
    scf.if %280 {
      %c0_100 = arith.constant 0 : index
      %c0_101 = arith.constant 0 : index
      %281 = vector.load %arg24[%c0_100, %c0_101] : memref<48x128xf32, #tpu.memory_space<vmem>>, vector<48x128xf32>
      %c0_102 = arith.constant 0 : index
      %c0_103 = arith.constant 0 : index
      %282 = vector.load %arg19[%c0_102, %c0_103] : memref<1x128xf32, #tpu.memory_space<vmem>>, vector<1x128xf32>
      %c0_104 = arith.constant 0 : index
      %c0_105 = arith.constant 0 : index
      %283 = vector.load %arg20[%c0_104, %c0_105] : memref<1x128xf32, #tpu.memory_space<vmem>>, vector<1x128xf32>
      %cst_106 = arith.constant dense<0.000000e+00> : vector<48xf32>
      %284 = vector.multi_reduction <add>, %281, %cst_106 [1] : vector<48x128xf32> to vector<48xf32>
      %285 = vector.shape_cast %284 : vector<48xf32> to vector<48x1xf32>
      %cst_107 = arith.constant 1.280000e+02 : f32
      %286 = vector.broadcast %cst_107 : f32 to vector<48x1xf32>
      %287 = arith.divf %285, %286 : vector<48x1xf32>
      %288 = vector.broadcast %287 : vector<48x1xf32> to vector<48x128xf32>
      %289 = arith.subf %281, %288 : vector<48x128xf32>
      %290 = arith.mulf %289, %289 : vector<48x128xf32>
      %cst_108 = arith.constant dense<0.000000e+00> : vector<48xf32>
      %291 = vector.multi_reduction <add>, %290, %cst_108 [1] : vector<48x128xf32> to vector<48xf32>
      %292 = vector.shape_cast %291 : vector<48xf32> to vector<48x1xf32>
      %cst_109 = arith.constant 1.280000e+02 : f32
      %293 = vector.broadcast %cst_109 : f32 to vector<48x1xf32>
      %294 = arith.divf %292, %293 : vector<48x1xf32>
      %cst_110 = arith.constant 9.99999997E-7 : f32
      %295 = vector.broadcast %cst_110 : f32 to vector<48x1xf32>
      %296 = arith.addf %294, %295 : vector<48x1xf32>
      %297 = math.rsqrt %296 : vector<48x1xf32>
      %298 = vector.broadcast %297 : vector<48x1xf32> to vector<48x128xf32>
      %299 = arith.mulf %289, %298 : vector<48x128xf32>
      %300 = vector.broadcast %282 : vector<1x128xf32> to vector<48x128xf32>
      %301 = arith.mulf %299, %300 : vector<48x128xf32>
      %302 = vector.broadcast %283 : vector<1x128xf32> to vector<48x128xf32>
      %303 = arith.addf %301, %302 : vector<48x128xf32>
      %304 = arith.truncf %303 : vector<48x128xf32> to vector<48x128xbf16>
      %c0_111 = arith.constant 0 : index
      %c0_112 = arith.constant 0 : index
      %305 = vector.load %arg21[%c0_111, %c0_112] : memref<128x128xbf16, #tpu.memory_space<vmem>>, vector<128x128xbf16>
      %cst_113 = arith.constant dense<0.000000e+00> : vector<48x128xf32>
      %306 = tpu.matmul %304, %305, %cst_113 {dimension_numbers = #tpu.dot_dimension_numbers<[1], [0], [0], [1], [0, 0, 1, 1], [], []>} : vector<48x128xbf16>, vector<128x128xbf16>, vector<48x128xf32> -> vector<48x128xf32>
      %c0_114 = arith.constant 0 : index
      %c0_115 = arith.constant 0 : index
      %307 = vector.load %arg22[%c0_114, %c0_115] : memref<1x128xf32, #tpu.memory_space<vmem>>, vector<1x128xf32>
      %308 = vector.broadcast %307 : vector<1x128xf32> to vector<48x128xf32>
      %309 = arith.addf %306, %308 : vector<48x128xf32>
      %c0_116 = arith.constant 0 : index
      %c0_117 = arith.constant 0 : index
      %310 = vector.load %arg23[%c0_116, %c0_117] : memref<48x128xf32, #tpu.memory_space<vmem>>, vector<48x128xf32>
      tpu.vector_store %arg23[%c0_116, %c0_117], %309 {strides = array<i32>} : memref<48x128xf32, #tpu.memory_space<vmem>>, vector<48x128xf32>,
    } else {
    }
    return
  }
  func.func @transform_0(%arg0: i32) -> (i32, i32) {
    %c0_i32 = arith.constant 0 : i32
    %c0_i32_0 = arith.constant 0 : i32
    %c0_i32_1 = arith.constant 0 : i32
    return %c0_i32, %c0_i32_0 : i32, i32
  }
  func.func @transform_1(%arg0: i32) -> (i32, i32) {
    %c0_i32 = arith.constant 0 : i32
    %c0_i32_0 = arith.constant 0 : i32
    %c0_i32_1 = arith.constant 0 : i32
    return %c0_i32, %c0_i32_0 : i32, i32
  }
  func.func @transform_2(%arg0: i32) -> (i32, i32) {
    %c0_i32 = arith.constant 0 : i32
    %c0_i32_0 = arith.constant 0 : i32
    %c0_i32_1 = arith.constant 0 : i32
    return %c0_i32, %c0_i32_0 : i32, i32
  }
  func.func @transform_3(%arg0: i32) -> (i32, i32) {
    %c0_i32 = arith.constant 0 : i32
    %c0_i32_0 = arith.constant 0 : i32
    %c0_i32_1 = arith.constant 0 : i32
    return %c0_i32, %c0_i32_0 : i32, i32
  }
  func.func @transform_4(%arg0: i32) -> (i32, i32) {
    %c0_i32 = arith.constant 0 : i32
    %c0_i32_0 = arith.constant 0 : i32
    %c0_i32_1 = arith.constant 0 : i32
    return %c0_i32, %c0_i32_0 : i32, i32
  }
  func.func @transform_5(%arg0: i32) -> (i32, i32) {
    %c0_i32 = arith.constant 0 : i32
    %c0_i32_0 = arith.constant 0 : i32
    %c0_i32_1 = arith.constant 0 : i32
    return %c0_i32, %c0_i32_0 : i32, i32
  }
  func.func @transform_6(%arg0: i32) -> (i32, i32, i32) {
    %c0_i32 = arith.constant 0 : i32
    %c0_i32_0 = arith.constant 0 : i32
    %c0_i32_1 = arith.constant 0 : i32
    return %arg0, %c0_i32, %c0_i32_0 : i32, i32, i32
  }
  func.func @transform_7(%arg0: i32) -> (i32, i32, i32) {
    %c0_i32 = arith.constant 0 : i32
    %c0_i32_0 = arith.constant 0 : i32
    %c0_i32_1 = arith.constant 0 : i32
    return %arg0, %c0_i32, %c0_i32_0 : i32, i32, i32
  }
  func.func @transform_8(%arg0: i32) -> (i32, i32, i32) {
    %c0_i32 = arith.constant 0 : i32
    %c0_i32_0 = arith.constant 0 : i32
    %c0_i32_1 = arith.constant 0 : i32
    return %arg0, %c0_i32, %c0_i32_0 : i32, i32, i32
  }
  func.func @transform_9(%arg0: i32) -> (i32, i32, i32) {
    %c0_i32 = arith.constant 0 : i32
    %c0_i32_0 = arith.constant 0 : i32
    %c0_i32_1 = arith.constant 0 : i32
    return %arg0, %c0_i32, %c0_i32_0 : i32, i32, i32
  }
  func.func @transform_10(%arg0: i32) -> (i32, i32, i32) {
    %c0_i32 = arith.constant 0 : i32
    %c0_i32_0 = arith.constant 0 : i32
    %c0_i32_1 = arith.constant 0 : i32
    return %arg0, %c0_i32, %c0_i32_0 : i32, i32, i32
  }
  func.func @transform_11(%arg0: i32) -> (i32, i32, i32) {
    %c0_i32 = arith.constant 0 : i32
    %c0_i32_0 = arith.constant 0 : i32
    %c0_i32_1 = arith.constant 0 : i32
    return %arg0, %c0_i32, %c0_i32_0 : i32, i32, i32
  }
  func.func @transform_12(%arg0: i32) -> (i32, i32, i32) {
    %c0_i32 = arith.constant 0 : i32
    %c0_i32_0 = arith.constant 0 : i32
    %c0_i32_1 = arith.constant 0 : i32
    return %arg0, %c0_i32, %c0_i32_0 : i32, i32, i32
  }
  func.func @transform_13(%arg0: i32) -> (i32, i32, i32) {
    %c0_i32 = arith.constant 0 : i32
    %c0_i32_0 = arith.constant 0 : i32
    %c0_i32_1 = arith.constant 0 : i32
    return %arg0, %c0_i32, %c0_i32_0 : i32, i32, i32
  }
  func.func @transform_14(%arg0: i32) -> (i32, i32, i32) {
    %c0_i32 = arith.constant 0 : i32
    %c0_i32_0 = arith.constant 0 : i32
    %c0_i32_1 = arith.constant 0 : i32
    return %arg0, %c0_i32, %c0_i32_0 : i32, i32, i32
  }
  func.func @transform_15(%arg0: i32) -> (i32, i32, i32) {
    %c0_i32 = arith.constant 0 : i32
    %c0_i32_0 = arith.constant 0 : i32
    %c0_i32_1 = arith.constant 0 : i32
    return %arg0, %c0_i32, %c0_i32_0 : i32, i32, i32
  }
  func.func @transform_16(%arg0: i32) -> (i32, i32, i32) {
    %c0_i32 = arith.constant 0 : i32
    %c0_i32_0 = arith.constant 0 : i32
    %c0_i32_1 = arith.constant 0 : i32
    return %arg0, %c0_i32, %c0_i32_0 : i32, i32, i32
  }
  func.func @transform_17(%arg0: i32) -> (i32, i32, i32) {
    %c0_i32 = arith.constant 0 : i32
    %c0_i32_0 = arith.constant 0 : i32
    %c0_i32_1 = arith.constant 0 : i32
    return %arg0, %c0_i32, %c0_i32_0 : i32, i32, i32
  }
  func.func @transform_18(%arg0: i32) -> (i32, i32) {
    %c0_i32 = arith.constant 0 : i32
    %c0_i32_0 = arith.constant 0 : i32
    %c0_i32_1 = arith.constant 0 : i32
    return %c0_i32, %c0_i32_0 : i32, i32
  }
  func.func @transform_19(%arg0: i32) -> (i32, i32) {
    %c0_i32 = arith.constant 0 : i32
    %c0_i32_0 = arith.constant 0 : i32
    %c0_i32_1 = arith.constant 0 : i32
    return %c0_i32, %c0_i32_0 : i32, i32
  }
  func.func @transform_20(%arg0: i32) -> (i32, i32) {
    %c0_i32 = arith.constant 0 : i32
    %c0_i32_0 = arith.constant 0 : i32
    %c0_i32_1 = arith.constant 0 : i32
    return %c0_i32, %c0_i32_0 : i32, i32
  }
  func.func @transform_21(%arg0: i32) -> (i32, i32) {
    %c0_i32 = arith.constant 0 : i32
    %c0_i32_0 = arith.constant 0 : i32
    %c0_i32_1 = arith.constant 0 : i32
    return %c0_i32, %c0_i32_0 : i32, i32
  }
  func.func @transform_22(%arg0: i32) -> (i32, i32) {
    %c0_i32 = arith.constant 0 : i32
    %c0_i32_0 = arith.constant 0 : i32
    %c0_i32_1 = arith.constant 0 : i32
    return %c0_i32, %c0_i32_0 : i32, i32
  }
}

</mosaic_0001>

<llo_original>
// kernel: tpu_custom_call.1
$region0: #{tpu_custom_call.1}
  #allocation0 [shape = 'u32[]', space=smem, size = 0x4, offset = 0x4, fixed_abs, tag = 'smem constant byte address 0x4 - core index']
  #allocation1 [shape = 'u32[144,128]{1,0:T(1,128)}', space=vmem, size = 0x12000, scoped, tag = 'internal scratch']
  #allocation2 [shape = 'f32[48,128]{1,0:T(8,128)}', space=vmem, size = 0x6000, scoped, tag = 'scratch operand']
  %s0 = inlined_call_operand.hbm [shape: f32[32,192], index: 0, kind: input, shape index: {}]
  %s1 = inlined_call_operand.hbm [shape: bf16[192,128], index: 1, kind: input, shape index: {}]
  %s2 = inlined_call_operand.hbm [shape: f32[1,128], index: 2, kind: input, shape index: {}]
  %s3 = inlined_call_operand.hbm [shape: f32[1,128], index: 3, kind: input, shape index: {}]
  %s4 = inlined_call_operand.hbm [shape: f32[1,128], index: 4, kind: input, shape index: {}]
  %s5 = inlined_call_operand.hbm [shape: f32[16,128], index: 5, kind: input, shape index: {}]
  %s6 = inlined_call_operand.vmem [shape: f32[2,1,128], index: 6, kind: input, shape index: {}]
  %s7 = inlined_call_operand.hbm [shape: f32[2,1,128], index: 7, kind: input, shape index: {}]
  %s8 = inlined_call_operand.hbm [shape: bf16[2,128,384], index: 8, kind: input, shape index: {}]
  %s9 = inlined_call_operand.vmem [shape: f32[2,1,384], index: 9, kind: input, shape index: {}]
  %s10 = inlined_call_operand.hbm [shape: bf16[2,128,128], index: 10, kind: input, shape index: {}]
  %s11 = inlined_call_operand.vmem [shape: f32[2,1,128], index: 11, kind: input, shape index: {}]
  %s12 = inlined_call_operand.vmem [shape: f32[2,1,128], index: 12, kind: input, shape index: {}]
  %s13 = inlined_call_operand.vmem [shape: f32[2,1,128], index: 13, kind: input, shape index: {}]
  %s14 = inlined_call_operand.hbm [shape: bf16[2,128,256], index: 14, kind: input, shape index: {}]
  %s15 = inlined_call_operand.vmem [shape: f32[2,1,256], index: 15, kind: input, shape index: {}]
  %s16 = inlined_call_operand.hbm [shape: bf16[2,256,128], index: 16, kind: input, shape index: {}]
  %s17 = inlined_call_operand.vmem [shape: f32[2,1,128], index: 17, kind: input, shape index: {}]
  %s18 = inlined_call_operand.vmem [shape: f32[1,128], index: 18, kind: input, shape index: {}]
  %s19 = inlined_call_operand.vmem [shape: f32[1,128], index: 19, kind: input, shape index: {}]
  %s20 = inlined_call_operand.hbm [shape: bf16[128,128], index: 20, kind: input, shape index: {}]
  %s21 = inlined_call_operand.vmem [shape: f32[1,128], index: 21, kind: input, shape index: {}]
  %s22 = inlined_call_operand.hbm [shape: f32[48,128], index: 22, kind: output, shape index: {}]
  %s23 = sld [smem:[#allocation0]]
  $region177: #{tpu_custom_call.1} parent=0
    _
  %s25 = ssub.s32 1, %s23
  %s26 = scalar_select 0, %s25, %s23
  $region1: #{tpu_custom_call.1} parent=0
    #allocation3 [shape = 'u8[32768]{0}', space=vmem, size = 0x8000, scoped, tag = 'input window, operand 0, single buffered']
    #allocation4 [shape = 's32[2]{0}', space=sflag, size = 0x8, scoped, tag = 'scoped memory for tpu_custom_call.1']
    #allocation5 [shape = 's32[2]{0}', space=sflag, size = 0x8, scoped, tag = 'scoped memory for tpu_custom_call.1']
    #allocation6 [shape = 'u8[49152]{0}', space=vmem, size = 0xc000, scoped, tag = 'input window, operand 1, single buffered']
    #allocation7 [shape = 's32[1]{0}', space=sflag, size = 0x4, scoped, tag = 'scoped memory for tpu_custom_call.1']
    #allocation8 [shape = 'u8[512]{0}', space=vmem, size = 0x400, scoped, tag = 'input window, operand 2, single buffered']
    #allocation9 [shape = 'u8[512]{0}', space=vmem, size = 0x400, scoped, tag = 'input window, operand 3, single buffered']
    #allocation10 [shape = 's32[1]{0}', space=sflag, size = 0x4, scoped, tag = 'scoped memory for tpu_custom_call.1']
    #allocation11 [shape = 'u8[512]{0}', space=vmem, size = 0x400, scoped, tag = 'input window, operand 4, single buffered']
    #allocation12 [shape = 'u8[8192]{0}', space=vmem, size = 0x2000, scoped, tag = 'input window, operand 5, single buffered']
    #allocation13 [shape = 's32[1]{0}', space=sflag, size = 0x4, scoped, tag = 'scoped memory for tpu_custom_call.1']
    #allocation14 [shape = 'u8[1024]{0}', space=vmem, size = 0x400, scoped, tag = 'input window, operand 7']
    #allocation15 [shape = 'u8[196608]{0}', space=vmem, size = 0x30000, scoped, tag = 'input window, operand 8']
    #allocation16 [shape = 'u8[65536]{0}', space=vmem, size = 0x10000, scoped, tag = 'input window, operand 10']
    #allocation17 [shape = 'u8[131072]{0}', space=vmem, size = 0x20000, scoped, tag = 'input window, operand 14']
    #allocation18 [shape = 'u8[131072]{0}', space=vmem, size = 0x20000, scoped, tag = 'input window, operand 16']
    #allocation19 [shape = 'u8[32768]{0}', space=vmem, size = 0x8000, scoped, tag = 'input window, operand 20, single buffered']
    #allocation20 [shape = 'u8[24576]{0}', space=vmem, size = 0x6000, scoped, tag = 'output window, operand 0, single buffered']
    %27 = vsyncpa [#allocation4], 0
    %28 = vsyncpa [#allocation7], 0
    %29 = vsyncpa [#allocation10], 0
    %30 = vsyncpa [#allocation13], 0
    %31 = vsyncpa [#allocation5], 0
    loop: start=0, step=1, limit=4
    $region2: #{tpu_custom_call.1} parent=1 // loop_pre_header
      _
    $region3: #{tpu_custom_call.1} parent=1 // loop_header
      %s33 = sphi 0, %s37
      %p34 = scmp.ge.s32.totalorder %s33, 4
      %s41 = sphi 0, %s41
      %s43 = sphi 0, %s41
      %s44 = sphi 0, %s43
      %s58 = sphi 0, %s44
      %s62 = sphi 0, %s62
      %s64 = sphi 0, %s62
      %s65 = sphi 0, %s64
      %s79 = sphi 0, %s65
      %s83 = sphi 0, %s83
      %s85 = sphi 0, %s83
      %s86 = sphi 0, %s85
      %s100 = sphi 0, %s86
      %s104 = sphi 0, %s104
      %s106 = sphi 0, %s104
      %s107 = sphi 0, %s106
      %s121 = sphi 0, %s107
      %s125 = sphi 0, %s125
      %s127 = sphi 0, %s125
      %s128 = sphi 0, %s127
      %s142 = sphi 0, %s128
      %s146 = sphi 0, %s146
      %s148 = sphi 0, %s146
      %s149 = sphi 0, %s148
      %s163 = sphi 0, %s149
      %s169 = sphi 0, %s171
      %s172 = sphi 0, %s169
      %s173 = sphi 0, %s172
      %s189 = sphi 0, %s173
      %s195 = sphi 0, %s197
      %s198 = sphi 0, %s195
      %s199 = sphi 0, %s198
      %s215 = sphi 0, %s199
      %s221 = sphi 0, %s223
      %s224 = sphi 0, %s221
      %s225 = sphi 0, %s224
      %s241 = sphi 0, %s225
      %s247 = sphi 0, %s249
      %s250 = sphi 0, %s247
      %s251 = sphi 0, %s250
      %s267 = sphi 0, %s251
      %s273 = sphi 0, %s275
      %s276 = sphi 0, %s273
      %s277 = sphi 0, %s276
      %s293 = sphi 0, %s277
      %s299 = sphi 0, %s301
      %s302 = sphi 0, %s299
      %s303 = sphi 0, %s302
      %s319 = sphi 0, %s303
      %s325 = sphi 0, %s327
      %s328 = sphi 0, %s325
      %s329 = sphi 0, %s328
      %s345 = sphi 0, %s329
      %s351 = sphi 0, %s353
      %s354 = sphi 0, %s351
      %s355 = sphi 0, %s354
      %s371 = sphi 0, %s355
      %s377 = sphi 0, %s379
      %s380 = sphi 0, %s377
      %s381 = sphi 0, %s380
      %s397 = sphi 0, %s381
      %s403 = sphi 0, %s405
      %s406 = sphi 0, %s403
      %s407 = sphi 0, %s406
      %s423 = sphi 0, %s407
      %s429 = sphi 0, %s431
      %s432 = sphi 0, %s429
      %s433 = sphi 0, %s432
      %s449 = sphi 0, %s433
      %s455 = sphi 0, %s457
      %s458 = sphi 0, %s455
      %s459 = sphi 0, %s458
      %s475 = sphi 0, %s459
      %s479 = sphi 0, %s479
      %s481 = sphi 0, %s479
      %s482 = sphi 0, %s481
      %s496 = sphi 0, %s482
      %s500 = sphi 0, %s500
      %s502 = sphi 0, %s500
      %s503 = sphi 0, %s502
      %s517 = sphi 0, %s503
      %s521 = sphi 0, %s521
      %s523 = sphi 0, %s521
      %s524 = sphi 0, %s523
      %s538 = sphi 0, %s524
      %s542 = sphi 0, %s542
      %s544 = sphi 0, %s542
      %s545 = sphi 0, %s544
      %s559 = sphi 0, %s545
      %s563 = sphi 0, %s563
      %s565 = sphi 0, %s563
      %s566 = sphi 0, %s565
      %s580 = sphi 0, %s566
    $region4: #{tpu_custom_call.1} parent=1 // loop_header_branch
      %36 = sbr.rel (%p34) target = $region8
    $region5: #{tpu_custom_call.1} parent=1 // loop_body
      %s38 = ssub.s32 %s33, 1
      %s39 = ssub.s32 %s33, 2
      %s40 = sadd.s32 %s33, 1
      %s42 = sadd.s32 %s41, 1
      %p45 = scmp.eq.s32.totalorder %s33, 1
      %p46 = scmp.ne.s32.totalorder %s41, %s43
      %p47 = scmp.eq.s32.totalorder %s33, 0
      %p48 = por %p46, %p47
      %p49 = scmp.ne.s32.totalorder %s41, %s43
      %p50 = scmp.eq.s32.totalorder %s38, 1
      %p51 = por %p49, %p50
      %p52 = scmp.ne.s32.totalorder %s43, %s44
      %p53 = scmp.eq.s32.totalorder %s38, 0
      %p54 = por %p52, %p53
      %p55 = scmp.ne.s32.totalorder %s43, %s44
      %p56 = scmp.eq.s32.totalorder %s39, 1
      %p57 = por %p55, %p56
      %p59 = scmp.ne.s32.totalorder %s44, %s58
      %p60 = scmp.eq.s32.totalorder %s39, 0
      %p61 = por %p59, %p60
      %s63 = sadd.s32 %s62, 1
      %p66 = scmp.eq.s32.totalorder %s33, 1
      %p67 = scmp.ne.s32.totalorder %s62, %s64
      %p68 = scmp.eq.s32.totalorder %s33, 0
      %p69 = por %p67, %p68
      %p70 = scmp.ne.s32.totalorder %s62, %s64
      %p71 = scmp.eq.s32.totalorder %s38, 1
      %p72 = por %p70, %p71
      %p73 = scmp.ne.s32.totalorder %s64, %s65
      %p74 = scmp.eq.s32.totalorder %s38, 0
      %p75 = por %p73, %p74
      %p76 = scmp.ne.s32.totalorder %s64, %s65
      %p77 = scmp.eq.s32.totalorder %s39, 1
      %p78 = por %p76, %p77
      %p80 = scmp.ne.s32.totalorder %s65, %s79
      %p81 = scmp.eq.s32.totalorder %s39, 0
      %p82 = por %p80, %p81
      %s84 = sadd.s32 %s83, 1
      %p87 = scmp.eq.s32.totalorder %s33, 1
      %p88 = scmp.ne.s32.totalorder %s83, %s85
      %p89 = scmp.eq.s32.totalorder %s33, 0
      %p90 = por %p88, %p89
      %p91 = scmp.ne.s32.totalorder %s83, %s85
      %p92 = scmp.eq.s32.totalorder %s38, 1
      %p93 = por %p91, %p92
      %p94 = scmp.ne.s32.totalorder %s85, %s86
      %p95 = scmp.eq.s32.totalorder %s38, 0
      %p96 = por %p94, %p95
      %p97 = scmp.ne.s32.totalorder %s85, %s86
      %p98 = scmp.eq.s32.totalorder %s39, 1
      %p99 = por %p97, %p98
      %p101 = scmp.ne.s32.totalorder %s86, %s100
      %p102 = scmp.eq.s32.totalorder %s39, 0
      %p103 = por %p101, %p102
      %s105 = sadd.s32 %s104, 1
      %p108 = scmp.eq.s32.totalorder %s33, 1
      %p109 = scmp.ne.s32.totalorder %s104, %s106
      %p110 = scmp.eq.s32.totalorder %s33, 0
      %p111 = por %p109, %p110
      %p112 = scmp.ne.s32.totalorder %s104, %s106
      %p113 = scmp.eq.s32.totalorder %s38, 1
      %p114 = por %p112, %p113
      %p115 = scmp.ne.s32.totalorder %s106, %s107
      %p116 = scmp.eq.s32.totalorder %s38, 0
      %p117 = por %p115, %p116
      %p118 = scmp.ne.s32.totalorder %s106, %s107
      %p119 = scmp.eq.s32.totalorder %s39, 1
      %p120 = por %p118, %p119
      %p122 = scmp.ne.s32.totalorder %s107, %s121
      %p123 = scmp.eq.s32.totalorder %s39, 0
      %p124 = por %p122, %p123
      %s126 = sadd.s32 %s125, 1
      %p129 = scmp.eq.s32.totalorder %s33, 1
      %p130 = scmp.ne.s32.totalorder %s125, %s127
      %p131 = scmp.eq.s32.totalorder %s33, 0
      %p132 = por %p130, %p131
      %p133 = scmp.ne.s32.totalorder %s125, %s127
      %p134 = scmp.eq.s32.totalorder %s38, 1
      %p135 = por %p133, %p134
      %p136 = scmp.ne.s32.totalorder %s127, %s128
      %p137 = scmp.eq.s32.totalorder %s38, 0
      %p138 = por %p136, %p137
      %p139 = scmp.ne.s32.totalorder %s127, %s128
      %p140 = scmp.eq.s32.totalorder %s39, 1
      %p141 = por %p139, %p140
      %p143 = scmp.ne.s32.totalorder %s128, %s142
      %p144 = scmp.eq.s32.totalorder %s39, 0
      %p145 = por %p143, %p144
      %s147 = sadd.s32 %s146, 1
      %p150 = scmp.eq.s32.totalorder %s33, 1
      %p151 = scmp.ne.s32.totalorder %s146, %s148
      %p152 = scmp.eq.s32.totalorder %s33, 0
      %p153 = por %p151, %p152
      %p154 = scmp.ne.s32.totalorder %s146, %s148
      %p155 = scmp.eq.s32.totalorder %s38, 1
      %p156 = por %p154, %p155
      %p157 = scmp.ne.s32.totalorder %s148, %s149
      %p158 = scmp.eq.s32.totalorder %s38, 0
      %p159 = por %p157, %p158
      %p160 = scmp.ne.s32.totalorder %s148, %s149
      %p161 = scmp.eq.s32.totalorder %s39, 1
      %p162 = por %p160, %p161
      %p164 = scmp.ne.s32.totalorder %s149, %s163
      %p165 = scmp.eq.s32.totalorder %s39, 0
      %p166 = por %p164, %p165
      %s167 = ssub.s32 %s33, %s40
      %p168 = scmp.eq.s32.totalorder %s167, 0
      %s170 = sadd.s32 %s169, 1
      %s171 = scalar_select %p168, %s169, %s170
      %p174 = pneg %p168
      %p175 = scmp.eq.s32.totalorder %s33, 1
      %p176 = por %p174, %p175
      %p177 = scmp.ne.s32.totalorder %s169, %s172
      %p178 = scmp.eq.s32.totalorder %s33, 0
      %p179 = por %p177, %p178
      %p180 = scmp.ne.s32.totalorder %s169, %s172
      %p181 = scmp.eq.s32.totalorder %s38, 1
      %p182 = por %p180, %p181
      %p183 = scmp.ne.s32.totalorder %s172, %s173
      %p184 = scmp.eq.s32.totalorder %s38, 0
      %p185 = por %p183, %p184
      %p186 = scmp.ne.s32.totalorder %s172, %s173
      %p187 = scmp.eq.s32.totalorder %s39, 1
      %p188 = por %p186, %p187
      %p190 = scmp.ne.s32.totalorder %s173, %s189
      %p191 = scmp.eq.s32.totalorder %s39, 0
      %p192 = por %p190, %p191
      %s193 = ssub.s32 %s33, %s40
      %p194 = scmp.eq.s32.totalorder %s193, 0
      %s196 = sadd.s32 %s195, 1
      %s197 = scalar_select %p194, %s195, %s196
      %p200 = pneg %p194
      %p201 = scmp.eq.s32.totalorder %s33, 1
      %p202 = por %p200, %p201
      %p203 = scmp.ne.s32.totalorder %s195, %s198
      %p204 = scmp.eq.s32.totalorder %s33, 0
      %p205 = por %p203, %p204
      %p206 = scmp.ne.s32.totalorder %s195, %s198
      %p207 = scmp.eq.s32.totalorder %s38, 1
      %p208 = por %p206, %p207
      %p209 = scmp.ne.s32.totalorder %s198, %s199
      %p210 = scmp.eq.s32.totalorder %s38, 0
      %p211 = por %p209, %p210
      %p212 = scmp.ne.s32.totalorder %s198, %s199
      %p213 = scmp.eq.s32.totalorder %s39, 1
      %p214 = por %p212, %p213
      %p216 = scmp.ne.s32.totalorder %s199, %s215
      %p217 = scmp.eq.s32.totalorder %s39, 0
      %p218 = por %p216, %p217
      %s219 = ssub.s32 %s33, %s40
      %p220 = scmp.eq.s32.totalorder %s219, 0
      %s222 = sadd.s32 %s221, 1
      %s223 = scalar_select %p220, %s221, %s222
      %p226 = pneg %p220
      %p227 = scmp.eq.s32.totalorder %s33, 1
      %p228 = por %p226, %p227
      %p229 = scmp.ne.s32.totalorder %s221, %s224
      %p230 = scmp.eq.s32.totalorder %s33, 0
      %p231 = por %p229, %p230
      %p232 = scmp.ne.s32.totalorder %s221, %s224
      %p233 = scmp.eq.s32.totalorder %s38, 1
      %p234 = por %p232, %p233
      %p235 = scmp.ne.s32.totalorder %s224, %s225
      %p236 = scmp.eq.s32.totalorder %s38, 0
      %p237 = por %p235, %p236
      %p238 = scmp.ne.s32.totalorder %s224, %s225
      %p239 = scmp.eq.s32.totalorder %s39, 1
      %p240 = por %p238, %p239
      %p242 = scmp.ne.s32.totalorder %s225, %s241
      %p243 = scmp.eq.s32.totalorder %s39, 0
      %p244 = por %p242, %p243
      %s245 = ssub.s32 %s33, %s40
      %p246 = scmp.eq.s32.totalorder %s245, 0
      %s248 = sadd.s32 %s247, 1
      %s249 = scalar_select %p246, %s247, %s248
      %p252 = pneg %p246
      %p253 = scmp.eq.s32.totalorder %s33, 1
      %p254 = por %p252, %p253
      %p255 = scmp.ne.s32.totalorder %s247, %s250
      %p256 = scmp.eq.s32.totalorder %s33, 0
      %p257 = por %p255, %p256
      %p258 = scmp.ne.s32.totalorder %s247, %s250
      %p259 = scmp.eq.s32.totalorder %s38, 1
      %p260 = por %p258, %p259
      %p261 = scmp.ne.s32.totalorder %s250, %s251
      %p262 = scmp.eq.s32.totalorder %s38, 0
      %p263 = por %p261, %p262
      %p264 = scmp.ne.s32.totalorder %s250, %s251
      %p265 = scmp.eq.s32.totalorder %s39, 1
      %p266 = por %p264, %p265
      %p268 = scmp.ne.s32.totalorder %s251, %s267
      %p269 = scmp.eq.s32.totalorder %s39, 0
      %p270 = por %p268, %p269
      %s271 = ssub.s32 %s33, %s40
      %p272 = scmp.eq.s32.totalorder %s271, 0
      %s274 = sadd.s32 %s273, 1
      %s275 = scalar_select %p272, %s273, %s274
      %p278 = pneg %p272
      %p279 = scmp.eq.s32.totalorder %s33, 1
      %p280 = por %p278, %p279
      %p281 = scmp.ne.s32.totalorder %s273, %s276
      %p282 = scmp.eq.s32.totalorder %s33, 0
      %p283 = por %p281, %p282
      %p284 = scmp.ne.s32.totalorder %s273, %s276
      %p285 = scmp.eq.s32.totalorder %s38, 1
      %p286 = por %p284, %p285
      %p287 = scmp.ne.s32.totalorder %s276, %s277
      %p288 = scmp.eq.s32.totalorder %s38, 0
      %p289 = por %p287, %p288
      %p290 = scmp.ne.s32.totalorder %s276, %s277
      %p291 = scmp.eq.s32.totalorder %s39, 1
      %p292 = por %p290, %p291
      %p294 = scmp.ne.s32.totalorder %s277, %s293
      %p295 = scmp.eq.s32.totalorder %s39, 0
      %p296 = por %p294, %p295
      %s297 = ssub.s32 %s33, %s40
      %p298 = scmp.eq.s32.totalorder %s297, 0
      %s300 = sadd.s32 %s299, 1
      %s301 = scalar_select %p298, %s299, %s300
      %p304 = pneg %p298
      %p305 = scmp.eq.s32.totalorder %s33, 1
      %p306 = por %p304, %p305
      %p307 = scmp.ne.s32.totalorder %s299, %s302
      %p308 = scmp.eq.s32.totalorder %s33, 0
      %p309 = por %p307, %p308
      %p310 = scmp.ne.s32.totalorder %s299, %s302
      %p311 = scmp.eq.s32.totalorder %s38, 1
      %p312 = por %p310, %p311
      %p313 = scmp.ne.s32.totalorder %s302, %s303
      %p314 = scmp.eq.s32.totalorder %s38, 0
      %p315 = por %p313, %p314
      %p316 = scmp.ne.s32.totalorder %s302, %s303
      %p317 = scmp.eq.s32.totalorder %s39, 1
      %p318 = por %p316, %p317
      %p320 = scmp.ne.s32.totalorder %s303, %s319
      %p321 = scmp.eq.s32.totalorder %s39, 0
      %p322 = por %p320, %p321
      %s323 = ssub.s32 %s33, %s40
      %p324 = scmp.eq.s32.totalorder %s323, 0
      %s326 = sadd.s32 %s325, 1
      %s327 = scalar_select %p324, %s325, %s326
      %p330 = pneg %p324
      %p331 = scmp.eq.s32.totalorder %s33, 1
      %p332 = por %p330, %p331
      %p333 = scmp.ne.s32.totalorder %s325, %s328
      %p334 = scmp.eq.s32.totalorder %s33, 0
      %p335 = por %p333, %p334
      %p336 = scmp.ne.s32.totalorder %s325, %s328
      %p337 = scmp.eq.s32.totalorder %s38, 1
      %p338 = por %p336, %p337
      %p339 = scmp.ne.s32.totalorder %s328, %s329
      %p340 = scmp.eq.s32.totalorder %s38, 0
      %p341 = por %p339, %p340
      %p342 = scmp.ne.s32.totalorder %s328, %s329
      %p343 = scmp.eq.s32.totalorder %s39, 1
      %p344 = por %p342, %p343
      %p346 = scmp.ne.s32.totalorder %s329, %s345
      %p347 = scmp.eq.s32.totalorder %s39, 0
      %p348 = por %p346, %p347
      %s349 = ssub.s32 %s33, %s40
      %p350 = scmp.eq.s32.totalorder %s349, 0
      %s352 = sadd.s32 %s351, 1
      %s353 = scalar_select %p350, %s351, %s352
      %p356 = pneg %p350
      %p357 = scmp.eq.s32.totalorder %s33, 1
      %p358 = por %p356, %p357
      %p359 = scmp.ne.s32.totalorder %s351, %s354
      %p360 = scmp.eq.s32.totalorder %s33, 0
      %p361 = por %p359, %p360
      %p362 = scmp.ne.s32.totalorder %s351, %s354
      %p363 = scmp.eq.s32.totalorder %s38, 1
      %p364 = por %p362, %p363
      %p365 = scmp.ne.s32.totalorder %s354, %s355
      %p366 = scmp.eq.s32.totalorder %s38, 0
      %p367 = por %p365, %p366
      %p368 = scmp.ne.s32.totalorder %s354, %s355
      %p369 = scmp.eq.s32.totalorder %s39, 1
      %p370 = por %p368, %p369
      %p372 = scmp.ne.s32.totalorder %s355, %s371
      %p373 = scmp.eq.s32.totalorder %s39, 0
      %p374 = por %p372, %p373
      %s375 = ssub.s32 %s33, %s40
      %p376 = scmp.eq.s32.totalorder %s375, 0
      %s378 = sadd.s32 %s377, 1
      %s379 = scalar_select %p376, %s377, %s378
      %p382 = pneg %p376
      %p383 = scmp.eq.s32.totalorder %s33, 1
      %p384 = por %p382, %p383
      %p385 = scmp.ne.s32.totalorder %s377, %s380
      %p386 = scmp.eq.s32.totalorder %s33, 0
      %p387 = por %p385, %p386
      %p388 = scmp.ne.s32.totalorder %s377, %s380
      %p389 = scmp.eq.s32.totalorder %s38, 1
      %p390 = por %p388, %p389
      %p391 = scmp.ne.s32.totalorder %s380, %s381
      %p392 = scmp.eq.s32.totalorder %s38, 0
      %p393 = por %p391, %p392
      %p394 = scmp.ne.s32.totalorder %s380, %s381
      %p395 = scmp.eq.s32.totalorder %s39, 1
      %p396 = por %p394, %p395
      %p398 = scmp.ne.s32.totalorder %s381, %s397
      %p399 = scmp.eq.s32.totalorder %s39, 0
      %p400 = por %p398, %p399
      %s401 = ssub.s32 %s33, %s40
      %p402 = scmp.eq.s32.totalorder %s401, 0
      %s404 = sadd.s32 %s403, 1
      %s405 = scalar_select %p402, %s403, %s404
      %p408 = pneg %p402
      %p409 = scmp.eq.s32.totalorder %s33, 1
      %p410 = por %p408, %p409
      %p411 = scmp.ne.s32.totalorder %s403, %s406
      %p412 = scmp.eq.s32.totalorder %s33, 0
      %p413 = por %p411, %p412
      %p414 = scmp.ne.s32.totalorder %s403, %s406
      %p415 = scmp.eq.s32.totalorder %s38, 1
      %p416 = por %p414, %p415
      %p417 = scmp.ne.s32.totalorder %s406, %s407
      %p418 = scmp.eq.s32.totalorder %s38, 0
      %p419 = por %p417, %p418
      %p420 = scmp.ne.s32.totalorder %s406, %s407
      %p421 = scmp.eq.s32.totalorder %s39, 1
      %p422 = por %p420, %p421
      %p424 = scmp.ne.s32.totalorder %s407, %s423
      %p425 = scmp.eq.s32.totalorder %s39, 0
      %p426 = por %p424, %p425
      %s427 = ssub.s32 %s33, %s40
      %p428 = scmp.eq.s32.totalorder %s427, 0
      %s430 = sadd.s32 %s429, 1
      %s431 = scalar_select %p428, %s429, %s430
      %p434 = pneg %p428
      %p435 = scmp.eq.s32.totalorder %s33, 1
      %p436 = por %p434, %p435
      %p437 = scmp.ne.s32.totalorder %s429, %s432
      %p438 = scmp.eq.s32.totalorder %s33, 0
      %p439 = por %p437, %p438
      %p440 = scmp.ne.s32.totalorder %s429, %s432
      %p441 = scmp.eq.s32.totalorder %s38, 1
      %p442 = por %p440, %p441
      %p443 = scmp.ne.s32.totalorder %s432, %s433
      %p444 = scmp.eq.s32.totalorder %s38, 0
      %p445 = por %p443, %p444
      %p446 = scmp.ne.s32.totalorder %s432, %s433
      %p447 = scmp.eq.s32.totalorder %s39, 1
      %p448 = por %p446, %p447
      %p450 = scmp.ne.s32.totalorder %s433, %s449
      %p451 = scmp.eq.s32.totalorder %s39, 0
      %p452 = por %p450, %p451
      %s453 = ssub.s32 %s33, %s40
      %p454 = scmp.eq.s32.totalorder %s453, 0
      %s456 = sadd.s32 %s455, 1
      %s457 = scalar_select %p454, %s455, %s456
      %p460 = pneg %p454
      %p461 = scmp.eq.s32.totalorder %s33, 1
      %p462 = por %p460, %p461
      %p463 = scmp.ne.s32.totalorder %s455, %s458
      %p464 = scmp.eq.s32.totalorder %s33, 0
      %p465 = por %p463, %p464
      %p466 = scmp.ne.s32.totalorder %s455, %s458
      %p467 = scmp.eq.s32.totalorder %s38, 1
      %p468 = por %p466, %p467
      %p469 = scmp.ne.s32.totalorder %s458, %s459
      %p470 = scmp.eq.s32.totalorder %s38, 0
      %p471 = por %p469, %p470
      %p472 = scmp.ne.s32.totalorder %s458, %s459
      %p473 = scmp.eq.s32.totalorder %s39, 1
      %p474 = por %p472, %p473
      %p476 = scmp.ne.s32.totalorder %s459, %s475
      %p477 = scmp.eq.s32.totalorder %s39, 0
      %p478 = por %p476, %p477
      %s480 = sadd.s32 %s479, 1
      %p483 = scmp.eq.s32.totalorder %s33, 1
      %p484 = scmp.ne.s32.totalorder %s479, %s481
      %p485 = scmp.eq.s32.totalorder %s33, 0
      %p486 = por %p484, %p485
      %p487 = scmp.ne.s32.totalorder %s479, %s481
      %p488 = scmp.eq.s32.totalorder %s38, 1
      %p489 = por %p487, %p488
      %p490 = scmp.ne.s32.totalorder %s481, %s482
      %p491 = scmp.eq.s32.totalorder %s38, 0
      %p492 = por %p490, %p491
      %p493 = scmp.ne.s32.totalorder %s481, %s482
      %p494 = scmp.eq.s32.totalorder %s39, 1
      %p495 = por %p493, %p494
      %p497 = scmp.ne.s32.totalorder %s482, %s496
      %p498 = scmp.eq.s32.totalorder %s39, 0
      %p499 = por %p497, %p498
      %s501 = sadd.s32 %s500, 1
      %p504 = scmp.eq.s32.totalorder %s33, 1
      %p505 = scmp.ne.s32.totalorder %s500, %s502
      %p506 = scmp.eq.s32.totalorder %s33, 0
      %p507 = por %p505, %p506
      %p508 = scmp.ne.s32.totalorder %s500, %s502
      %p509 = scmp.eq.s32.totalorder %s38, 1
      %p510 = por %p508, %p509
      %p511 = scmp.ne.s32.totalorder %s502, %s503
      %p512 = scmp.eq.s32.totalorder %s38, 0
      %p513 = por %p511, %p512
      %p514 = scmp.ne.s32.totalorder %s502, %s503
      %p515 = scmp.eq.s32.totalorder %s39, 1
      %p516 = por %p514, %p515
      %p518 = scmp.ne.s32.totalorder %s503, %s517
      %p519 = scmp.eq.s32.totalorder %s39, 0
      %p520 = por %p518, %p519
      %s522 = sadd.s32 %s521, 1
      %p525 = scmp.eq.s32.totalorder %s33, 1
      %p526 = scmp.ne.s32.totalorder %s521, %s523
      %p527 = scmp.eq.s32.totalorder %s33, 0
      %p528 = por %p526, %p527
      %p529 = scmp.ne.s32.totalorder %s521, %s523
      %p530 = scmp.eq.s32.totalorder %s38, 1
      %p531 = por %p529, %p530
      %p532 = scmp.ne.s32.totalorder %s523, %s524
      %p533 = scmp.eq.s32.totalorder %s38, 0
      %p534 = por %p532, %p533
      %p535 = scmp.ne.s32.totalorder %s523, %s524
      %p536 = scmp.eq.s32.totalorder %s39, 1
      %p537 = por %p535, %p536
      %p539 = scmp.ne.s32.totalorder %s524, %s538
      %p540 = scmp.eq.s32.totalorder %s39, 0
      %p541 = por %p539, %p540
      %s543 = sadd.s32 %s542, 1
      %p546 = scmp.eq.s32.totalorder %s33, 1
      %p547 = scmp.ne.s32.totalorder %s542, %s544
      %p548 = scmp.eq.s32.totalorder %s33, 0
      %p549 = por %p547, %p548
      %p550 = scmp.ne.s32.totalorder %s542, %s544
      %p551 = scmp.eq.s32.totalorder %s38, 1
      %p552 = por %p550, %p551
      %p553 = scmp.ne.s32.totalorder %s544, %s545
      %p554 = scmp.eq.s32.totalorder %s38, 0
      %p555 = por %p553, %p554
      %p556 = scmp.ne.s32.totalorder %s544, %s545
      %p557 = scmp.eq.s32.totalorder %s39, 1
      %p558 = por %p556, %p557
      %p560 = scmp.ne.s32.totalorder %s545, %s559
      %p561 = scmp.eq.s32.totalorder %s39, 0
      %p562 = por %p560, %p561
      %s564 = sadd.s32 %s563, 1
      %p567 = scmp.eq.s32.totalorder %s33, 1
      %p568 = scmp.ne.s32.totalorder %s563, %s565
      %p569 = scmp.eq.s32.totalorder %s33, 0
      %p570 = por %p568, %p569
      %p571 = scmp.ne.s32.totalorder %s563, %s565
      %p572 = scmp.eq.s32.totalorder %s38, 1
      %p573 = por %p571, %p572
      %p574 = scmp.ne.s32.totalorder %s565, %s566
      %p575 = scmp.eq.s32.totalorder %s38, 0
      %p576 = por %p574, %p575
      %p577 = scmp.ne.s32.totalorder %s565, %s566
      %p578 = scmp.eq.s32.totalorder %s39, 1
      %p579 = por %p577, %p578
      %p581 = scmp.ne.s32.totalorder %s566, %s580
      %p582 = scmp.eq.s32.totalorder %s39, 0
      %p583 = por %p581, %p582
      %p584 = scmp.le.s32.totalorder 1, %s33
      %p585 = scmp.lt.s32.totalorder %s33, 3
      %p586 = pnand %p584, %p585
      %p587 = pneg %p586
      // Predicated region
      $region9: #{tpu_custom_call.1} parent=5 // pred_check
        _
      $region10: #{tpu_custom_call.1} parent=5 // pred_check_branch
        %589 = sbr.rel (%p586) target = $region12
      $region11: #{tpu_custom_call.1} parent=5 // pred_region
        %s590 = ssub.s32 %s33, 1
        // Predicated region
        $region13: #{tpu_custom_call.1} parent=11 // pred_check
          %p591 = pneg %p54
        $region14: #{tpu_custom_call.1} parent=11 // pred_check_branch
          %593 = sbr.rel (%p591) target = $region16
        $region15: #{tpu_custom_call.1} parent=11 // pred_region
          %s595 = ssub.s32 1024, 1024
          %596 = vsyncadd [#allocation4], %s595
          %s597 = sshll.u32 [#allocation3], 4
          %s598 = int_to_ptr.vmem [resolvable:$true] %s597
          %603 = dma.hbm_to_vmem [thread:$0]  %s0, 1024, %s598, [#allocation4], 256, 256, 16
        $region16: #{tpu_custom_call.1} parent=11 // pred_fallthru
          _
        // Predicated region
        $region17: #{tpu_custom_call.1} parent=11 // pred_check
          %p604 = pneg %p75
        $region18: #{tpu_custom_call.1} parent=11 // pred_check_branch
          %606 = sbr.rel (%p604) target = $region20
        $region19: #{tpu_custom_call.1} parent=11 // pred_region
          %s608 = ssub.s32 1536, 1536
          %609 = vsyncadd [#allocation7], %s608
          %s610 = sshll.u32 [#allocation6], 4
          %s611 = int_to_ptr.vmem [resolvable:$true] %s610
          %616 = dma.hbm_to_vmem [thread:$0]  %s1, 1536, %s611, [#allocation7], 64, 64, 4
        $region20: #{tpu_custom_call.1} parent=11 // pred_fallthru
          _
        // Predicated region
        $region21: #{tpu_custom_call.1} parent=11 // pred_check
          %p617 = pneg %p96
        $region22: #{tpu_custom_call.1} parent=11 // pred_check_branch
          %619 = sbr.rel (%p617) target = $region24
        $region23: #{tpu_custom_call.1} parent=11 // pred_region
          %s621 = ssub.s32 16, 16
          %622 = vsyncadd [#allocation7], %s621
          %s624 = sshll.u32 [#allocation8], 4
          %s625 = int_to_ptr.vmem [resolvable:$true] %s624
          %627 = dma.hbm_to_vmem [thread:$0]  %s2, 16, %s625, [#allocation7]
        $region24: #{tpu_custom_call.1} parent=11 // pred_fallthru
          _
        // Predicated region
        $region25: #{tpu_custom_call.1} parent=11 // pred_check
          %p628 = pneg %p117
        $region26: #{tpu_custom_call.1} parent=11 // pred_check_branch
          %630 = sbr.rel (%p628) target = $region28
        $region27: #{tpu_custom_call.1} parent=11 // pred_region
          %s632 = ssub.s32 16, 16
          %633 = vsyncadd [#allocation10], %s632
          %s635 = sshll.u32 [#allocation9], 4
          %s636 = int_to_ptr.vmem [resolvable:$true] %s635
          %638 = dma.hbm_to_vmem [thread:$0]  %s3, 16, %s636, [#allocation10]
        $region28: #{tpu_custom_call.1} parent=11 // pred_fallthru
          _
        // Predicated region
        $region29: #{tpu_custom_call.1} parent=11 // pred_check
          %p639 = pneg %p138
        $region30: #{tpu_custom_call.1} parent=11 // pred_check_branch
          %641 = sbr.rel (%p639) target = $region32
        $region31: #{tpu_custom_call.1} parent=11 // pred_region
          %s643 = ssub.s32 16, 16
          %644 = vsyncadd [#allocation10], %s643
          %s646 = sshll.u32 [#allocation11], 4
          %s647 = int_to_ptr.vmem [resolvable:$true] %s646
          %649 = dma.hbm_to_vmem [thread:$0]  %s4, 16, %s647, [#allocation10]
        $region32: #{tpu_custom_call.1} parent=11 // pred_fallthru
          _
        // Predicated region
        $region33: #{tpu_custom_call.1} parent=11 // pred_check
          %p650 = pneg %p159
        $region34: #{tpu_custom_call.1} parent=11 // pred_check_branch
          %652 = sbr.rel (%p650) target = $region36
        $region35: #{tpu_custom_call.1} parent=11 // pred_region
          %s654 = ssub.s32 256, 256
          %655 = vsyncadd [#allocation13], %s654
          %s656 = sshll.u32 [#allocation12], 4
          %s657 = int_to_ptr.vmem [resolvable:$true] %s656
          %662 = dma.hbm_to_vmem [thread:$0]  %s5, 256, %s657, [#allocation13], 128, 128, 8
        $region36: #{tpu_custom_call.1} parent=11 // pred_fallthru
          _
        // Predicated region
        $region37: #{tpu_custom_call.1} parent=11 // pred_check
          %p663 = pneg %p492
        $region38: #{tpu_custom_call.1} parent=11 // pred_check_branch
          %665 = sbr.rel (%p663) target = $region40
        $region39: #{tpu_custom_call.1} parent=11 // pred_region
          _
        $region40: #{tpu_custom_call.1} parent=11 // pred_fallthru
          _
        // Predicated region
        $region41: #{tpu_custom_call.1} parent=11 // pred_check
          %p666 = pneg %p513
        $region42: #{tpu_custom_call.1} parent=11 // pred_check_branch
          %668 = sbr.rel (%p666) target = $region44
        $region43: #{tpu_custom_call.1} parent=11 // pred_region
          _
        $region44: #{tpu_custom_call.1} parent=11 // pred_fallthru
          _
        // Predicated region
        $region45: #{tpu_custom_call.1} parent=11 // pred_check
          %p669 = pneg %p534
        $region46: #{tpu_custom_call.1} parent=11 // pred_check_branch
          %671 = sbr.rel (%p669) target = $region48
        $region47: #{tpu_custom_call.1} parent=11 // pred_region
          %s673 = ssub.s32 1024, 1024
          %674 = vsyncadd [#allocation7], %s673
          %s675 = sshll.u32 [#allocation19], 4
          %s676 = int_to_ptr.vmem [resolvable:$true] %s675
          %681 = dma.hbm_to_vmem [thread:$0]  %s20, 1024, %s676, [#allocation7], 64, 64, 4
        $region48: #{tpu_custom_call.1} parent=11 // pred_fallthru
          _
        // Predicated region
        $region49: #{tpu_custom_call.1} parent=11 // pred_check
          %p682 = pneg %p555
        $region50: #{tpu_custom_call.1} parent=11 // pred_check_branch
          %684 = sbr.rel (%p682) target = $region52
        $region51: #{tpu_custom_call.1} parent=11 // pred_region
          _
        $region52: #{tpu_custom_call.1} parent=11 // pred_fallthru
          _
      $region12: #{tpu_custom_call.1} parent=5 // pred_fallthru
        _
      %p685 = scmp.lt.s32.totalorder %s33, 2
      // Predicated region
      $region53: #{tpu_custom_call.1} parent=5 // pred_check
        %p686 = pneg %p685
      $region54: #{tpu_custom_call.1} parent=5 // pred_check_branch
        %688 = sbr.rel (%p686) target = $region56
      $region55: #{tpu_custom_call.1} parent=5 // pred_region
        // Predicated region
        $region57: #{tpu_custom_call.1} parent=55 // pred_check
          %p689 = pneg %p179
        $region58: #{tpu_custom_call.1} parent=55 // pred_check_branch
          %691 = sbr.rel (%p689) target = $region60
        $region59: #{tpu_custom_call.1} parent=55 // pred_region
          %p692 = scmp.lt.s32.totalorder %s33, 1
          %s693 = scalar_select %p692, %s33, 1
          %s694 = scalar_lea.vmem %s6, %s693
        $region60: #{tpu_custom_call.1} parent=55 // pred_fallthru
          _
        // Predicated region
        $region61: #{tpu_custom_call.1} parent=55 // pred_check
          %p695 = pneg %p205
        $region62: #{tpu_custom_call.1} parent=55 // pred_check_branch
          %697 = sbr.rel (%p695) target = $region64
        $region63: #{tpu_custom_call.1} parent=55 // pred_region
          %s698 = sand.u32 %s33, 1
          %s699 = scalar_lea.sflag [#allocation4], %s698
          %s700 = sand.u32 %s195, 1
          %s701 = scalar_lea.vmem [#allocation14], %s700
          %s703 = ssub.s32 16, 16
          %704 = vsyncadd %s699, %s703
          %s705 = smul.addr %s33, 16
          %s706 = scalar_lea.hbm %s7, %s705
          %s708 = sshll.u32 %s701, 4
          %s709 = int_to_ptr.vmem [resolvable:$true] %s708
          %711 = dma.hbm_to_vmem [thread:$0]  %s706, 16, %s709, %s699
        $region64: #{tpu_custom_call.1} parent=55 // pred_fallthru
          _
        // Predicated region
        $region65: #{tpu_custom_call.1} parent=55 // pred_check
          %p712 = pneg %p231
        $region66: #{tpu_custom_call.1} parent=55 // pred_check_branch
          %714 = sbr.rel (%p712) target = $region68
        $region67: #{tpu_custom_call.1} parent=55 // pred_region
          %s715 = sand.u32 %s33, 1
          %s716 = scalar_lea.sflag [#allocation4], %s715
          %s717 = sand.u32 %s221, 1
          %s718 = smul.addr %s717, 192
          %s719 = scalar_lea.vmem [#allocation15], %s718
          %s721 = ssub.s32 3072, 3072
          %722 = vsyncadd %s716, %s721
          %s723 = smul.addr %s33, 48
          %s724 = smul.addr %s723, 64
          %s725 = scalar_lea.hbm %s8, %s724
          %s726 = sshll.u32 %s719, 4
          %s727 = int_to_ptr.vmem [resolvable:$true] %s726
          %732 = dma.hbm_to_vmem [thread:$0]  %s725, 3072, %s727, %s716, 192, 192, 12
        $region68: #{tpu_custom_call.1} parent=55 // pred_fallthru
          _
        // Predicated region
        $region69: #{tpu_custom_call.1} parent=55 // pred_check
          %p733 = pneg %p257
        $region70: #{tpu_custom_call.1} parent=55 // pred_check_branch
          %735 = sbr.rel (%p733) target = $region72
        $region71: #{tpu_custom_call.1} parent=55 // pred_region
          %p736 = scmp.lt.s32.totalorder %s33, 1
          %s737 = scalar_select %p736, %s33, 1
          %s738 = smul.addr %s737, 3
          %s739 = scalar_lea.vmem %s9, %s738
        $region72: #{tpu_custom_call.1} parent=55 // pred_fallthru
          _
        // Predicated region
        $region73: #{tpu_custom_call.1} parent=55 // pred_check
          %p740 = pneg %p283
        $region74: #{tpu_custom_call.1} parent=55 // pred_check_branch
          %742 = sbr.rel (%p740) target = $region76
        $region75: #{tpu_custom_call.1} parent=55 // pred_region
          %s743 = sand.u32 %s33, 1
          %s744 = scalar_lea.sflag [#allocation4], %s743
          %s745 = sand.u32 %s273, 1
          %s746 = smul.addr %s745, 64
          %s747 = scalar_lea.vmem [#allocation16], %s746
          %s749 = ssub.s32 1024, 1024
          %750 = vsyncadd %s744, %s749
          %s751 = smul.addr %s33, 16
          %s752 = smul.addr %s751, 64
          %s753 = scalar_lea.hbm %s10, %s752
          %s754 = sshll.u32 %s747, 4
          %s755 = int_to_ptr.vmem [resolvable:$true] %s754
          %760 = dma.hbm_to_vmem [thread:$0]  %s753, 1024, %s755, %s744, 64, 64, 4
        $region76: #{tpu_custom_call.1} parent=55 // pred_fallthru
          _
        // Predicated region
        $region77: #{tpu_custom_call.1} parent=55 // pred_check
          %p761 = pneg %p309
        $region78: #{tpu_custom_call.1} parent=55 // pred_check_branch
          %763 = sbr.rel (%p761) target = $region80
        $region79: #{tpu_custom_call.1} parent=55 // pred_region
          %p764 = scmp.lt.s32.totalorder %s33, 1
          %s765 = scalar_select %p764, %s33, 1
          %s766 = scalar_lea.vmem %s11, %s765
        $region80: #{tpu_custom_call.1} parent=55 // pred_fallthru
          _
        // Predicated region
        $region81: #{tpu_custom_call.1} parent=55 // pred_check
          %p767 = pneg %p335
        $region82: #{tpu_custom_call.1} parent=55 // pred_check_branch
          %769 = sbr.rel (%p767) target = $region84
        $region83: #{tpu_custom_call.1} parent=55 // pred_region
          %p770 = scmp.lt.s32.totalorder %s33, 1
          %s771 = scalar_select %p770, %s33, 1
          %s772 = scalar_lea.vmem %s12, %s771
        $region84: #{tpu_custom_call.1} parent=55 // pred_fallthru
          _
        // Predicated region
        $region85: #{tpu_custom_call.1} parent=55 // pred_check
          %p773 = pneg %p361
        $region86: #{tpu_custom_call.1} parent=55 // pred_check_branch
          %775 = sbr.rel (%p773) target = $region88
        $region87: #{tpu_custom_call.1} parent=55 // pred_region
          %p776 = scmp.lt.s32.totalorder %s33, 1
          %s777 = scalar_select %p776, %s33, 1
          %s778 = scalar_lea.vmem %s13, %s777
        $region88: #{tpu_custom_call.1} parent=55 // pred_fallthru
          _
        // Predicated region
        $region89: #{tpu_custom_call.1} parent=55 // pred_check
          %p779 = pneg %p387
        $region90: #{tpu_custom_call.1} parent=55 // pred_check_branch
          %781 = sbr.rel (%p779) target = $region92
        $region91: #{tpu_custom_call.1} parent=55 // pred_region
          %s782 = sand.u32 %s33, 1
          %s783 = scalar_lea.sflag [#allocation4], %s782
          %s784 = sand.u32 %s377, 1
          %s785 = smul.addr %s784, 128
          %s786 = scalar_lea.vmem [#allocation17], %s785
          %s788 = ssub.s32 2048, 2048
          %789 = vsyncadd %s783, %s788
          %s790 = smul.addr %s33, 32
          %s791 = smul.addr %s790, 64
          %s792 = scalar_lea.hbm %s14, %s791
          %s793 = sshll.u32 %s786, 4
          %s794 = int_to_ptr.vmem [resolvable:$true] %s793
          %799 = dma.hbm_to_vmem [thread:$0]  %s792, 2048, %s794, %s783, 128, 128, 8
        $region92: #{tpu_custom_call.1} parent=55 // pred_fallthru
          _
        // Predicated region
        $region93: #{tpu_custom_call.1} parent=55 // pred_check
          %p800 = pneg %p413
        $region94: #{tpu_custom_call.1} parent=55 // pred_check_branch
          %802 = sbr.rel (%p800) target = $region96
        $region95: #{tpu_custom_call.1} parent=55 // pred_region
          %p803 = scmp.lt.s32.totalorder %s33, 1
          %s804 = scalar_select %p803, %s33, 1
          %s805 = smul.addr %s804, 2
          %s806 = scalar_lea.vmem %s15, %s805
        $region96: #{tpu_custom_call.1} parent=55 // pred_fallthru
          _
        // Predicated region
        $region97: #{tpu_custom_call.1} parent=55 // pred_check
          %p807 = pneg %p439
        $region98: #{tpu_custom_call.1} parent=55 // pred_check_branch
          %809 = sbr.rel (%p807) target = $region100
        $region99: #{tpu_custom_call.1} parent=55 // pred_region
          %s810 = sand.u32 %s33, 1
          %s811 = scalar_lea.sflag [#allocation4], %s810
          %s812 = sand.u32 %s429, 1
          %s813 = smul.addr %s812, 128
          %s814 = scalar_lea.vmem [#allocation18], %s813
          %s816 = ssub.s32 2048, 2048
          %817 = vsyncadd %s811, %s816
          %s818 = smul.addr %s33, 32
          %s819 = smul.addr %s818, 64
          %s820 = scalar_lea.hbm %s16, %s819
          %s821 = sshll.u32 %s814, 4
          %s822 = int_to_ptr.vmem [resolvable:$true] %s821
          %827 = dma.hbm_to_vmem [thread:$0]  %s820, 2048, %s822, %s811, 64, 64, 4
        $region100: #{tpu_custom_call.1} parent=55 // pred_fallthru
          _
        // Predicated region
        $region101: #{tpu_custom_call.1} parent=55 // pred_check
          %p828 = pneg %p465
        $region102: #{tpu_custom_call.1} parent=55 // pred_check_branch
          %830 = sbr.rel (%p828) target = $region104
        $region103: #{tpu_custom_call.1} parent=55 // pred_region
          %p831 = scmp.lt.s32.totalorder %s33, 1
          %s832 = scalar_select %p831, %s33, 1
          %s833 = scalar_lea.vmem %s17, %s832
        $region104: #{tpu_custom_call.1} parent=55 // pred_fallthru
          _
      $region56: #{tpu_custom_call.1} parent=5 // pred_fallthru
        _
      %p834 = scmp.le.s32.totalorder 1, %s33
      %p835 = scmp.lt.s32.totalorder %s33, 3
      %p836 = pnand %p834, %p835
      %p837 = pneg %p836
      // Predicated region
      $region105: #{tpu_custom_call.1} parent=5 // pred_check
        _
      $region106: #{tpu_custom_call.1} parent=5 // pred_check_branch
        %839 = sbr.rel (%p836) target = $region108
      $region107: #{tpu_custom_call.1} parent=5 // pred_region
        %s840 = ssub.s32 %s33, 1
        // Predicated region
        $region109: #{tpu_custom_call.1} parent=107 // pred_check
          %p841 = pneg %p54
        $region110: #{tpu_custom_call.1} parent=107 // pred_check_branch
          %843 = sbr.rel (%p841) target = $region112
        $region111: #{tpu_custom_call.1} parent=107 // pred_region
          %844 = dma.done [#allocation4], 1024
        $region112: #{tpu_custom_call.1} parent=107 // pred_fallthru
          _
        // Predicated region
        $region113: #{tpu_custom_call.1} parent=107 // pred_check
          %p845 = pneg %p75
        $region114: #{tpu_custom_call.1} parent=107 // pred_check_branch
          %847 = sbr.rel (%p845) target = $region116
        $region115: #{tpu_custom_call.1} parent=107 // pred_region
          %848 = dma.done [#allocation7], 1536
        $region116: #{tpu_custom_call.1} parent=107 // pred_fallthru
          _
        // Predicated region
        $region117: #{tpu_custom_call.1} parent=107 // pred_check
          %p849 = pneg %p96
        $region118: #{tpu_custom_call.1} parent=107 // pred_check_branch
          %851 = sbr.rel (%p849) target = $region120
        $region119: #{tpu_custom_call.1} parent=107 // pred_region
          %852 = dma.done [#allocation7], 16
        $region120: #{tpu_custom_call.1} parent=107 // pred_fallthru
          _
        // Predicated region
        $region121: #{tpu_custom_call.1} parent=107 // pred_check
          %p853 = pneg %p117
        $region122: #{tpu_custom_call.1} parent=107 // pred_check_branch
          %855 = sbr.rel (%p853) target = $region124
        $region123: #{tpu_custom_call.1} parent=107 // pred_region
          %856 = dma.done [#allocation10], 16
        $region124: #{tpu_custom_call.1} parent=107 // pred_fallthru
          _
        // Predicated region
        $region125: #{tpu_custom_call.1} parent=107 // pred_check
          %p857 = pneg %p138
        $region126: #{tpu_custom_call.1} parent=107 // pred_check_branch
          %859 = sbr.rel (%p857) target = $region128
        $region127: #{tpu_custom_call.1} parent=107 // pred_region
          %860 = dma.done [#allocation10], 16
        $region128: #{tpu_custom_call.1} parent=107 // pred_fallthru
          _
        // Predicated region
        $region129: #{tpu_custom_call.1} parent=107 // pred_check
          %p861 = pneg %p159
        $region130: #{tpu_custom_call.1} parent=107 // pred_check_branch
          %863 = sbr.rel (%p861) target = $region132
        $region131: #{tpu_custom_call.1} parent=107 // pred_region
          %864 = dma.done [#allocation13], 256
        $region132: #{tpu_custom_call.1} parent=107 // pred_fallthru
          _
        %s865 = sand.u32 %s38, 1
        %s866 = scalar_lea.sflag [#allocation4], %s865
        %s867 = sand.u32 %s198, 1
        %s868 = scalar_lea.vmem [#allocation14], %s867
        // Predicated region
        $region133: #{tpu_custom_call.1} parent=107 // pred_check
          %p869 = pneg %p211
        $region134: #{tpu_custom_call.1} parent=107 // pred_check_branch
          %871 = sbr.rel (%p869) target = $region136
        $region135: #{tpu_custom_call.1} parent=107 // pred_region
          %872 = dma.done %s866, 16
        $region136: #{tpu_custom_call.1} parent=107 // pred_fallthru
          _
        %s873 = sand.u32 %s38, 1
        %s874 = scalar_lea.sflag [#allocation4], %s873
        %s875 = sand.u32 %s224, 1
        %s876 = smul.addr %s875, 192
        %s877 = scalar_lea.vmem [#allocation15], %s876
        // Predicated region
        $region137: #{tpu_custom_call.1} parent=107 // pred_check
          %p878 = pneg %p237
        $region138: #{tpu_custom_call.1} parent=107 // pred_check_branch
          %880 = sbr.rel (%p878) target = $region140
        $region139: #{tpu_custom_call.1} parent=107 // pred_region
          %881 = dma.done %s874, 3072
        $region140: #{tpu_custom_call.1} parent=107 // pred_fallthru
          _
        %s882 = sand.u32 %s38, 1
        %s883 = scalar_lea.sflag [#allocation4], %s882
        %s884 = sand.u32 %s276, 1
        %s885 = smul.addr %s884, 64
        %s886 = scalar_lea.vmem [#allocation16], %s885
        // Predicated region
        $region141: #{tpu_custom_call.1} parent=107 // pred_check
          %p887 = pneg %p289
        $region142: #{tpu_custom_call.1} parent=107 // pred_check_branch
          %889 = sbr.rel (%p887) target = $region144
        $region143: #{tpu_custom_call.1} parent=107 // pred_region
          %890 = dma.done %s883, 1024
        $region144: #{tpu_custom_call.1} parent=107 // pred_fallthru
          _
        %s891 = sand.u32 %s38, 1
        %s892 = scalar_lea.sflag [#allocation4], %s891
        %s893 = sand.u32 %s380, 1
        %s894 = smul.addr %s893, 128
        %s895 = scalar_lea.vmem [#allocation17], %s894
        // Predicated region
        $region145: #{tpu_custom_call.1} parent=107 // pred_check
          %p896 = pneg %p393
        $region146: #{tpu_custom_call.1} parent=107 // pred_check_branch
          %898 = sbr.rel (%p896) target = $region148
        $region147: #{tpu_custom_call.1} parent=107 // pred_region
          %899 = dma.done %s892, 2048
        $region148: #{tpu_custom_call.1} parent=107 // pred_fallthru
          _
        %s900 = sand.u32 %s38, 1
        %s901 = scalar_lea.sflag [#allocation4], %s900
        %s902 = sand.u32 %s432, 1
        %s903 = smul.addr %s902, 128
        %s904 = scalar_lea.vmem [#allocation18], %s903
        // Predicated region
        $region149: #{tpu_custom_call.1} parent=107 // pred_check
          %p905 = pneg %p445
        $region150: #{tpu_custom_call.1} parent=107 // pred_check_branch
          %907 = sbr.rel (%p905) target = $region152
        $region151: #{tpu_custom_call.1} parent=107 // pred_region
          %908 = dma.done %s901, 2048
        $region152: #{tpu_custom_call.1} parent=107 // pred_fallthru
          _
        // Predicated region
        $region153: #{tpu_custom_call.1} parent=107 // pred_check
          %p909 = pneg %p534
        $region154: #{tpu_custom_call.1} parent=107 // pred_check_branch
          %911 = sbr.rel (%p909) target = $region156
        $region155: #{tpu_custom_call.1} parent=107 // pred_region
          %912 = dma.done [#allocation7], 1024
        $region156: #{tpu_custom_call.1} parent=107 // pred_fallthru
          _
        %p913 = pneg %p54
        %p914 = pneg %p51
        %p915 = pneg %p75
        %p916 = pneg %p72
        %p917 = pneg %p96
        %p918 = pneg %p93
        %p919 = pneg %p117
        %p920 = pneg %p114
        %p921 = pneg %p138
        %p922 = pneg %p135
        %p923 = pneg %p159
        %p924 = pneg %p156
        %p925 = scmp.lt.s32.totalorder %s38, 1
        %s926 = scalar_select %p925, %s38, 1
        %s927 = scalar_lea.vmem %s6, %s926
        %p928 = pneg %p185
        %p929 = pneg %p182
        %s930 = sand.u32 %s38, 1
        %s931 = scalar_lea.sflag [#allocation4], %s930
        %s932 = sand.u32 %s198, 1
        %s933 = scalar_lea.vmem [#allocation14], %s932
        %p934 = pneg %p211
        %p935 = pneg %p208
        %s936 = sand.u32 %s38, 1
        %s937 = scalar_lea.sflag [#allocation4], %s936
        %s938 = sand.u32 %s224, 1
        %s939 = smul.addr %s938, 192
        %s940 = scalar_lea.vmem [#allocation15], %s939
        %p941 = pneg %p237
        %p942 = pneg %p234
        %p943 = scmp.lt.s32.totalorder %s38, 1
        %s944 = scalar_select %p943, %s38, 1
        %s945 = smul.addr %s944, 3
        %s946 = scalar_lea.vmem %s9, %s945
        %p947 = pneg %p263
        %p948 = pneg %p260
        %s949 = sand.u32 %s38, 1
        %s950 = scalar_lea.sflag [#allocation4], %s949
        %s951 = sand.u32 %s276, 1
        %s952 = smul.addr %s951, 64
        %s953 = scalar_lea.vmem [#allocation16], %s952
        %p954 = pneg %p289
        %p955 = pneg %p286
        %p956 = scmp.lt.s32.totalorder %s38, 1
        %s957 = scalar_select %p956, %s38, 1
        %s958 = scalar_lea.vmem %s11, %s957
        %p959 = pneg %p315
        %p960 = pneg %p312
        %p961 = scmp.lt.s32.totalorder %s38, 1
        %s962 = scalar_select %p961, %s38, 1
        %s963 = scalar_lea.vmem %s12, %s962
        %p964 = pneg %p341
        %p965 = pneg %p338
        %p966 = scmp.lt.s32.totalorder %s38, 1
        %s967 = scalar_select %p966, %s38, 1
        %s968 = scalar_lea.vmem %s13, %s967
        %p969 = pneg %p367
        %p970 = pneg %p364
        %s971 = sand.u32 %s38, 1
        %s972 = scalar_lea.sflag [#allocation4], %s971
        %s973 = sand.u32 %s380, 1
        %s974 = smul.addr %s973, 128
        %s975 = scalar_lea.vmem [#allocation17], %s974
        %p976 = pneg %p393
        %p977 = pneg %p390
        %p978 = scmp.lt.s32.totalorder %s38, 1
        %s979 = scalar_select %p978, %s38, 1
        %s980 = smul.addr %s979, 2
        %s981 = scalar_lea.vmem %s15, %s980
        %p982 = pneg %p419
        %p983 = pneg %p416
        %s984 = sand.u32 %s38, 1
        %s985 = scalar_lea.sflag [#allocation4], %s984
        %s986 = sand.u32 %s432, 1
        %s987 = smul.addr %s986, 128
        %s988 = scalar_lea.vmem [#allocation18], %s987
        %p989 = pneg %p445
        %p990 = pneg %p442
        %p991 = scmp.lt.s32.totalorder %s38, 1
        %s992 = scalar_select %p991, %s38, 1
        %s993 = scalar_lea.vmem %s17, %s992
        %p994 = pneg %p471
        %p995 = pneg %p468
        %p996 = pneg %p492
        %p997 = pneg %p489
        %p998 = pneg %p513
        %p999 = pneg %p510
        %p1000 = pneg %p534
        %p1001 = pneg %p531
        %p1002 = pneg %p555
        %p1003 = pneg %p552
        %p1004 = pneg %p576
        %p1005 = pneg %p573
        %p1006 = scmp.lt.s32.totalorder %s38, 1
        %s1007 = scalar_select %p1006, %s38, 1
        %s1008 = scalar_lea.vmem %s6, %s1007
        %p1009 = scmp.lt.s32.totalorder %s38, 1
        %s1010 = scalar_select %p1009, %s38, 1
        %s1011 = smul.addr %s1010, 3
        %s1012 = scalar_lea.vmem %s9, %s1011
        %p1013 = scmp.lt.s32.totalorder %s38, 1
        %s1014 = scalar_select %p1013, %s38, 1
        %s1015 = scalar_lea.vmem %s11, %s1014
        %p1016 = scmp.lt.s32.totalorder %s38, 1
        %s1017 = scalar_select %p1016, %s38, 1
        %s1018 = scalar_lea.vmem %s12, %s1017
        %p1019 = scmp.lt.s32.totalorder %s38, 1
        %s1020 = scalar_select %p1019, %s38, 1
        %s1021 = scalar_lea.vmem %s13, %s1020
        %p1022 = scmp.lt.s32.totalorder %s38, 1
        %s1023 = scalar_select %p1022, %s38, 1
        %s1024 = smul.addr %s1023, 2
        %s1025 = scalar_lea.vmem %s15, %s1024
        %p1026 = scmp.lt.s32.totalorder %s38, 1
        %s1027 = scalar_select %p1026, %s38, 1
        %s1028 = scalar_lea.vmem %s17, %s1027
        %p1030 = scmp.eq.s32.totalorder %s38, 0
        // Predicated region
        $region157: #{tpu_custom_call.1} parent=107 // pred_check
          %p1031 = pneg %p1030
        $region158: #{tpu_custom_call.1} parent=107 // pred_check_branch
          %1033 = sbr.rel (%p1031) target = $region160
        $region159: #{tpu_custom_call.1} parent=107 // pred_region
          %v1034 = vld [vmem:[#allocation3] sm:$0xff]
          %v1035 = vld [vmem:[#allocation3 + $0x8] sm:$0xff]
          %v1036 = vld [vmem:[#allocation3 + $0x10] sm:$0xff]
          %v1037 = vld [vmem:[#allocation3 + $0x18] sm:$0xff]
          %v1038 = vld [vmem:[#allocation3 + $0x20] sm:$0xff]
          %v1039 = vld [vmem:[#allocation3 + $0x28] sm:$0xff]
          %v1040 = vld [vmem:[#allocation3 + $0x30] sm:$0xff]
          %v1041 = vld [vmem:[#allocation3 + $0x38] sm:$0xff]
          %v1042 = vpack.c.bf16 %v1036, %v1034
          %v1043 = vpack.c.bf16 %v1037, %v1035
          %v1044 = vpack.c.bf16 %v1040, %v1038
          %v1045 = vpack.c.bf16 %v1041, %v1039
          %v1046 = vld [vmem:[#allocation6] sm:$0xf]
          %v1047 = vld [vmem:[#allocation6 + $0x4] sm:$0xf]
          %v1048 = vld [vmem:[#allocation6 + $0x8] sm:$0xf]
          %v1049 = vld [vmem:[#allocation6 + $0xc] sm:$0xf]
          %v1050 = vld [vmem:[#allocation6 + $0x10] sm:$0xf]
          %v1051 = vld [vmem:[#allocation6 + $0x14] sm:$0xf]
          %v1052 = vld [vmem:[#allocation6 + $0x18] sm:$0xf]
          %v1053 = vld [vmem:[#allocation6 + $0x1c] sm:$0xf]
          %v1054 = vld [vmem:[#allocation6 + $0x20] sm:$0xf]
          %v1055 = vld [vmem:[#allocation6 + $0x24] sm:$0xf]
          %v1056 = vld [vmem:[#allocation6 + $0x28] sm:$0xf]
          %v1057 = vld [vmem:[#allocation6 + $0x2c] sm:$0xf]
          %v1058 = vld [vmem:[#allocation6 + $0x30] sm:$0xf]
          %v1059 = vld [vmem:[#allocation6 + $0x34] sm:$0xf]
          %v1060 = vld [vmem:[#allocation6 + $0x38] sm:$0xf]
          %v1061 = vld [vmem:[#allocation6 + $0x3c] sm:$0xf]
          %v1062 = vld [vmem:[#allocation6 + $0x40] sm:$0xf]
          %v1063 = vld [vmem:[#allocation6 + $0x44] sm:$0xf]
          %v1064 = vld [vmem:[#allocation6 + $0x48] sm:$0xf]
          %v1065 = vld [vmem:[#allocation6 + $0x4c] sm:$0xf]
          %v1066 = vld [vmem:[#allocation6 + $0x50] sm:$0xf]
          %v1067 = vld [vmem:[#allocation6 + $0x54] sm:$0xf]
          %v1068 = vld [vmem:[#allocation6 + $0x58] sm:$0xf]
          %v1069 = vld [vmem:[#allocation6 + $0x5c] sm:$0xf]
          %v1070 = vld [vmem:[#allocation8] sm:$0x1]
          %v1072 = vlaneseq
          %v1073 = vshrl.u32 %v1072, 7
          %v1074 = vsub.s32 0, %v1073
          %v1075 = vrot.slane %v1070, %v1074
          %v1101 = vunpack.c.l.b16 %v1046
          %v1102 = vunpack.c.l.b16 %v1047
          %v1103 = vunpack.c.l.b16 %v1048
          %v1104 = vunpack.c.l.b16 %v1049
          %v1105 = vunpack.c.l.b16 %v1050
          %v1106 = vunpack.c.l.b16 %v1051
          %v1107 = vunpack.c.l.b16 %v1052
          %v1108 = vunpack.c.l.b16 %v1053
          %v1109 = vunpack.c.l.b16 %v1054
          %v1110 = vunpack.c.l.b16 %v1055
          %v1111 = vunpack.c.l.b16 %v1056
          %v1112 = vunpack.c.l.b16 %v1057
          %v1113 = vunpack.c.l.b16 %v1058
          %v1114 = vunpack.c.l.b16 %v1059
          %v1115 = vunpack.c.l.b16 %v1060
          %v1116 = vunpack.c.l.b16 %v1061
          %v1117 = vunpack.c.l.b16 %v1062
          %v1118 = vunpack.c.l.b16 %v1063
          %v1119 = vunpack.c.l.b16 %v1064
          %v1120 = vunpack.c.l.b16 %v1065
          %v1121 = vunpack.c.l.b16 %v1066
          %v1122 = vunpack.c.l.b16 %v1067
          %v1123 = vunpack.c.l.b16 %v1068
          %v1124 = vunpack.c.l.b16 %v1069
          %v1125 = vpack.c.b16 %v1102, %v1101
          %v1126 = vpack.c.b16 %v1104, %v1103
          %v1127 = vpack.c.b16 %v1106, %v1105
          %v1128 = vpack.c.b16 %v1108, %v1107
          %v1129 = vpack.c.b16 %v1110, %v1109
          %v1130 = vpack.c.b16 %v1112, %v1111
          %v1131 = vpack.c.b16 %v1114, %v1113
          %v1132 = vpack.c.b16 %v1116, %v1115
          %v1133 = vpack.c.b16 %v1118, %v1117
          %v1134 = vpack.c.b16 %v1120, %v1119
          %v1135 = vpack.c.b16 %v1122, %v1121
          %v1136 = vpack.c.b16 %v1124, %v1123
          %vm1149 = vcmask 523264
          %v1151 = vsel %vm1149, %v1043, 0
          %v1154 = vsel %vm1149, %v1045, 0
          %1156 = vmatprep.subr.bf16.mxu0 0
          %1157 = vmatpush1.bf16.msra.mxu0 %v1132
          %1158 = vmatprep.subr.bf16.mxu0 0
          %1159 = vmatpush1.bf16.msra.mxu0 %v1131
          %1160 = vmatprep.subr.bf16.mxu0 0
          %1161 = vmatpush1.bf16.msra.mxu0 %v1130
          %1162 = vmatprep.subr.bf16.mxu0 0
          %1163 = vmatpush1.bf16.msra.mxu0 %v1129
          %1164 = vmatprep.subr.bf16.mxu0 0
          %1165 = vmatpush1.bf16.msra.mxu0 %v1128
          %1166 = vmatprep.subr.bf16.mxu0 0
          %1167 = vmatpush1.bf16.msra.mxu0 %v1127
          %1168 = vmatprep.subr.bf16.mxu0 0
          %1169 = vmatpush1.bf16.msra.mxu0 %v1126
          %1170 = vmatprep.subr.bf16.mxu0 0
          %1171 = vmatpush1.bf16.msra.mxu0 %v1125
          %1172 = vmatprep.subr.bf16.mxu0 0
          %1173 = vmatpush2.bf16.msra.mxu0 0
          %1174 = vmatprep.subr.bf16.mxu0 0
          %1175 = vmatpush2.bf16.msra.mxu0 0
          %1176 = vmatprep.subr.bf16.mxu0 0
          %1177 = vmatpush2.bf16.msra.mxu0 0
          %1178 = vmatprep.subr.bf16.mxu0 0
          %1179 = vmatpush2.bf16.msra.mxu0 0
          %1180 = vmatprep.subr.bf16.mxu0 0
          %1181 = vmatpush2.bf16.msra.mxu0 %v1136
          %1182 = vmatprep.subr.bf16.mxu0 0
          %1183 = vmatpush2.bf16.msra.mxu0 %v1135
          %1184 = vmatprep.subr.bf16.mxu0 0
          %1185 = vmatpush2.bf16.msra.mxu0 %v1134
          %1186 = vmatprep.subr.bf16.mxu0 0
          %1187 = vmatpush2.bf16.msra.mxu0 %v1133
          %1188 = vmatprep.mubr.bf16.mxu0 %v1151
          %1189 = vmatmul.mubr.bf16.gmra.mxu0 %v1042
          %v1190 = vpop.f32.mrf.mxu0
          %v1191 = vadd.f32 %v1075, %v1190
          %v1192 = vpop.f32.mrf.mxu0
          %v1193 = vpop.f32.mrf.mxu0
          %v1194 = vadd.f32 %v1075, %v1193
          %v1195 = vpop.f32.mrf.mxu0
          %1196 = vmatprep.mubr.bf16.mxu0 %v1154
          %1197 = vmatmul.mubr.bf16.gmra.mxu0 %v1044
          %v1198 = vpop.f32.mrf.mxu0
          %v1199 = vadd.f32 %v1075, %v1198
          %v1200 = vpop.f32.mrf.mxu0
          %v1201 = vpop.f32.mrf.mxu0
          %v1202 = vadd.f32 %v1075, %v1201
          %v1203 = vpop.f32.mrf.mxu0
          %1204 = vdwg.mxu0
          %v1205 = vld [vmem:[#allocation9] sm:$0x1]
          %v1206 = vld [vmem:[#allocation11] sm:$0x1]
          %v1207 = vadd.f32 %v1205, %v1206
          %v1208 = vld [vmem:[#allocation12] sm:$0xff]
          %v1209 = vld [vmem:[#allocation12 + $0x8] sm:$0xff]
          %1210 = vst [vmem:[#allocation2] sm:$0xff] 0.0
          %1211 = vst [vmem:[#allocation2 + $0x8] sm:$0xff] 0.0
          %1212 = vst [vmem:[#allocation2 + $0x10] sm:$0xff] 0.0
          %1213 = vst [vmem:[#allocation2 + $0x18] sm:$0xff] 0.0
          %1214 = vst [vmem:[#allocation2 + $0x20] sm:$0xff] 0.0
          %1215 = vst [vmem:[#allocation2 + $0x28] sm:$0xff] 0.0
          %1216 = vst [vmem:[#allocation2] sm:$0x1] %v1207
          %v1217 = vadd.f32 %v1191, %v1208
          %v1218 = vadd.f32 %v1194, %v1209
          %1219 = vst [vmem:[#allocation2 + $0x1] sm:$0xff] %v1217
          %1220 = vst [vmem:[#allocation2 + $0x9] sm:$0xff] %v1218
          %1221 = vst [vmem:[#allocation2 + $0x18] sm:$0x1] %v1207
          %v1222 = vadd.f32 %v1199, %v1208
          %v1223 = vadd.f32 %v1202, %v1209
          %1224 = vst [vmem:[#allocation2 + $0x19] sm:$0xff] %v1222
          %1225 = vst [vmem:[#allocation2 + $0x21] sm:$0xff] %v1223
        $region160: #{tpu_custom_call.1} parent=107 // pred_fallthru
          _
        %v1226 = vld [vmem:[#allocation2] sm:$0xff]
        %v1227 = vld [vmem:[#allocation2 + $0x8] sm:$0xff]
        %v1228 = vld [vmem:[#allocation2 + $0x10] sm:$0xff]
        %v1229 = vld [vmem:[#allocation2 + $0x18] sm:$0xff]
        %v1230 = vld [vmem:[#allocation2 + $0x20] sm:$0xff]
        %v1231 = vld [vmem:[#allocation2 + $0x28] sm:$0xff]
        %v1232 = vld [vmem:[%s1008] sm:$0x1]
        %v1233 = vld [vmem:[%s868] sm:$0x1]
        %1234 = vadd.xlane.f32.xlu0 %v1226
        %v1235 = vpop.xlane.xlu0 %1234
        %1236 = vadd.xlane.f32.xlu0 %v1227
        %v1237 = vpop.xlane.xlu0 %1236
        %1238 = vadd.xlane.f32.xlu0 %v1228
        %v1239 = vpop.xlane.xlu0 %1238
        %1240 = vadd.xlane.f32.xlu0 %v1229
        %v1241 = vpop.xlane.xlu0 %1240
        %1242 = vadd.xlane.f32.xlu0 %v1230
        %v1243 = vpop.xlane.xlu0 %1242
        %1244 = vadd.xlane.f32.xlu0 %v1231
        %v1245 = vpop.xlane.xlu0 %1244
        %v1246 = vrcp.pop 128.0
        %v1247 = vmul.f32 %v1235, %v1246
        %v1248 = vmul.f32 %v1237, %v1246
        %v1249 = vmul.f32 %v1239, %v1246
        %v1250 = vmul.f32 %v1241, %v1246
        %v1251 = vmul.f32 %v1243, %v1246
        %v1252 = vmul.f32 %v1245, %v1246
        %v1253 = vsub.f32 %v1226, %v1247
        %v1254 = vsub.f32 %v1227, %v1248
        %v1255 = vsub.f32 %v1228, %v1249
        %v1256 = vsub.f32 %v1229, %v1250
        %v1257 = vsub.f32 %v1230, %v1251
        %v1258 = vsub.f32 %v1231, %v1252
        %v1259 = vmul.f32 %v1253, %v1253
        %v1260 = vmul.f32 %v1254, %v1254
        %v1261 = vmul.f32 %v1255, %v1255
        %v1262 = vmul.f32 %v1256, %v1256
        %v1263 = vmul.f32 %v1257, %v1257
        %v1264 = vmul.f32 %v1258, %v1258
        %1265 = vadd.xlane.f32.xlu0 %v1259
        %v1266 = vpop.xlane.xlu0 %1265
        %1267 = vadd.xlane.f32.xlu0 %v1260
        %v1268 = vpop.xlane.xlu0 %1267
        %1269 = vadd.xlane.f32.xlu0 %v1261
        %v1270 = vpop.xlane.xlu0 %1269
        %1271 = vadd.xlane.f32.xlu0 %v1262
        %v1272 = vpop.xlane.xlu0 %1271
        %1273 = vadd.xlane.f32.xlu0 %v1263
        %v1274 = vpop.xlane.xlu0 %1273
        %1275 = vadd.xlane.f32.xlu0 %v1264
        %v1276 = vpop.xlane.xlu0 %1275
        %v1277 = vmul.f32 %v1266, %v1246
        %v1278 = vmul.f32 %v1268, %v1246
        %v1279 = vmul.f32 %v1270, %v1246
        %v1280 = vmul.f32 %v1272, %v1246
        %v1281 = vmul.f32 %v1274, %v1246
        %v1282 = vmul.f32 %v1276, %v1246
        %v1283 = vadd.f32 %v1277, 1e-06
        %v1284 = vadd.f32 %v1278, 1e-06
        %v1285 = vadd.f32 %v1279, 1e-06
        %v1286 = vadd.f32 %v1280, 1e-06
        %v1287 = vadd.f32 %v1281, 1e-06
        %v1288 = vadd.f32 %v1282, 1e-06
        %v1289 = vrsqrt.pop %v1283
        %v1290 = vrsqrt.pop %v1284
        %v1291 = vrsqrt.pop %v1285
        %v1292 = vrsqrt.pop %v1286
        %v1293 = vrsqrt.pop %v1287
        %v1294 = vrsqrt.pop %v1288
        %v1295 = vmul.f32 %v1253, %v1289
        %v1296 = vmul.f32 %v1254, %v1290
        %v1297 = vmul.f32 %v1255, %v1291
        %v1298 = vmul.f32 %v1256, %v1292
        %v1299 = vmul.f32 %v1257, %v1293
        %v1300 = vmul.f32 %v1258, %v1294
        %v1302 = vlaneseq
        %v1303 = vshrl.u32 %v1302, 7
        %v1304 = vsub.s32 0, %v1303
        %v1305 = vrot.slane %v1232, %v1304
        %v1307 = vmul.f32 %v1295, %v1305
        %v1308 = vmul.f32 %v1296, %v1305
        %v1309 = vmul.f32 %v1297, %v1305
        %v1310 = vmul.f32 %v1298, %v1305
        %v1311 = vmul.f32 %v1299, %v1305
        %v1312 = vmul.f32 %v1300, %v1305
        %v1314 = vlaneseq
        %v1315 = vshrl.u32 %v1314, 7
        %v1316 = vsub.s32 0, %v1315
        %v1317 = vrot.slane %v1233, %v1316
        %v1319 = vadd.f32 %v1307, %v1317
        %v1320 = vadd.f32 %v1308, %v1317
        %v1321 = vadd.f32 %v1309, %v1317
        %v1322 = vadd.f32 %v1310, %v1317
        %v1323 = vadd.f32 %v1311, %v1317
        %v1324 = vadd.f32 %v1312, %v1317
        %v1325 = vpack.c.bf16 %v1320, %v1319
        %v1326 = vpack.c.bf16 %v1322, %v1321
        %v1327 = vpack.c.bf16 %v1324, %v1323
        %v1328 = vld [vmem:[%s877] sm:$0xff]
        %v1329 = vld [vmem:[%s877 + $0x8] sm:$0xf]
        %v1330 = vld [vmem:[%s877 + $0xc] sm:$0xff]
        %v1331 = vld [vmem:[%s877 + $0x14] sm:$0xf]
        %v1332 = vld [vmem:[%s877 + $0x18] sm:$0xff]
        %v1333 = vld [vmem:[%s877 + $0x20] sm:$0xf]
        %v1334 = vld [vmem:[%s877 + $0x24] sm:$0xff]
        %v1335 = vld [vmem:[%s877 + $0x2c] sm:$0xf]
        %v1336 = vld [vmem:[%s877 + $0x30] sm:$0xff]
        %v1337 = vld [vmem:[%s877 + $0x38] sm:$0xf]
        %v1338 = vld [vmem:[%s877 + $0x3c] sm:$0xff]
        %v1339 = vld [vmem:[%s877 + $0x44] sm:$0xf]
        %v1340 = vld [vmem:[%s877 + $0x48] sm:$0xff]
        %v1341 = vld [vmem:[%s877 + $0x50] sm:$0xf]
        %v1342 = vld [vmem:[%s877 + $0x54] sm:$0xff]
        %v1343 = vld [vmem:[%s877 + $0x5c] sm:$0xf]
        %v1344 = vld [vmem:[%s877 + $0x60] sm:$0xff]
        %v1345 = vld [vmem:[%s877 + $0x68] sm:$0xf]
        %v1346 = vld [vmem:[%s877 + $0x6c] sm:$0xff]
        %v1347 = vld [vmem:[%s877 + $0x74] sm:$0xf]
        %v1348 = vld [vmem:[%s877 + $0x78] sm:$0xff]
        %v1349 = vld [vmem:[%s877 + $0x80] sm:$0xf]
        %v1350 = vld [vmem:[%s877 + $0x84] sm:$0xff]
        %v1351 = vld [vmem:[%s877 + $0x8c] sm:$0xf]
        %v1352 = vld [vmem:[%s877 + $0x90] sm:$0xff]
        %v1353 = vld [vmem:[%s877 + $0x98] sm:$0xf]
        %v1354 = vld [vmem:[%s877 + $0x9c] sm:$0xff]
        %v1355 = vld [vmem:[%s877 + $0xa4] sm:$0xf]
        %v1356 = vld [vmem:[%s877 + $0xa8] sm:$0xff]
        %v1357 = vld [vmem:[%s877 + $0xb0] sm:$0xf]
        %v1358 = vld [vmem:[%s877 + $0xb4] sm:$0xff]
        %v1359 = vld [vmem:[%s877 + $0xbc] sm:$0xf]
        %v1360 = vld [vmem:[%s1012] sm:$0x7]
        %v1362 = vlaneseq
        %v1363 = vshrl.u32 %v1362, 7
        %v1364 = vsub.s32 0, %v1363
        %v1365 = vrot.slane %v1360, %v1364
        %v1366 = vlaneseq
        %v1367 = vshrl.u32 %v1366, 7
        %v1368 = vsub.s32 1, %v1367
        %v1369 = vrot.slane %v1360, %v1368
        %v1370 = vlaneseq
        %v1371 = vshrl.u32 %v1370, 7
        %v1372 = vsub.s32 2, %v1371
        %v1373 = vrot.slane %v1360, %v1372
        %v1409 = vunpack.c.l.b16 %v1328
        %v1410 = vunpack.c.h.b16 %v1328
        %v1411 = vunpack.c.l.b16 %v1329
        %v1412 = vunpack.c.l.b16 %v1330
        %v1413 = vunpack.c.h.b16 %v1330
        %v1414 = vunpack.c.l.b16 %v1331
        %v1415 = vunpack.c.l.b16 %v1332
        %v1416 = vunpack.c.h.b16 %v1332
        %v1417 = vunpack.c.l.b16 %v1333
        %v1418 = vunpack.c.l.b16 %v1334
        %v1419 = vunpack.c.h.b16 %v1334
        %v1420 = vunpack.c.l.b16 %v1335
        %v1421 = vunpack.c.l.b16 %v1336
        %v1422 = vunpack.c.h.b16 %v1336
        %v1423 = vunpack.c.l.b16 %v1337
        %v1424 = vunpack.c.l.b16 %v1338
        %v1425 = vunpack.c.h.b16 %v1338
        %v1426 = vunpack.c.l.b16 %v1339
        %v1427 = vunpack.c.l.b16 %v1340
        %v1428 = vunpack.c.h.b16 %v1340
        %v1429 = vunpack.c.l.b16 %v1341
        %v1430 = vunpack.c.l.b16 %v1342
        %v1431 = vunpack.c.h.b16 %v1342
        %v1432 = vunpack.c.l.b16 %v1343
        %v1433 = vunpack.c.l.b16 %v1344
        %v1434 = vunpack.c.h.b16 %v1344
        %v1435 = vunpack.c.l.b16 %v1345
        %v1436 = vunpack.c.l.b16 %v1346
        %v1437 = vunpack.c.h.b16 %v1346
        %v1438 = vunpack.c.l.b16 %v1347
        %v1439 = vunpack.c.l.b16 %v1348
        %v1440 = vunpack.c.h.b16 %v1348
        %v1441 = vunpack.c.l.b16 %v1349
        %v1442 = vunpack.c.l.b16 %v1350
        %v1443 = vunpack.c.h.b16 %v1350
        %v1444 = vunpack.c.l.b16 %v1351
        %v1445 = vunpack.c.l.b16 %v1352
        %v1446 = vunpack.c.h.b16 %v1352
        %v1447 = vunpack.c.l.b16 %v1353
        %v1448 = vunpack.c.l.b16 %v1354
        %v1449 = vunpack.c.h.b16 %v1354
        %v1450 = vunpack.c.l.b16 %v1355
        %v1451 = vunpack.c.l.b16 %v1356
        %v1452 = vunpack.c.h.b16 %v1356
        %v1453 = vunpack.c.l.b16 %v1357
        %v1454 = vunpack.c.l.b16 %v1358
        %v1455 = vunpack.c.h.b16 %v1358
        %v1456 = vunpack.c.l.b16 %v1359
        %v1457 = vpack.c.b16 %v1412, %v1409
        %v1458 = vpack.c.b16 %v1413, %v1410
        %v1459 = vpack.c.b16 %v1414, %v1411
        %v1460 = vpack.c.b16 %v1418, %v1415
        %v1461 = vpack.c.b16 %v1419, %v1416
        %v1462 = vpack.c.b16 %v1420, %v1417
        %v1463 = vpack.c.b16 %v1424, %v1421
        %v1464 = vpack.c.b16 %v1425, %v1422
        %v1465 = vpack.c.b16 %v1426, %v1423
        %v1466 = vpack.c.b16 %v1430, %v1427
        %v1467 = vpack.c.b16 %v1431, %v1428
        %v1468 = vpack.c.b16 %v1432, %v1429
        %v1469 = vpack.c.b16 %v1436, %v1433
        %v1470 = vpack.c.b16 %v1437, %v1434
        %v1471 = vpack.c.b16 %v1438, %v1435
        %v1472 = vpack.c.b16 %v1442, %v1439
        %v1473 = vpack.c.b16 %v1443, %v1440
        %v1474 = vpack.c.b16 %v1444, %v1441
        %v1475 = vpack.c.b16 %v1448, %v1445
        %v1476 = vpack.c.b16 %v1449, %v1446
        %v1477 = vpack.c.b16 %v1450, %v1447
        %v1478 = vpack.c.b16 %v1454, %v1451
        %v1479 = vpack.c.b16 %v1455, %v1452
        %v1480 = vpack.c.b16 %v1456, %v1453
        %1505 = vmatprep.subr.bf16.mxu0 %v1479
        %1506 = vmatpush1.bf16.msra.mxu0 %v1478
        %1507 = vmatprep.subr.bf16.mxu0 %v1476
        %1508 = vmatpush1.bf16.msra.mxu0 %v1475
        %1509 = vmatprep.subr.bf16.mxu0 %v1473
        %1510 = vmatpush1.bf16.msra.mxu0 %v1472
        %1511 = vmatprep.subr.bf16.mxu0 %v1470
        %1512 = vmatpush1.bf16.msra.mxu0 %v1469
        %1513 = vmatprep.subr.bf16.mxu0 %v1467
        %1514 = vmatpush1.bf16.msra.mxu0 %v1466
        %1515 = vmatprep.subr.bf16.mxu0 %v1464
        %1516 = vmatpush1.bf16.msra.mxu0 %v1463
        %1517 = vmatprep.subr.bf16.mxu0 %v1461
        %1518 = vmatpush1.bf16.msra.mxu0 %v1460
        %1519 = vmatprep.subr.bf16.mxu0 %v1458
        %1520 = vmatpush1.bf16.msra.mxu0 %v1457
        %1521 = vmatprep.subr.bf16.mxu0 0
        %1522 = vmatpush2.bf16.msra.mxu0 0
        %1523 = vmatprep.subr.bf16.mxu0 0
        %1524 = vmatpush2.bf16.msra.mxu0 0
        %1525 = vmatprep.subr.bf16.mxu0 0
        %1526 = vmatpush2.bf16.msra.mxu0 0
        %1527 = vmatprep.subr.bf16.mxu0 0
        %1528 = vmatpush2.bf16.msra.mxu0 0
        %1529 = vmatprep.subr.bf16.mxu0 0
        %1530 = vmatpush2.bf16.msra.mxu0 0
        %1531 = vmatprep.subr.bf16.mxu0 0
        %1532 = vmatpush2.bf16.msra.mxu0 0
        %1533 = vmatprep.subr.bf16.mxu0 0
        %1534 = vmatpush2.bf16.msra.mxu0 0
        %1535 = vmatprep.subr.bf16.mxu0 0
        %1536 = vmatpush2.bf16.msra.mxu0 0
        %1537 = vmatprep.mubr.bf16.mxu0 0
        %1538 = vmatmul.mubr.bf16.gmra.mxu0 %v1325
        %v1539 = vpop.f32.mrf.mxu0
        %v1540 = vadd.f32 %v1365, %v1539
        %v1541 = vpop.f32.mrf.mxu0
        %v1542 = vadd.f32 %v1369, %v1541
        %v1543 = vpop.f32.mrf.mxu0
        %v1544 = vadd.f32 %v1365, %v1543
        %v1545 = vpop.f32.mrf.mxu0
        %v1546 = vadd.f32 %v1369, %v1545
        %1547 = vmatprep.mubr.bf16.mxu0 0
        %1548 = vmatmul.mubr.bf16.gmra.mxu0 %v1326
        %v1549 = vpop.f32.mrf.mxu0
        %v1550 = vadd.f32 %v1365, %v1549
        %v1551 = vpop.f32.mrf.mxu0
        %v1552 = vadd.f32 %v1369, %v1551
        %v1553 = vpop.f32.mrf.mxu0
        %v1554 = vadd.f32 %v1365, %v1553
        %v1555 = vpop.f32.mrf.mxu0
        %v1556 = vadd.f32 %v1369, %v1555
        %1557 = vmatprep.mubr.bf16.mxu0 0
        %1558 = vmatmul.mubr.bf16.gmra.mxu0 %v1327
        %v1559 = vpop.f32.mrf.mxu0
        %v1560 = vadd.f32 %v1365, %v1559
        %v1561 = vpop.f32.mrf.mxu0
        %v1562 = vadd.f32 %v1369, %v1561
        %v1563 = vpop.f32.mrf.mxu0
        %v1564 = vadd.f32 %v1365, %v1563
        %v1565 = vpop.f32.mrf.mxu0
        %v1566 = vadd.f32 %v1369, %v1565
        %1567 = vdwg.mxu0
        %1568 = vmatprep.subr.bf16.mxu0 0
        %1569 = vmatpush1.bf16.msra.mxu0 %v1480
        %1570 = vmatprep.subr.bf16.mxu0 0
        %1571 = vmatpush1.bf16.msra.mxu0 %v1477
        %1572 = vmatprep.subr.bf16.mxu0 0
        %1573 = vmatpush1.bf16.msra.mxu0 %v1474
        %1574 = vmatprep.subr.bf16.mxu0 0
        %1575 = vmatpush1.bf16.msra.mxu0 %v1471
        %1576 = vmatprep.subr.bf16.mxu0 0
        %1577 = vmatpush1.bf16.msra.mxu0 %v1468
        %1578 = vmatprep.subr.bf16.mxu0 0
        %1579 = vmatpush1.bf16.msra.mxu0 %v1465
        %1580 = vmatprep.subr.bf16.mxu0 0
        %1581 = vmatpush1.bf16.msra.mxu0 %v1462
        %1582 = vmatprep.subr.bf16.mxu0 0
        %1583 = vmatpush1.bf16.msra.mxu0 %v1459
        %1584 = vmatprep.subr.bf16.mxu0 0
        %1585 = vmatpush2.bf16.msra.mxu0 0
        %1586 = vmatprep.subr.bf16.mxu0 0
        %1587 = vmatpush2.bf16.msra.mxu0 0
        %1588 = vmatprep.subr.bf16.mxu0 0
        %1589 = vmatpush2.bf16.msra.mxu0 0
        %1590 = vmatprep.subr.bf16.mxu0 0
        %1591 = vmatpush2.bf16.msra.mxu0 0
        %1592 = vmatprep.subr.bf16.mxu0 0
        %1593 = vmatpush2.bf16.msra.mxu0 0
        %1594 = vmatprep.subr.bf16.mxu0 0
        %1595 = vmatpush2.bf16.msra.mxu0 0
        %1596 = vmatprep.subr.bf16.mxu0 0
        %1597 = vmatpush2.bf16.msra.mxu0 0
        %1598 = vmatprep.subr.bf16.mxu0 0
        %1599 = vmatpush2.bf16.msra.mxu0 0
        %1600 = vmatprep.mubr.bf16.mxu0 0
        %1601 = vmatmul.mubr.bf16.gmra.mxu0 %v1325
        %v1602 = vpop.f32.mrf.mxu0
        %v1603 = vadd.f32 %v1373, %v1602
        %v1604 = vpop.f32.mrf.mxu0
        %v1605 = vpop.f32.mrf.mxu0
        %v1606 = vadd.f32 %v1373, %v1605
        %v1607 = vpop.f32.mrf.mxu0
        %1608 = vmatprep.mubr.bf16.mxu0 0
        %1609 = vmatmul.mubr.bf16.gmra.mxu0 %v1326
        %v1610 = vpop.f32.mrf.mxu0
        %v1611 = vadd.f32 %v1373, %v1610
        %v1612 = vpop.f32.mrf.mxu0
        %v1613 = vpop.f32.mrf.mxu0
        %v1614 = vadd.f32 %v1373, %v1613
        %v1615 = vpop.f32.mrf.mxu0
        %1616 = vmatprep.mubr.bf16.mxu0 0
        %1617 = vmatmul.mubr.bf16.gmra.mxu0 %v1327
        %v1618 = vpop.f32.mrf.mxu0
        %v1619 = vadd.f32 %v1373, %v1618
        %v1620 = vpop.f32.mrf.mxu0
        %v1621 = vpop.f32.mrf.mxu0
        %v1622 = vadd.f32 %v1373, %v1621
        %v1623 = vpop.f32.mrf.mxu0
        %1624 = vdwg.mxu0
        %v1625 = vlaneseq
        %v1626 = vand.u32 %v1625, 127
        %vm1627 = vcmp.lt.s32.totalorder %v1626, 17
        %v1628 = vsel %vm1627, 0.0, -1e+09
        %v1629 = vpack.c.bf16 %v1544, %v1540
        %v1630 = vpack.c.bf16 %v1550, %v1550
        %1631 = vxpose.xlu0.b32.start [1/16] %v1542, 128
        %1632 = vxpose.xlu0.b32.cont [2/16] %v1546, 128
        %1633 = vxpose.xlu0.b32.cont [3/16] %v1552, 128
        %1634 = vxpose.xlu0.b32.cont [4/16] 0.0, 128
        %1635 = vxpose.xlu0.b32.cont [5/16] 0.0, 128
        %1636 = vxpose.xlu0.b32.cont [6/16] 0.0, 128
        %1637 = vxpose.xlu0.b32.cont [7/16] 0.0, 128
        %1638 = vxpose.xlu0.b32.cont [8/16] 0.0, 128
        %1639 = vxpose.xlu0.b32.cont [9/16] 0.0, 128
        %1640 = vxpose.xlu0.b32.cont [10/16] 0.0, 128
        %1641 = vxpose.xlu0.b32.cont [11/16] 0.0, 128
        %1642 = vxpose.xlu0.b32.cont [12/16] 0.0, 128
        %1643 = vxpose.xlu0.b32.cont [13/16] 0.0, 128
        %1644 = vxpose.xlu0.b32.cont [14/16] 0.0, 128
        %1645 = vxpose.xlu0.b32.cont [15/16] 0.0, 128
        %1646 = vxpose.xlu0.b32.end [16/16] 0.0, 128
        %v1647 = vpop.trf.xlu0
        %v1648 = vpop.trf.xlu0
        %v1649 = vpop.trf.xlu0
        %v1650 = vpop.trf.xlu0
        %v1651 = vpop.trf.xlu0
        %v1652 = vpop.trf.xlu0
        %v1653 = vpop.trf.xlu0
        %v1654 = vpop.trf.xlu0
        %v1655 = vpop.trf.xlu0
        %v1656 = vpop.trf.xlu0
        %v1657 = vpop.trf.xlu0
        %v1658 = vpop.trf.xlu0
        %v1659 = vpop.trf.xlu0
        %v1660 = vpop.trf.xlu0
        %v1661 = vpop.trf.xlu0
        %v1662 = vpop.trf.xlu0
        %v1663 = vpack.c.bf16 %v1648, %v1647
        %v1664 = vpack.c.bf16 %v1650, %v1649
        %v1665 = vpack.c.bf16 %v1652, %v1651
        %v1666 = vpack.c.bf16 %v1654, %v1653
        %v1667 = vpack.c.bf16 %v1656, %v1655
        %v1668 = vpack.c.bf16 %v1658, %v1657
        %v1669 = vpack.c.bf16 %v1660, %v1659
        %v1670 = vpack.c.bf16 %v1662, %v1661
        %v1671 = vpack.c.bf16 %v1606, %v1603
        %v1672 = vpack.c.bf16 %v1611, %v1611
        %vm1673 = vcmask 261120
        %v1675 = vsel %vm1673, %v1629, 0
        %v1678 = vsel %vm1673, %v1630, 0
        %1680 = vmatprep.subr.bf16.mxu0 0
        %1681 = vmatpush1.bf16.msra.mxu0 0
        %1682 = vmatprep.subr.bf16.mxu0 0
        %1683 = vmatpush1.bf16.msra.mxu0 0
        %1684 = vmatprep.subr.bf16.mxu0 0
        %1685 = vmatpush1.bf16.msra.mxu0 0
        %1686 = vmatprep.subr.bf16.mxu0 0
        %1687 = vmatpush1.bf16.msra.mxu0 0
        %1688 = vmatprep.subr.bf16.mxu0 0
        %1689 = vmatpush1.bf16.msra.mxu0 0
        %1690 = vmatprep.subr.bf16.mxu0 0
        %1691 = vmatpush1.bf16.msra.mxu0 0
        %1692 = vmatprep.subr.bf16.mxu0 0
        %1693 = vmatpush1.bf16.msra.mxu0 %v1664
        %1694 = vmatprep.subr.bf16.mxu0 0
        %1695 = vmatpush1.bf16.msra.mxu0 %v1663
        %1696 = vmatprep.subr.bf16.mxu0 0
        %1697 = vmatpush2.bf16.msra.mxu0 0
        %1698 = vmatprep.subr.bf16.mxu0 0
        %1699 = vmatpush2.bf16.msra.mxu0 0
        %1700 = vmatprep.subr.bf16.mxu0 0
        %1701 = vmatpush2.bf16.msra.mxu0 0
        %1702 = vmatprep.subr.bf16.mxu0 0
        %1703 = vmatpush2.bf16.msra.mxu0 0
        %1704 = vmatprep.subr.bf16.mxu0 0
        %1705 = vmatpush2.bf16.msra.mxu0 0
        %1706 = vmatprep.subr.bf16.mxu0 0
        %1707 = vmatpush2.bf16.msra.mxu0 0
        %1708 = vmatprep.subr.bf16.mxu0 0
        %1709 = vmatpush2.bf16.msra.mxu0 0
        %1710 = vmatprep.subr.bf16.mxu0 0
        %1711 = vmatpush2.bf16.msra.mxu0 0
        %1712 = vmatprep.mubr.bf16.mxu0 0
        %1713 = vmatmul.mubr.bf16.gmra.mxu0 %v1675
        %v1714 = vpop.f32.mrf.mxu0
        %v1715 = vadd.f32 0.0, %v1714
        %v1716 = vpop.f32.mrf.mxu0
        %v1717 = vpop.f32.mrf.mxu0
        %v1718 = vadd.f32 0.0, %v1717
        %v1719 = vpop.f32.mrf.mxu0
        %1720 = vmatprep.mubr.bf16.mxu0 0
        %1721 = vmatmul.mubr.bf16.gmra.mxu0 %v1678
        %v1722 = vpop.f32.mrf.mxu0
        %v1723 = vadd.f32 0.0, %v1722
        %v1724 = vpop.f32.mrf.mxu0
        %v1725 = vpop.f32.mrf.mxu0
        %v1726 = vpop.f32.mrf.mxu0
        %1727 = vdwg.mxu0
        %v1728 = vmul.f32 %v1715, 0.17677669
        %v1729 = vmul.f32 %v1718, 0.17677669
        %v1730 = vmul.f32 %v1723, 0.17677669
        %v1731 = vadd.f32 %v1728, %v1628
        %v1732 = vadd.f32 %v1729, %v1628
        %v1733 = vadd.f32 %v1730, %v1628
        %vm1734 = vcmask 195584
        %v1735 = vsel %vm1734, %v1731, -inf
        %1736 = vmax.xlane.f32.xlu0 %v1735
        %v1737 = vpop.xlane.xlu0 %1736
        %v1738 = vsel %vm1734, %v1732, -inf
        %1739 = vmax.xlane.f32.xlu0 %v1738
        %v1740 = vpop.xlane.xlu0 %1739
        %v1741 = vsel %vm1734, %v1733, -inf
        %1742 = vmax.xlane.f32.xlu0 %v1741
        %v1743 = vpop.xlane.xlu0 %1742
        %v1744 = vsub.f32 %v1731, %v1737
        %v1745 = vsub.f32 %v1732, %v1740
        %v1746 = vsub.f32 %v1733, %v1743
        %v1747 = vmul.f32 %v1744, 1.442695
        %v1748 = vpow.pop %v1747
        %v1749 = vmul.f32 %v1745, 1.442695
        %v1750 = vpow.pop %v1749
        %v1751 = vmul.f32 %v1746, 1.442695
        %v1752 = vpow.pop %v1751
        %v1753 = vsel %vm1734, %v1748, 0.0
        %1754 = vadd.xlane.f32.xlu0 %v1753
        %v1755 = vpop.xlane.xlu0 %1754
        %v1756 = vsel %vm1734, %v1750, 0.0
        %1757 = vadd.xlane.f32.xlu0 %v1756
        %v1758 = vpop.xlane.xlu0 %1757
        %v1759 = vsel %vm1734, %v1752, 0.0
        %1760 = vadd.xlane.f32.xlu0 %v1759
        %v1761 = vpop.xlane.xlu0 %1760
        %v1762 = vrcp.pop %v1755
        %v1763 = vmul.f32 %v1748, %v1762
        %v1764 = vrcp.pop %v1758
        %v1765 = vmul.f32 %v1750, %v1764
        %v1766 = vrcp.pop %v1761
        %v1767 = vmul.f32 %v1752, %v1766
        %v1768 = vpack.c.bf16 %v1765, %v1763
        %v1769 = vpack.c.bf16 %v1767, %v1767
        %v1771 = vsel %vm1734, %v1768, 0
        %v1774 = vsel %vm1734, %v1769, 0
        %vm1776 = vcmask 1043456
        %v1778 = vsel %vm1776, %v1672, 0
        %1780 = vmatprep.subr.bf16.mxu0 0
        %1781 = vmatpush1.bf16.msra.mxu0 0
        %1782 = vmatprep.subr.bf16.mxu0 0
        %1783 = vmatpush1.bf16.msra.mxu0 0
        %1784 = vmatprep.subr.bf16.mxu0 0
        %1785 = vmatpush1.bf16.msra.mxu0 0
        %1786 = vmatprep.subr.bf16.mxu0 0
        %1787 = vmatpush1.bf16.msra.mxu0 0
        %1788 = vmatprep.subr.bf16.mxu0 0
        %1789 = vmatpush1.bf16.msra.mxu0 0
        %1790 = vmatprep.subr.bf16.mxu0 0
        %1791 = vmatpush1.bf16.msra.mxu0 0
        %1792 = vmatprep.subr.bf16.mxu0 0
        %1793 = vmatpush1.bf16.msra.mxu0 %v1778
        %1794 = vmatprep.subr.bf16.mxu0 0
        %1795 = vmatpush1.bf16.msra.mxu0 %v1671
        %1796 = vmatprep.subr.bf16.mxu0 0
        %1797 = vmatpush2.bf16.msra.mxu0 0
        %1798 = vmatprep.subr.bf16.mxu0 0
        %1799 = vmatpush2.bf16.msra.mxu0 0
        %1800 = vmatprep.subr.bf16.mxu0 0
        %1801 = vmatpush2.bf16.msra.mxu0 0
        %1802 = vmatprep.subr.bf16.mxu0 0
        %1803 = vmatpush2.bf16.msra.mxu0 0
        %1804 = vmatprep.subr.bf16.mxu0 0
        %1805 = vmatpush2.bf16.msra.mxu0 0
        %1806 = vmatprep.subr.bf16.mxu0 0
        %1807 = vmatpush2.bf16.msra.mxu0 0
        %1808 = vmatprep.subr.bf16.mxu0 0
        %1809 = vmatpush2.bf16.msra.mxu0 0
        %1810 = vmatprep.subr.bf16.mxu0 0
        %1811 = vmatpush2.bf16.msra.mxu0 0
        %1812 = vmatprep.mubr.bf16.mxu0 0
        %1813 = vmatmul.mubr.bf16.gmra.mxu0 %v1771
        %v1814 = vpop.f32.mrf.mxu0
        %v1815 = vadd.f32 0.0, %v1814
        %v1816 = vpop.f32.mrf.mxu0
        %v1817 = vpop.f32.mrf.mxu0
        %v1818 = vadd.f32 0.0, %v1817
        %v1819 = vpop.f32.mrf.mxu0
        %1820 = vmatprep.mubr.bf16.mxu0 0
        %1821 = vmatmul.mubr.bf16.gmra.mxu0 %v1774
        %v1822 = vpop.f32.mrf.mxu0
        %v1823 = vadd.f32 0.0, %v1822
        %v1824 = vpop.f32.mrf.mxu0
        %v1825 = vpop.f32.mrf.mxu0
        %v1826 = vpop.f32.mrf.mxu0
        %1827 = vdwg.mxu0
        %1830 = vrot.lane.b32.xlu0 %v1629, 96
        %v1831 = vpop.permute.xlu0 %1830
        %1832 = vrot.lane.b32.xlu0 %v1630, 96
        %v1833 = vpop.permute.xlu0 %1832
        %v1835 = vsel %vm1673, %v1831, 0
        %v1838 = vsel %vm1673, %v1833, 0
        %1840 = vmatprep.subr.bf16.mxu0 0
        %1841 = vmatpush1.bf16.msra.mxu0 0
        %1842 = vmatprep.subr.bf16.mxu0 0
        %1843 = vmatpush1.bf16.msra.mxu0 0
        %1844 = vmatprep.subr.bf16.mxu0 0
        %1845 = vmatpush1.bf16.msra.mxu0 0
        %1846 = vmatprep.subr.bf16.mxu0 0
        %1847 = vmatpush1.bf16.msra.mxu0 0
        %1848 = vmatprep.subr.bf16.mxu0 0
        %1849 = vmatpush1.bf16.msra.mxu0 0
        %1850 = vmatprep.subr.bf16.mxu0 0
        %1851 = vmatpush1.bf16.msra.mxu0 0
        %1852 = vmatprep.subr.bf16.mxu0 0
        %1853 = vmatpush1.bf16.msra.mxu0 %v1666
        %1854 = vmatprep.subr.bf16.mxu0 0
        %1855 = vmatpush1.bf16.msra.mxu0 %v1665
        %1856 = vmatprep.subr.bf16.mxu0 0
        %1857 = vmatpush2.bf16.msra.mxu0 0
        %1858 = vmatprep.subr.bf16.mxu0 0
        %1859 = vmatpush2.bf16.msra.mxu0 0
        %1860 = vmatprep.subr.bf16.mxu0 0
        %1861 = vmatpush2.bf16.msra.mxu0 0
        %1862 = vmatprep.subr.bf16.mxu0 0
        %1863 = vmatpush2.bf16.msra.mxu0 0
        %1864 = vmatprep.subr.bf16.mxu0 0
        %1865 = vmatpush2.bf16.msra.mxu0 0
        %1866 = vmatprep.subr.bf16.mxu0 0
        %1867 = vmatpush2.bf16.msra.mxu0 0
        %1868 = vmatprep.subr.bf16.mxu0 0
        %1869 = vmatpush2.bf16.msra.mxu0 0
        %1870 = vmatprep.subr.bf16.mxu0 0
        %1871 = vmatpush2.bf16.msra.mxu0 0
        %1872 = vmatprep.mubr.bf16.mxu0 0
        %1873 = vmatmul.mubr.bf16.gmra.mxu0 %v1835
        %v1874 = vpop.f32.mrf.mxu0
        %v1875 = vadd.f32 0.0, %v1874
        %v1876 = vpop.f32.mrf.mxu0
        %v1877 = vpop.f32.mrf.mxu0
        %v1878 = vadd.f32 0.0, %v1877
        %v1879 = vpop.f32.mrf.mxu0
        %1880 = vmatprep.mubr.bf16.mxu0 0
        %1881 = vmatmul.mubr.bf16.gmra.mxu0 %v1838
        %v1882 = vpop.f32.mrf.mxu0
        %v1883 = vadd.f32 0.0, %v1882
        %v1884 = vpop.f32.mrf.mxu0
        %v1885 = vpop.f32.mrf.mxu0
        %v1886 = vpop.f32.mrf.mxu0
        %1887 = vdwg.mxu0
        %v1888 = vmul.f32 %v1875, 0.17677669
        %v1889 = vmul.f32 %v1878, 0.17677669
        %v1890 = vmul.f32 %v1883, 0.17677669
        %v1891 = vadd.f32 %v1888, %v1628
        %v1892 = vadd.f32 %v1889, %v1628
        %v1893 = vadd.f32 %v1890, %v1628
        %v1894 = vsel %vm1734, %v1891, -inf
        %1895 = vmax.xlane.f32.xlu0 %v1894
        %v1896 = vpop.xlane.xlu0 %1895
        %v1897 = vsel %vm1734, %v1892, -inf
        %1898 = vmax.xlane.f32.xlu0 %v1897
        %v1899 = vpop.xlane.xlu0 %1898
        %v1900 = vsel %vm1734, %v1893, -inf
        %1901 = vmax.xlane.f32.xlu0 %v1900
        %v1902 = vpop.xlane.xlu0 %1901
        %v1903 = vsub.f32 %v1891, %v1896
        %v1904 = vsub.f32 %v1892, %v1899
        %v1905 = vsub.f32 %v1893, %v1902
        %v1906 = vmul.f32 %v1903, 1.442695
        %v1907 = vpow.pop %v1906
        %v1908 = vmul.f32 %v1904, 1.442695
        %v1909 = vpow.pop %v1908
        %v1910 = vmul.f32 %v1905, 1.442695
        %v1911 = vpow.pop %v1910
        %v1912 = vsel %vm1734, %v1907, 0.0
        %1913 = vadd.xlane.f32.xlu0 %v1912
        %v1914 = vpop.xlane.xlu0 %1913
        %v1915 = vsel %vm1734, %v1909, 0.0
        %1916 = vadd.xlane.f32.xlu0 %v1915
        %v1917 = vpop.xlane.xlu0 %1916
        %v1918 = vsel %vm1734, %v1911, 0.0
        %1919 = vadd.xlane.f32.xlu0 %v1918
        %v1920 = vpop.xlane.xlu0 %1919
        %v1921 = vrcp.pop %v1914
        %v1922 = vmul.f32 %v1907, %v1921
        %v1923 = vrcp.pop %v1917
        %v1924 = vmul.f32 %v1909, %v1923
        %v1925 = vrcp.pop %v1920
        %v1926 = vmul.f32 %v1911, %v1925
        %v1927 = vpack.c.bf16 %v1924, %v1922
        %v1928 = vpack.c.bf16 %v1926, %v1926
        %1931 = vrot.lane.b32.xlu0 %v1671, 96
        %v1932 = vpop.permute.xlu0 %1931
        %1933 = vrot.lane.b32.xlu0 %v1672, 96
        %v1934 = vpop.permute.xlu0 %1933
        %v1937 = vsel %vm1734, %v1927, 0
        %v1940 = vsel %vm1734, %v1928, 0
        %v1943 = vsel %vm1776, %v1934, 0
        %1945 = vmatprep.subr.bf16.mxu0 0
        %1946 = vmatpush1.bf16.msra.mxu0 0
        %1947 = vmatprep.subr.bf16.mxu0 0
        %1948 = vmatpush1.bf16.msra.mxu0 0
        %1949 = vmatprep.subr.bf16.mxu0 0
        %1950 = vmatpush1.bf16.msra.mxu0 0
        %1951 = vmatprep.subr.bf16.mxu0 0
        %1952 = vmatpush1.bf16.msra.mxu0 0
        %1953 = vmatprep.subr.bf16.mxu0 0
        %1954 = vmatpush1.bf16.msra.mxu0 0
        %1955 = vmatprep.subr.bf16.mxu0 0
        %1956 = vmatpush1.bf16.msra.mxu0 0
        %1957 = vmatprep.subr.bf16.mxu0 0
        %1958 = vmatpush1.bf16.msra.mxu0 %v1943
        %1959 = vmatprep.subr.bf16.mxu0 0
        %1960 = vmatpush1.bf16.msra.mxu0 %v1932
        %1961 = vmatprep.subr.bf16.mxu0 0
        %1962 = vmatpush2.bf16.msra.mxu0 0
        %1963 = vmatprep.subr.bf16.mxu0 0
        %1964 = vmatpush2.bf16.msra.mxu0 0
        %1965 = vmatprep.subr.bf16.mxu0 0
        %1966 = vmatpush2.bf16.msra.mxu0 0
        %1967 = vmatprep.subr.bf16.mxu0 0
        %1968 = vmatpush2.bf16.msra.mxu0 0
        %1969 = vmatprep.subr.bf16.mxu0 0
        %1970 = vmatpush2.bf16.msra.mxu0 0
        %1971 = vmatprep.subr.bf16.mxu0 0
        %1972 = vmatpush2.bf16.msra.mxu0 0
        %1973 = vmatprep.subr.bf16.mxu0 0
        %1974 = vmatpush2.bf16.msra.mxu0 0
        %1975 = vmatprep.subr.bf16.mxu0 0
        %1976 = vmatpush2.bf16.msra.mxu0 0
        %1977 = vmatprep.mubr.bf16.mxu0 0
        %1978 = vmatmul.mubr.bf16.gmra.mxu0 %v1937
        %v1979 = vpop.f32.mrf.mxu0
        %v1980 = vadd.f32 0.0, %v1979
        %v1981 = vpop.f32.mrf.mxu0
        %v1982 = vpop.f32.mrf.mxu0
        %v1983 = vadd.f32 0.0, %v1982
        %v1984 = vpop.f32.mrf.mxu0
        %1985 = vmatprep.mubr.bf16.mxu0 0
        %1986 = vmatmul.mubr.bf16.gmra.mxu0 %v1940
        %v1987 = vpop.f32.mrf.mxu0
        %v1988 = vadd.f32 0.0, %v1987
        %v1989 = vpop.f32.mrf.mxu0
        %v1990 = vpop.f32.mrf.mxu0
        %v1991 = vpop.f32.mrf.mxu0
        %1992 = vdwg.mxu0
        %1993 = vrot.lane.b32.xlu0 %v1629, 64
        %v1994 = vpop.permute.xlu0 %1993
        %1995 = vrot.lane.b32.xlu0 %v1630, 64
        %v1996 = vpop.permute.xlu0 %1995
        %v1998 = vsel %vm1673, %v1994, 0
        %v2001 = vsel %vm1673, %v1996, 0
        %2003 = vmatprep.subr.bf16.mxu0 0
        %2004 = vmatpush1.bf16.msra.mxu0 0
        %2005 = vmatprep.subr.bf16.mxu0 0
        %2006 = vmatpush1.bf16.msra.mxu0 0
        %2007 = vmatprep.subr.bf16.mxu0 0
        %2008 = vmatpush1.bf16.msra.mxu0 0
        %2009 = vmatprep.subr.bf16.mxu0 0
        %2010 = vmatpush1.bf16.msra.mxu0 0
        %2011 = vmatprep.subr.bf16.mxu0 0
        %2012 = vmatpush1.bf16.msra.mxu0 0
        %2013 = vmatprep.subr.bf16.mxu0 0
        %2014 = vmatpush1.bf16.msra.mxu0 0
        %2015 = vmatprep.subr.bf16.mxu0 0
        %2016 = vmatpush1.bf16.msra.mxu0 %v1668
        %2017 = vmatprep.subr.bf16.mxu0 0
        %2018 = vmatpush1.bf16.msra.mxu0 %v1667
        %2019 = vmatprep.subr.bf16.mxu0 0
        %2020 = vmatpush2.bf16.msra.mxu0 0
        %2021 = vmatprep.subr.bf16.mxu0 0
        %2022 = vmatpush2.bf16.msra.mxu0 0
        %2023 = vmatprep.subr.bf16.mxu0 0
        %2024 = vmatpush2.bf16.msra.mxu0 0
        %2025 = vmatprep.subr.bf16.mxu0 0
        %2026 = vmatpush2.bf16.msra.mxu0 0
        %2027 = vmatprep.subr.bf16.mxu0 0
        %2028 = vmatpush2.bf16.msra.mxu0 0
        %2029 = vmatprep.subr.bf16.mxu0 0
        %2030 = vmatpush2.bf16.msra.mxu0 0
        %2031 = vmatprep.subr.bf16.mxu0 0
        %2032 = vmatpush2.bf16.msra.mxu0 0
        %2033 = vmatprep.subr.bf16.mxu0 0
        %2034 = vmatpush2.bf16.msra.mxu0 0
        %2035 = vmatprep.mubr.bf16.mxu0 0
        %2036 = vmatmul.mubr.bf16.gmra.mxu0 %v1998
        %v2037 = vpop.f32.mrf.mxu0
        %v2038 = vadd.f32 0.0, %v2037
        %v2039 = vpop.f32.mrf.mxu0
        %v2040 = vpop.f32.mrf.mxu0
        %v2041 = vadd.f32 0.0, %v2040
        %v2042 = vpop.f32.mrf.mxu0
        %2043 = vmatprep.mubr.bf16.mxu0 0
        %2044 = vmatmul.mubr.bf16.gmra.mxu0 %v2001
        %v2045 = vpop.f32.mrf.mxu0
        %v2046 = vadd.f32 0.0, %v2045
        %v2047 = vpop.f32.mrf.mxu0
        %v2048 = vpop.f32.mrf.mxu0
        %v2049 = vpop.f32.mrf.mxu0
        %2050 = vdwg.mxu0
        %v2051 = vmul.f32 %v2038, 0.17677669
        %v2052 = vmul.f32 %v2041, 0.17677669
        %v2053 = vmul.f32 %v2046, 0.17677669
        %v2054 = vadd.f32 %v2051, %v1628
        %v2055 = vadd.f32 %v2052, %v1628
        %v2056 = vadd.f32 %v2053, %v1628
        %v2057 = vsel %vm1734, %v2054, -inf
        %2058 = vmax.xlane.f32.xlu0 %v2057
        %v2059 = vpop.xlane.xlu0 %2058
        %v2060 = vsel %vm1734, %v2055, -inf
        %2061 = vmax.xlane.f32.xlu0 %v2060
        %v2062 = vpop.xlane.xlu0 %2061
        %v2063 = vsel %vm1734, %v2056, -inf
        %2064 = vmax.xlane.f32.xlu0 %v2063
        %v2065 = vpop.xlane.xlu0 %2064
        %v2066 = vsub.f32 %v2054, %v2059
        %v2067 = vsub.f32 %v2055, %v2062
        %v2068 = vsub.f32 %v2056, %v2065
        %v2069 = vmul.f32 %v2066, 1.442695
        %v2070 = vpow.pop %v2069
        %v2071 = vmul.f32 %v2067, 1.442695
        %v2072 = vpow.pop %v2071
        %v2073 = vmul.f32 %v2068, 1.442695
        %v2074 = vpow.pop %v2073
        %v2075 = vsel %vm1734, %v2070, 0.0
        %2076 = vadd.xlane.f32.xlu0 %v2075
        %v2077 = vpop.xlane.xlu0 %2076
        %v2078 = vsel %vm1734, %v2072, 0.0
        %2079 = vadd.xlane.f32.xlu0 %v2078
        %v2080 = vpop.xlane.xlu0 %2079
        %v2081 = vsel %vm1734, %v2074, 0.0
        %2082 = vadd.xlane.f32.xlu0 %v2081
        %v2083 = vpop.xlane.xlu0 %2082
        %v2084 = vrcp.pop %v2077
        %v2085 = vmul.f32 %v2070, %v2084
        %v2086 = vrcp.pop %v2080
        %v2087 = vmul.f32 %v2072, %v2086
        %v2088 = vrcp.pop %v2083
        %v2089 = vmul.f32 %v2074, %v2088
        %v2090 = vpack.c.bf16 %v2087, %v2085
        %v2091 = vpack.c.bf16 %v2089, %v2089
        %2092 = vrot.lane.b32.xlu0 %v1671, 64
        %v2093 = vpop.permute.xlu0 %2092
        %2094 = vrot.lane.b32.xlu0 %v1672, 64
        %v2095 = vpop.permute.xlu0 %2094
        %v2098 = vsel %vm1734, %v2090, 0
        %v2101 = vsel %vm1734, %v2091, 0
        %v2104 = vsel %vm1776, %v2095, 0
        %2106 = vmatprep.subr.bf16.mxu0 0
        %2107 = vmatpush1.bf16.msra.mxu0 0
        %2108 = vmatprep.subr.bf16.mxu0 0
        %2109 = vmatpush1.bf16.msra.mxu0 0
        %2110 = vmatprep.subr.bf16.mxu0 0
        %2111 = vmatpush1.bf16.msra.mxu0 0
        %2112 = vmatprep.subr.bf16.mxu0 0
        %2113 = vmatpush1.bf16.msra.mxu0 0
        %2114 = vmatprep.subr.bf16.mxu0 0
        %2115 = vmatpush1.bf16.msra.mxu0 0
        %2116 = vmatprep.subr.bf16.mxu0 0
        %2117 = vmatpush1.bf16.msra.mxu0 0
        %2118 = vmatprep.subr.bf16.mxu0 0
        %2119 = vmatpush1.bf16.msra.mxu0 %v2104
        %2120 = vmatprep.subr.bf16.mxu0 0
        %2121 = vmatpush1.bf16.msra.mxu0 %v2093
        %2122 = vmatprep.subr.bf16.mxu0 0
        %2123 = vmatpush2.bf16.msra.mxu0 0
        %2124 = vmatprep.subr.bf16.mxu0 0
        %2125 = vmatpush2.bf16.msra.mxu0 0
        %2126 = vmatprep.subr.bf16.mxu0 0
        %2127 = vmatpush2.bf16.msra.mxu0 0
        %2128 = vmatprep.subr.bf16.mxu0 0
        %2129 = vmatpush2.bf16.msra.mxu0 0
        %2130 = vmatprep.subr.bf16.mxu0 0
        %2131 = vmatpush2.bf16.msra.mxu0 0
        %2132 = vmatprep.subr.bf16.mxu0 0
        %2133 = vmatpush2.bf16.msra.mxu0 0
        %2134 = vmatprep.subr.bf16.mxu0 0
        %2135 = vmatpush2.bf16.msra.mxu0 0
        %2136 = vmatprep.subr.bf16.mxu0 0
        %2137 = vmatpush2.bf16.msra.mxu0 0
        %2138 = vmatprep.mubr.bf16.mxu0 0
        %2139 = vmatmul.mubr.bf16.gmra.mxu0 %v2098
        %v2140 = vpop.f32.mrf.mxu0
        %v2141 = vadd.f32 0.0, %v2140
        %v2142 = vpop.f32.mrf.mxu0
        %v2143 = vpop.f32.mrf.mxu0
        %v2144 = vadd.f32 0.0, %v2143
        %v2145 = vpop.f32.mrf.mxu0
        %2146 = vmatprep.mubr.bf16.mxu0 0
        %2147 = vmatmul.mubr.bf16.gmra.mxu0 %v2101
        %v2148 = vpop.f32.mrf.mxu0
        %v2149 = vadd.f32 0.0, %v2148
        %v2150 = vpop.f32.mrf.mxu0
        %v2151 = vpop.f32.mrf.mxu0
        %v2152 = vpop.f32.mrf.mxu0
        %2153 = vdwg.mxu0
        %2154 = vrot.lane.b32.xlu0 %v1629, 32
        %v2155 = vpop.permute.xlu0 %2154
        %2156 = vrot.lane.b32.xlu0 %v1630, 32
        %v2157 = vpop.permute.xlu0 %2156
        %v2159 = vsel %vm1673, %v2155, 0
        %v2162 = vsel %vm1673, %v2157, 0
        %2164 = vmatprep.subr.bf16.mxu0 0
        %2165 = vmatpush1.bf16.msra.mxu0 0
        %2166 = vmatprep.subr.bf16.mxu0 0
        %2167 = vmatpush1.bf16.msra.mxu0 0
        %2168 = vmatprep.subr.bf16.mxu0 0
        %2169 = vmatpush1.bf16.msra.mxu0 0
        %2170 = vmatprep.subr.bf16.mxu0 0
        %2171 = vmatpush1.bf16.msra.mxu0 0
        %2172 = vmatprep.subr.bf16.mxu0 0
        %2173 = vmatpush1.bf16.msra.mxu0 0
        %2174 = vmatprep.subr.bf16.mxu0 0
        %2175 = vmatpush1.bf16.msra.mxu0 0
        %2176 = vmatprep.subr.bf16.mxu0 0
        %2177 = vmatpush1.bf16.msra.mxu0 %v1670
        %2178 = vmatprep.subr.bf16.mxu0 0
        %2179 = vmatpush1.bf16.msra.mxu0 %v1669
        %2180 = vmatprep.subr.bf16.mxu0 0
        %2181 = vmatpush2.bf16.msra.mxu0 0
        %2182 = vmatprep.subr.bf16.mxu0 0
        %2183 = vmatpush2.bf16.msra.mxu0 0
        %2184 = vmatprep.subr.bf16.mxu0 0
        %2185 = vmatpush2.bf16.msra.mxu0 0
        %2186 = vmatprep.subr.bf16.mxu0 0
        %2187 = vmatpush2.bf16.msra.mxu0 0
        %2188 = vmatprep.subr.bf16.mxu0 0
        %2189 = vmatpush2.bf16.msra.mxu0 0
        %2190 = vmatprep.subr.bf16.mxu0 0
        %2191 = vmatpush2.bf16.msra.mxu0 0
        %2192 = vmatprep.subr.bf16.mxu0 0
        %2193 = vmatpush2.bf16.msra.mxu0 0
        %2194 = vmatprep.subr.bf16.mxu0 0
        %2195 = vmatpush2.bf16.msra.mxu0 0
        %2196 = vmatprep.mubr.bf16.mxu0 0
        %2197 = vmatmul.mubr.bf16.gmra.mxu0 %v2159
        %v2198 = vpop.f32.mrf.mxu0
        %v2199 = vadd.f32 0.0, %v2198
        %v2200 = vpop.f32.mrf.mxu0
        %v2201 = vpop.f32.mrf.mxu0
        %v2202 = vadd.f32 0.0, %v2201
        %v2203 = vpop.f32.mrf.mxu0
        %2204 = vmatprep.mubr.bf16.mxu0 0
        %2205 = vmatmul.mubr.bf16.gmra.mxu0 %v2162
        %v2206 = vpop.f32.mrf.mxu0
        %v2207 = vadd.f32 0.0, %v2206
        %v2208 = vpop.f32.mrf.mxu0
        %v2209 = vpop.f32.mrf.mxu0
        %v2210 = vpop.f32.mrf.mxu0
        %2211 = vdwg.mxu0
        %v2212 = vmul.f32 %v2199, 0.17677669
        %v2213 = vmul.f32 %v2202, 0.17677669
        %v2214 = vmul.f32 %v2207, 0.17677669
        %v2215 = vadd.f32 %v2212, %v1628
        %v2216 = vadd.f32 %v2213, %v1628
        %v2217 = vadd.f32 %v2214, %v1628
        %v2218 = vsel %vm1734, %v2215, -inf
        %2219 = vmax.xlane.f32.xlu0 %v2218
        %v2220 = vpop.xlane.xlu0 %2219
        %v2221 = vsel %vm1734, %v2216, -inf
        %2222 = vmax.xlane.f32.xlu0 %v2221
        %v2223 = vpop.xlane.xlu0 %2222
        %v2224 = vsel %vm1734, %v2217, -inf
        %2225 = vmax.xlane.f32.xlu0 %v2224
        %v2226 = vpop.xlane.xlu0 %2225
        %v2227 = vsub.f32 %v2215, %v2220
        %v2228 = vsub.f32 %v2216, %v2223
        %v2229 = vsub.f32 %v2217, %v2226
        %v2230 = vmul.f32 %v2227, 1.442695
        %v2231 = vpow.pop %v2230
        %v2232 = vmul.f32 %v2228, 1.442695
        %v2233 = vpow.pop %v2232
        %v2234 = vmul.f32 %v2229, 1.442695
        %v2235 = vpow.pop %v2234
        %v2236 = vsel %vm1734, %v2231, 0.0
        %2237 = vadd.xlane.f32.xlu0 %v2236
        %v2238 = vpop.xlane.xlu0 %2237
        %v2239 = vsel %vm1734, %v2233, 0.0
        %2240 = vadd.xlane.f32.xlu0 %v2239
        %v2241 = vpop.xlane.xlu0 %2240
        %v2242 = vsel %vm1734, %v2235, 0.0
        %2243 = vadd.xlane.f32.xlu0 %v2242
        %v2244 = vpop.xlane.xlu0 %2243
        %v2245 = vrcp.pop %v2238
        %v2246 = vmul.f32 %v2231, %v2245
        %v2247 = vrcp.pop %v2241
        %v2248 = vmul.f32 %v2233, %v2247
        %v2249 = vrcp.pop %v2244
        %v2250 = vmul.f32 %v2235, %v2249
        %v2251 = vpack.c.bf16 %v2248, %v2246
        %v2252 = vpack.c.bf16 %v2250, %v2250
        %2253 = vrot.lane.b32.xlu0 %v1671, 32
        %v2254 = vpop.permute.xlu0 %2253
        %2255 = vrot.lane.b32.xlu0 %v1672, 32
        %v2256 = vpop.permute.xlu0 %2255
        %v2259 = vsel %vm1734, %v2251, 0
        %v2262 = vsel %vm1734, %v2252, 0
        %v2265 = vsel %vm1776, %v2256, 0
        %2267 = vmatprep.subr.bf16.mxu0 0
        %2268 = vmatpush1.bf16.msra.mxu0 0
        %2269 = vmatprep.subr.bf16.mxu0 0
        %2270 = vmatpush1.bf16.msra.mxu0 0
        %2271 = vmatprep.subr.bf16.mxu0 0
        %2272 = vmatpush1.bf16.msra.mxu0 0
        %2273 = vmatprep.subr.bf16.mxu0 0
        %2274 = vmatpush1.bf16.msra.mxu0 0
        %2275 = vmatprep.subr.bf16.mxu0 0
        %2276 = vmatpush1.bf16.msra.mxu0 0
        %2277 = vmatprep.subr.bf16.mxu0 0
        %2278 = vmatpush1.bf16.msra.mxu0 0
        %2279 = vmatprep.subr.bf16.mxu0 0
        %2280 = vmatpush1.bf16.msra.mxu0 %v2265
        %2281 = vmatprep.subr.bf16.mxu0 0
        %2282 = vmatpush1.bf16.msra.mxu0 %v2254
        %2283 = vmatprep.subr.bf16.mxu0 0
        %2284 = vmatpush2.bf16.msra.mxu0 0
        %2285 = vmatprep.subr.bf16.mxu0 0
        %2286 = vmatpush2.bf16.msra.mxu0 0
        %2287 = vmatprep.subr.bf16.mxu0 0
        %2288 = vmatpush2.bf16.msra.mxu0 0
        %2289 = vmatprep.subr.bf16.mxu0 0
        %2290 = vmatpush2.bf16.msra.mxu0 0
        %2291 = vmatprep.subr.bf16.mxu0 0
        %2292 = vmatpush2.bf16.msra.mxu0 0
        %2293 = vmatprep.subr.bf16.mxu0 0
        %2294 = vmatpush2.bf16.msra.mxu0 0
        %2295 = vmatprep.subr.bf16.mxu0 0
        %2296 = vmatpush2.bf16.msra.mxu0 0
        %2297 = vmatprep.subr.bf16.mxu0 0
        %2298 = vmatpush2.bf16.msra.mxu0 0
        %2299 = vmatprep.mubr.bf16.mxu0 0
        %2300 = vmatmul.mubr.bf16.gmra.mxu0 %v2259
        %v2301 = vpop.f32.mrf.mxu0
        %v2302 = vadd.f32 0.0, %v2301
        %v2303 = vpop.f32.mrf.mxu0
        %v2304 = vpop.f32.mrf.mxu0
        %v2305 = vadd.f32 0.0, %v2304
        %v2306 = vpop.f32.mrf.mxu0
        %2307 = vmatprep.mubr.bf16.mxu0 0
        %2308 = vmatmul.mubr.bf16.gmra.mxu0 %v2262
        %v2309 = vpop.f32.mrf.mxu0
        %v2310 = vadd.f32 0.0, %v2309
        %v2311 = vpop.f32.mrf.mxu0
        %v2312 = vpop.f32.mrf.mxu0
        %v2313 = vpop.f32.mrf.mxu0
        %2314 = vdwg.mxu0
        %2318 = vrot.lane.b32.xlu0 %v1980, 32
        %v2319 = vpop.permute.xlu0 %2318
        %2320 = vrot.lane.b32.xlu0 %v1983, 32
        %v2321 = vpop.permute.xlu0 %2320
        %2322 = vrot.lane.b32.xlu0 %v1988, 32
        %v2323 = vpop.permute.xlu0 %2322
        %2330 = vrot.lane.b32.xlu0 %v2141, 64
        %v2331 = vpop.permute.xlu0 %2330
        %2332 = vrot.lane.b32.xlu0 %v2144, 64
        %v2333 = vpop.permute.xlu0 %2332
        %2334 = vrot.lane.b32.xlu0 %v2149, 64
        %v2335 = vpop.permute.xlu0 %2334
        %2342 = vrot.lane.b32.xlu0 %v2302, 96
        %v2343 = vpop.permute.xlu0 %2342
        %2344 = vrot.lane.b32.xlu0 %v2305, 96
        %v2345 = vpop.permute.xlu0 %2344
        %2346 = vrot.lane.b32.xlu0 %v2310, 96
        %v2347 = vpop.permute.xlu0 %2346
        %v2351 = vsel %vm1673, %v1815, %v2319
        %v2352 = vsel %vm1673, %v1818, %v2321
        %v2353 = vsel %vm1673, %v1823, %v2323
        %vm2354 = vcmask 523264
        %v2355 = vsel %vm2354, %v2351, %v2331
        %v2356 = vsel %vm2354, %v2352, %v2333
        %v2357 = vsel %vm2354, %v2353, %v2335
        %vm2358 = vcmask 785408
        %v2359 = vsel %vm2358, %v2355, %v2343
        %v2360 = vsel %vm2358, %v2356, %v2345
        %v2361 = vsel %vm2358, %v2357, %v2347
        %v2362 = vpack.c.bf16 %v1560, %v1554
        %v2363 = vpack.c.bf16 %v1564, %v1564
        %2364 = vxpose.xlu0.b32.start [1/16] %v1556, 128
        %2365 = vxpose.xlu0.b32.cont [2/16] %v1562, 128
        %2366 = vxpose.xlu0.b32.cont [3/16] %v1566, 128
        %2367 = vxpose.xlu0.b32.cont [4/16] 0.0, 128
        %2368 = vxpose.xlu0.b32.cont [5/16] 0.0, 128
        %2369 = vxpose.xlu0.b32.cont [6/16] 0.0, 128
        %2370 = vxpose.xlu0.b32.cont [7/16] 0.0, 128
        %2371 = vxpose.xlu0.b32.cont [8/16] 0.0, 128
        %2372 = vxpose.xlu0.b32.cont [9/16] 0.0, 128
        %2373 = vxpose.xlu0.b32.cont [10/16] 0.0, 128
        %2374 = vxpose.xlu0.b32.cont [11/16] 0.0, 128
        %2375 = vxpose.xlu0.b32.cont [12/16] 0.0, 128
        %2376 = vxpose.xlu0.b32.cont [13/16] 0.0, 128
        %2377 = vxpose.xlu0.b32.cont [14/16] 0.0, 128
        %2378 = vxpose.xlu0.b32.cont [15/16] 0.0, 128
        %2379 = vxpose.xlu0.b32.end [16/16] 0.0, 128
        %v2380 = vpop.trf.xlu0
        %v2381 = vpop.trf.xlu0
        %v2382 = vpop.trf.xlu0
        %v2383 = vpop.trf.xlu0
        %v2384 = vpop.trf.xlu0
        %v2385 = vpop.trf.xlu0
        %v2386 = vpop.trf.xlu0
        %v2387 = vpop.trf.xlu0
        %v2388 = vpop.trf.xlu0
        %v2389 = vpop.trf.xlu0
        %v2390 = vpop.trf.xlu0
        %v2391 = vpop.trf.xlu0
        %v2392 = vpop.trf.xlu0
        %v2393 = vpop.trf.xlu0
        %v2394 = vpop.trf.xlu0
        %v2395 = vpop.trf.xlu0
        %v2396 = vpack.c.bf16 %v2381, %v2380
        %v2397 = vpack.c.bf16 %v2383, %v2382
        %v2398 = vpack.c.bf16 %v2385, %v2384
        %v2399 = vpack.c.bf16 %v2387, %v2386
        %v2400 = vpack.c.bf16 %v2389, %v2388
        %v2401 = vpack.c.bf16 %v2391, %v2390
        %v2402 = vpack.c.bf16 %v2393, %v2392
        %v2403 = vpack.c.bf16 %v2395, %v2394
        %v2404 = vpack.c.bf16 %v1619, %v1614
        %v2405 = vpack.c.bf16 %v1622, %v1622
        %v2407 = vsel %vm1673, %v2362, 0
        %v2410 = vsel %vm1673, %v2363, 0
        %2412 = vmatprep.subr.bf16.mxu0 0
        %2413 = vmatpush1.bf16.msra.mxu0 0
        %2414 = vmatprep.subr.bf16.mxu0 0
        %2415 = vmatpush1.bf16.msra.mxu0 0
        %2416 = vmatprep.subr.bf16.mxu0 0
        %2417 = vmatpush1.bf16.msra.mxu0 0
        %2418 = vmatprep.subr.bf16.mxu0 0
        %2419 = vmatpush1.bf16.msra.mxu0 0
        %2420 = vmatprep.subr.bf16.mxu0 0
        %2421 = vmatpush1.bf16.msra.mxu0 0
        %2422 = vmatprep.subr.bf16.mxu0 0
        %2423 = vmatpush1.bf16.msra.mxu0 0
        %2424 = vmatprep.subr.bf16.mxu0 0
        %2425 = vmatpush1.bf16.msra.mxu0 %v2397
        %2426 = vmatprep.subr.bf16.mxu0 0
        %2427 = vmatpush1.bf16.msra.mxu0 %v2396
        %2428 = vmatprep.subr.bf16.mxu0 0
        %2429 = vmatpush2.bf16.msra.mxu0 0
        %2430 = vmatprep.subr.bf16.mxu0 0
        %2431 = vmatpush2.bf16.msra.mxu0 0
        %2432 = vmatprep.subr.bf16.mxu0 0
        %2433 = vmatpush2.bf16.msra.mxu0 0
        %2434 = vmatprep.subr.bf16.mxu0 0
        %2435 = vmatpush2.bf16.msra.mxu0 0
        %2436 = vmatprep.subr.bf16.mxu0 0
        %2437 = vmatpush2.bf16.msra.mxu0 0
        %2438 = vmatprep.subr.bf16.mxu0 0
        %2439 = vmatpush2.bf16.msra.mxu0 0
        %2440 = vmatprep.subr.bf16.mxu0 0
        %2441 = vmatpush2.bf16.msra.mxu0 0
        %2442 = vmatprep.subr.bf16.mxu0 0
        %2443 = vmatpush2.bf16.msra.mxu0 0
        %2444 = vmatprep.mubr.bf16.mxu0 0
        %2445 = vmatmul.mubr.bf16.gmra.mxu0 %v2407
        %v2446 = vpop.f32.mrf.mxu0
        %v2447 = vadd.f32 0.0, %v2446
        %v2448 = vpop.f32.mrf.mxu0
        %v2449 = vpop.f32.mrf.mxu0
        %v2450 = vadd.f32 0.0, %v2449
        %v2451 = vpop.f32.mrf.mxu0
        %2452 = vmatprep.mubr.bf16.mxu0 0
        %2453 = vmatmul.mubr.bf16.gmra.mxu0 %v2410
        %v2454 = vpop.f32.mrf.mxu0
        %v2455 = vadd.f32 0.0, %v2454
        %v2456 = vpop.f32.mrf.mxu0
        %v2457 = vpop.f32.mrf.mxu0
        %v2458 = vpop.f32.mrf.mxu0
        %2459 = vdwg.mxu0
        %v2460 = vmul.f32 %v2447, 0.17677669
        %v2461 = vmul.f32 %v2450, 0.17677669
        %v2462 = vmul.f32 %v2455, 0.17677669
        %v2463 = vadd.f32 %v2460, %v1628
        %v2464 = vadd.f32 %v2461, %v1628
        %v2465 = vadd.f32 %v2462, %v1628
        %v2466 = vsel %vm1734, %v2463, -inf
        %2467 = vmax.xlane.f32.xlu0 %v2466
        %v2468 = vpop.xlane.xlu0 %2467
        %v2469 = vsel %vm1734, %v2464, -inf
        %2470 = vmax.xlane.f32.xlu0 %v2469
        %v2471 = vpop.xlane.xlu0 %2470
        %v2472 = vsel %vm1734, %v2465, -inf
        %2473 = vmax.xlane.f32.xlu0 %v2472
        %v2474 = vpop.xlane.xlu0 %2473
        %v2475 = vsub.f32 %v2463, %v2468
        %v2476 = vsub.f32 %v2464, %v2471
        %v2477 = vsub.f32 %v2465, %v2474
        %v2478 = vmul.f32 %v2475, 1.442695
        %v2479 = vpow.pop %v2478
        %v2480 = vmul.f32 %v2476, 1.442695
        %v2481 = vpow.pop %v2480
        %v2482 = vmul.f32 %v2477, 1.442695
        %v2483 = vpow.pop %v2482
        %v2484 = vsel %vm1734, %v2479, 0.0
        %2485 = vadd.xlane.f32.xlu0 %v2484
        %v2486 = vpop.xlane.xlu0 %2485
        %v2487 = vsel %vm1734, %v2481, 0.0
        %2488 = vadd.xlane.f32.xlu0 %v2487
        %v2489 = vpop.xlane.xlu0 %2488
        %v2490 = vsel %vm1734, %v2483, 0.0
        %2491 = vadd.xlane.f32.xlu0 %v2490
        %v2492 = vpop.xlane.xlu0 %2491
        %v2493 = vrcp.pop %v2486
        %v2494 = vmul.f32 %v2479, %v2493
        %v2495 = vrcp.pop %v2489
        %v2496 = vmul.f32 %v2481, %v2495
        %v2497 = vrcp.pop %v2492
        %v2498 = vmul.f32 %v2483, %v2497
        %v2499 = vpack.c.bf16 %v2496, %v2494
        %v2500 = vpack.c.bf16 %v2498, %v2498
        %v2502 = vsel %vm1734, %v2499, 0
        %v2505 = vsel %vm1734, %v2500, 0
        %v2508 = vsel %vm1776, %v2405, 0
        %2510 = vmatprep.subr.bf16.mxu0 0
        %2511 = vmatpush1.bf16.msra.mxu0 0
        %2512 = vmatprep.subr.bf16.mxu0 0
        %2513 = vmatpush1.bf16.msra.mxu0 0
        %2514 = vmatprep.subr.bf16.mxu0 0
        %2515 = vmatpush1.bf16.msra.mxu0 0
        %2516 = vmatprep.subr.bf16.mxu0 0
        %2517 = vmatpush1.bf16.msra.mxu0 0
        %2518 = vmatprep.subr.bf16.mxu0 0
        %2519 = vmatpush1.bf16.msra.mxu0 0
        %2520 = vmatprep.subr.bf16.mxu0 0
        %2521 = vmatpush1.bf16.msra.mxu0 0
        %2522 = vmatprep.subr.bf16.mxu0 0
        %2523 = vmatpush1.bf16.msra.mxu0 %v2508
        %2524 = vmatprep.subr.bf16.mxu0 0
        %2525 = vmatpush1.bf16.msra.mxu0 %v2404
        %2526 = vmatprep.subr.bf16.mxu0 0
        %2527 = vmatpush2.bf16.msra.mxu0 0
        %2528 = vmatprep.subr.bf16.mxu0 0
        %2529 = vmatpush2.bf16.msra.mxu0 0
        %2530 = vmatprep.subr.bf16.mxu0 0
        %2531 = vmatpush2.bf16.msra.mxu0 0
        %2532 = vmatprep.subr.bf16.mxu0 0
        %2533 = vmatpush2.bf16.msra.mxu0 0
        %2534 = vmatprep.subr.bf16.mxu0 0
        %2535 = vmatpush2.bf16.msra.mxu0 0
        %2536 = vmatprep.subr.bf16.mxu0 0
        %2537 = vmatpush2.bf16.msra.mxu0 0
        %2538 = vmatprep.subr.bf16.mxu0 0
        %2539 = vmatpush2.bf16.msra.mxu0 0
        %2540 = vmatprep.subr.bf16.mxu0 0
        %2541 = vmatpush2.bf16.msra.mxu0 0
        %2542 = vmatprep.mubr.bf16.mxu0 0
        %2543 = vmatmul.mubr.bf16.gmra.mxu0 %v2502
        %v2544 = vpop.f32.mrf.mxu0
        %v2545 = vadd.f32 0.0, %v2544
        %v2546 = vpop.f32.mrf.mxu0
        %v2547 = vpop.f32.mrf.mxu0
        %v2548 = vadd.f32 0.0, %v2547
        %v2549 = vpop.f32.mrf.mxu0
        %2550 = vmatprep.mubr.bf16.mxu0 0
        %2551 = vmatmul.mubr.bf16.gmra.mxu0 %v2505
        %v2552 = vpop.f32.mrf.mxu0
        %v2553 = vadd.f32 0.0, %v2552
        %v2554 = vpop.f32.mrf.mxu0
        %v2555 = vpop.f32.mrf.mxu0
        %v2556 = vpop.f32.mrf.mxu0
        %2557 = vdwg.mxu0
        %2560 = vrot.lane.b32.xlu0 %v2362, 96
        %v2561 = vpop.permute.xlu0 %2560
        %2562 = vrot.lane.b32.xlu0 %v2363, 96
        %v2563 = vpop.permute.xlu0 %2562
        %v2565 = vsel %vm1673, %v2561, 0
        %v2568 = vsel %vm1673, %v2563, 0
        %2570 = vmatprep.subr.bf16.mxu0 0
        %2571 = vmatpush1.bf16.msra.mxu0 0
        %2572 = vmatprep.subr.bf16.mxu0 0
        %2573 = vmatpush1.bf16.msra.mxu0 0
        %2574 = vmatprep.subr.bf16.mxu0 0
        %2575 = vmatpush1.bf16.msra.mxu0 0
        %2576 = vmatprep.subr.bf16.mxu0 0
        %2577 = vmatpush1.bf16.msra.mxu0 0
        %2578 = vmatprep.subr.bf16.mxu0 0
        %2579 = vmatpush1.bf16.msra.mxu0 0
        %2580 = vmatprep.subr.bf16.mxu0 0
        %2581 = vmatpush1.bf16.msra.mxu0 0
        %2582 = vmatprep.subr.bf16.mxu0 0
        %2583 = vmatpush1.bf16.msra.mxu0 %v2399
        %2584 = vmatprep.subr.bf16.mxu0 0
        %2585 = vmatpush1.bf16.msra.mxu0 %v2398
        %2586 = vmatprep.subr.bf16.mxu0 0
        %2587 = vmatpush2.bf16.msra.mxu0 0
        %2588 = vmatprep.subr.bf16.mxu0 0
        %2589 = vmatpush2.bf16.msra.mxu0 0
        %2590 = vmatprep.subr.bf16.mxu0 0
        %2591 = vmatpush2.bf16.msra.mxu0 0
        %2592 = vmatprep.subr.bf16.mxu0 0
        %2593 = vmatpush2.bf16.msra.mxu0 0
        %2594 = vmatprep.subr.bf16.mxu0 0
        %2595 = vmatpush2.bf16.msra.mxu0 0
        %2596 = vmatprep.subr.bf16.mxu0 0
        %2597 = vmatpush2.bf16.msra.mxu0 0
        %2598 = vmatprep.subr.bf16.mxu0 0
        %2599 = vmatpush2.bf16.msra.mxu0 0
        %2600 = vmatprep.subr.bf16.mxu0 0
        %2601 = vmatpush2.bf16.msra.mxu0 0
        %2602 = vmatprep.mubr.bf16.mxu0 0
        %2603 = vmatmul.mubr.bf16.gmra.mxu0 %v2565
        %v2604 = vpop.f32.mrf.mxu0
        %v2605 = vadd.f32 0.0, %v2604
        %v2606 = vpop.f32.mrf.mxu0
        %v2607 = vpop.f32.mrf.mxu0
        %v2608 = vadd.f32 0.0, %v2607
        %v2609 = vpop.f32.mrf.mxu0
        %2610 = vmatprep.mubr.bf16.mxu0 0
        %2611 = vmatmul.mubr.bf16.gmra.mxu0 %v2568
        %v2612 = vpop.f32.mrf.mxu0
        %v2613 = vadd.f32 0.0, %v2612
        %v2614 = vpop.f32.mrf.mxu0
        %v2615 = vpop.f32.mrf.mxu0
        %v2616 = vpop.f32.mrf.mxu0
        %2617 = vdwg.mxu0
        %v2618 = vmul.f32 %v2605, 0.17677669
        %v2619 = vmul.f32 %v2608, 0.17677669
        %v2620 = vmul.f32 %v2613, 0.17677669
        %v2621 = vadd.f32 %v2618, %v1628
        %v2622 = vadd.f32 %v2619, %v1628
        %v2623 = vadd.f32 %v2620, %v1628
        %v2624 = vsel %vm1734, %v2621, -inf
        %2625 = vmax.xlane.f32.xlu0 %v2624
        %v2626 = vpop.xlane.xlu0 %2625
        %v2627 = vsel %vm1734, %v2622, -inf
        %2628 = vmax.xlane.f32.xlu0 %v2627
        %v2629 = vpop.xlane.xlu0 %2628
        %v2630 = vsel %vm1734, %v2623, -inf
        %2631 = vmax.xlane.f32.xlu0 %v2630
        %v2632 = vpop.xlane.xlu0 %2631
        %v2633 = vsub.f32 %v2621, %v2626
        %v2634 = vsub.f32 %v2622, %v2629
        %v2635 = vsub.f32 %v2623, %v2632
        %v2636 = vmul.f32 %v2633, 1.442695
        %v2637 = vpow.pop %v2636
        %v2638 = vmul.f32 %v2634, 1.442695
        %v2639 = vpow.pop %v2638
        %v2640 = vmul.f32 %v2635, 1.442695
        %v2641 = vpow.pop %v2640
        %v2642 = vsel %vm1734, %v2637, 0.0
        %2643 = vadd.xlane.f32.xlu0 %v2642
        %v2644 = vpop.xlane.xlu0 %2643
        %v2645 = vsel %vm1734, %v2639, 0.0
        %2646 = vadd.xlane.f32.xlu0 %v2645
        %v2647 = vpop.xlane.xlu0 %2646
        %v2648 = vsel %vm1734, %v2641, 0.0
        %2649 = vadd.xlane.f32.xlu0 %v2648
        %v2650 = vpop.xlane.xlu0 %2649
        %v2651 = vrcp.pop %v2644
        %v2652 = vmul.f32 %v2637, %v2651
        %v2653 = vrcp.pop %v2647
        %v2654 = vmul.f32 %v2639, %v2653
        %v2655 = vrcp.pop %v2650
        %v2656 = vmul.f32 %v2641, %v2655
        %v2657 = vpack.c.bf16 %v2654, %v2652
        %v2658 = vpack.c.bf16 %v2656, %v2656
        %2661 = vrot.lane.b32.xlu0 %v2404, 96
        %v2662 = vpop.permute.xlu0 %2661
        %2663 = vrot.lane.b32.xlu0 %v2405, 96
        %v2664 = vpop.permute.xlu0 %2663
        %v2667 = vsel %vm1734, %v2657, 0
        %v2670 = vsel %vm1734, %v2658, 0
        %v2673 = vsel %vm1776, %v2664, 0
        %2675 = vmatprep.subr.bf16.mxu0 0
        %2676 = vmatpush1.bf16.msra.mxu0 0
        %2677 = vmatprep.subr.bf16.mxu0 0
        %2678 = vmatpush1.bf16.msra.mxu0 0
        %2679 = vmatprep.subr.bf16.mxu0 0
        %2680 = vmatpush1.bf16.msra.mxu0 0
        %2681 = vmatprep.subr.bf16.mxu0 0
        %2682 = vmatpush1.bf16.msra.mxu0 0
        %2683 = vmatprep.subr.bf16.mxu0 0
        %2684 = vmatpush1.bf16.msra.mxu0 0
        %2685 = vmatprep.subr.bf16.mxu0 0
        %2686 = vmatpush1.bf16.msra.mxu0 0
        %2687 = vmatprep.subr.bf16.mxu0 0
        %2688 = vmatpush1.bf16.msra.mxu0 %v2673
        %2689 = vmatprep.subr.bf16.mxu0 0
        %2690 = vmatpush1.bf16.msra.mxu0 %v2662
        %2691 = vmatprep.subr.bf16.mxu0 0
        %2692 = vmatpush2.bf16.msra.mxu0 0
        %2693 = vmatprep.subr.bf16.mxu0 0
        %2694 = vmatpush2.bf16.msra.mxu0 0
        %2695 = vmatprep.subr.bf16.mxu0 0
        %2696 = vmatpush2.bf16.msra.mxu0 0
        %2697 = vmatprep.subr.bf16.mxu0 0
        %2698 = vmatpush2.bf16.msra.mxu0 0
        %2699 = vmatprep.subr.bf16.mxu0 0
        %2700 = vmatpush2.bf16.msra.mxu0 0
        %2701 = vmatprep.subr.bf16.mxu0 0
        %2702 = vmatpush2.bf16.msra.mxu0 0
        %2703 = vmatprep.subr.bf16.mxu0 0
        %2704 = vmatpush2.bf16.msra.mxu0 0
        %2705 = vmatprep.subr.bf16.mxu0 0
        %2706 = vmatpush2.bf16.msra.mxu0 0
        %2707 = vmatprep.mubr.bf16.mxu0 0
        %2708 = vmatmul.mubr.bf16.gmra.mxu0 %v2667
        %v2709 = vpop.f32.mrf.mxu0
        %v2710 = vadd.f32 0.0, %v2709
        %v2711 = vpop.f32.mrf.mxu0
        %v2712 = vpop.f32.mrf.mxu0
        %v2713 = vadd.f32 0.0, %v2712
        %v2714 = vpop.f32.mrf.mxu0
        %2715 = vmatprep.mubr.bf16.mxu0 0
        %2716 = vmatmul.mubr.bf16.gmra.mxu0 %v2670
        %v2717 = vpop.f32.mrf.mxu0
        %v2718 = vadd.f32 0.0, %v2717
        %v2719 = vpop.f32.mrf.mxu0
        %v2720 = vpop.f32.mrf.mxu0
        %v2721 = vpop.f32.mrf.mxu0
        %2722 = vdwg.mxu0
        %2723 = vrot.lane.b32.xlu0 %v2362, 64
        %v2724 = vpop.permute.xlu0 %2723
        %2725 = vrot.lane.b32.xlu0 %v2363, 64
        %v2726 = vpop.permute.xlu0 %2725
        %v2728 = vsel %vm1673, %v2724, 0
        %v2731 = vsel %vm1673, %v2726, 0
        %2733 = vmatprep.subr.bf16.mxu0 0
        %2734 = vmatpush1.bf16.msra.mxu0 0
        %2735 = vmatprep.subr.bf16.mxu0 0
        %2736 = vmatpush1.bf16.msra.mxu0 0
        %2737 = vmatprep.subr.bf16.mxu0 0
        %2738 = vmatpush1.bf16.msra.mxu0 0
        %2739 = vmatprep.subr.bf16.mxu0 0
        %2740 = vmatpush1.bf16.msra.mxu0 0
        %2741 = vmatprep.subr.bf16.mxu0 0
        %2742 = vmatpush1.bf16.msra.mxu0 0
        %2743 = vmatprep.subr.bf16.mxu0 0
        %2744 = vmatpush1.bf16.msra.mxu0 0
        %2745 = vmatprep.subr.bf16.mxu0 0
        %2746 = vmatpush1.bf16.msra.mxu0 %v2401
        %2747 = vmatprep.subr.bf16.mxu0 0
        %2748 = vmatpush1.bf16.msra.mxu0 %v2400
        %2749 = vmatprep.subr.bf16.mxu0 0
        %2750 = vmatpush2.bf16.msra.mxu0 0
        %2751 = vmatprep.subr.bf16.mxu0 0
        %2752 = vmatpush2.bf16.msra.mxu0 0
        %2753 = vmatprep.subr.bf16.mxu0 0
        %2754 = vmatpush2.bf16.msra.mxu0 0
        %2755 = vmatprep.subr.bf16.mxu0 0
        %2756 = vmatpush2.bf16.msra.mxu0 0
        %2757 = vmatprep.subr.bf16.mxu0 0
        %2758 = vmatpush2.bf16.msra.mxu0 0
        %2759 = vmatprep.subr.bf16.mxu0 0
        %2760 = vmatpush2.bf16.msra.mxu0 0
        %2761 = vmatprep.subr.bf16.mxu0 0
        %2762 = vmatpush2.bf16.msra.mxu0 0
        %2763 = vmatprep.subr.bf16.mxu0 0
        %2764 = vmatpush2.bf16.msra.mxu0 0
        %2765 = vmatprep.mubr.bf16.mxu0 0
        %2766 = vmatmul.mubr.bf16.gmra.mxu0 %v2728
        %v2767 = vpop.f32.mrf.mxu0
        %v2768 = vadd.f32 0.0, %v2767
        %v2769 = vpop.f32.mrf.mxu0
        %v2770 = vpop.f32.mrf.mxu0
        %v2771 = vadd.f32 0.0, %v2770
        %v2772 = vpop.f32.mrf.mxu0
        %2773 = vmatprep.mubr.bf16.mxu0 0
        %2774 = vmatmul.mubr.bf16.gmra.mxu0 %v2731
        %v2775 = vpop.f32.mrf.mxu0
        %v2776 = vadd.f32 0.0, %v2775
        %v2777 = vpop.f32.mrf.mxu0
        %v2778 = vpop.f32.mrf.mxu0
        %v2779 = vpop.f32.mrf.mxu0
        %2780 = vdwg.mxu0
        %v2781 = vmul.f32 %v2768, 0.17677669
        %v2782 = vmul.f32 %v2771, 0.17677669
        %v2783 = vmul.f32 %v2776, 0.17677669
        %v2784 = vadd.f32 %v2781, %v1628
        %v2785 = vadd.f32 %v2782, %v1628
        %v2786 = vadd.f32 %v2783, %v1628
        %v2787 = vsel %vm1734, %v2784, -inf
        %2788 = vmax.xlane.f32.xlu0 %v2787
        %v2789 = vpop.xlane.xlu0 %2788
        %v2790 = vsel %vm1734, %v2785, -inf
        %2791 = vmax.xlane.f32.xlu0 %v2790
        %v2792 = vpop.xlane.xlu0 %2791
        %v2793 = vsel %vm1734, %v2786, -inf
        %2794 = vmax.xlane.f32.xlu0 %v2793
        %v2795 = vpop.xlane.xlu0 %2794
        %v2796 = vsub.f32 %v2784, %v2789
        %v2797 = vsub.f32 %v2785, %v2792
        %v2798 = vsub.f32 %v2786, %v2795
        %v2799 = vmul.f32 %v2796, 1.442695
        %v2800 = vpow.pop %v2799
        %v2801 = vmul.f32 %v2797, 1.442695
        %v2802 = vpow.pop %v2801
        %v2803 = vmul.f32 %v2798, 1.442695
        %v2804 = vpow.pop %v2803
        %v2805 = vsel %vm1734, %v2800, 0.0
        %2806 = vadd.xlane.f32.xlu0 %v2805
        %v2807 = vpop.xlane.xlu0 %2806
        %v2808 = vsel %vm1734, %v2802, 0.0
        %2809 = vadd.xlane.f32.xlu0 %v2808
        %v2810 = vpop.xlane.xlu0 %2809
        %v2811 = vsel %vm1734, %v2804, 0.0
        %2812 = vadd.xlane.f32.xlu0 %v2811
        %v2813 = vpop.xlane.xlu0 %2812
        %v2814 = vrcp.pop %v2807
        %v2815 = vmul.f32 %v2800, %v2814
        %v2816 = vrcp.pop %v2810
        %v2817 = vmul.f32 %v2802, %v2816
        %v2818 = vrcp.pop %v2813
        %v2819 = vmul.f32 %v2804, %v2818
        %v2820 = vpack.c.bf16 %v2817, %v2815
        %v2821 = vpack.c.bf16 %v2819, %v2819
        %2822 = vrot.lane.b32.xlu0 %v2404, 64
        %v2823 = vpop.permute.xlu0 %2822
        %2824 = vrot.lane.b32.xlu0 %v2405, 64
        %v2825 = vpop.permute.xlu0 %2824
        %v2828 = vsel %vm1734, %v2820, 0
        %v2831 = vsel %vm1734, %v2821, 0
        %v2834 = vsel %vm1776, %v2825, 0
        %2836 = vmatprep.subr.bf16.mxu0 0
        %2837 = vmatpush1.bf16.msra.mxu0 0
        %2838 = vmatprep.subr.bf16.mxu0 0
        %2839 = vmatpush1.bf16.msra.mxu0 0
        %2840 = vmatprep.subr.bf16.mxu0 0
        %2841 = vmatpush1.bf16.msra.mxu0 0
        %2842 = vmatprep.subr.bf16.mxu0 0
        %2843 = vmatpush1.bf16.msra.mxu0 0
        %2844 = vmatprep.subr.bf16.mxu0 0
        %2845 = vmatpush1.bf16.msra.mxu0 0
        %2846 = vmatprep.subr.bf16.mxu0 0
        %2847 = vmatpush1.bf16.msra.mxu0 0
        %2848 = vmatprep.subr.bf16.mxu0 0
        %2849 = vmatpush1.bf16.msra.mxu0 %v2834
        %2850 = vmatprep.subr.bf16.mxu0 0
        %2851 = vmatpush1.bf16.msra.mxu0 %v2823
        %2852 = vmatprep.subr.bf16.mxu0 0
        %2853 = vmatpush2.bf16.msra.mxu0 0
        %2854 = vmatprep.subr.bf16.mxu0 0
        %2855 = vmatpush2.bf16.msra.mxu0 0
        %2856 = vmatprep.subr.bf16.mxu0 0
        %2857 = vmatpush2.bf16.msra.mxu0 0
        %2858 = vmatprep.subr.bf16.mxu0 0
        %2859 = vmatpush2.bf16.msra.mxu0 0
        %2860 = vmatprep.subr.bf16.mxu0 0
        %2861 = vmatpush2.bf16.msra.mxu0 0
        %2862 = vmatprep.subr.bf16.mxu0 0
        %2863 = vmatpush2.bf16.msra.mxu0 0
        %2864 = vmatprep.subr.bf16.mxu0 0
        %2865 = vmatpush2.bf16.msra.mxu0 0
        %2866 = vmatprep.subr.bf16.mxu0 0
        %2867 = vmatpush2.bf16.msra.mxu0 0
        %2868 = vmatprep.mubr.bf16.mxu0 0
        %2869 = vmatmul.mubr.bf16.gmra.mxu0 %v2828
        %v2870 = vpop.f32.mrf.mxu0
        %v2871 = vadd.f32 0.0, %v2870
        %v2872 = vpop.f32.mrf.mxu0
        %v2873 = vpop.f32.mrf.mxu0
        %v2874 = vadd.f32 0.0, %v2873
        %v2875 = vpop.f32.mrf.mxu0
        %2876 = vmatprep.mubr.bf16.mxu0 0
        %2877 = vmatmul.mubr.bf16.gmra.mxu0 %v2831
        %v2878 = vpop.f32.mrf.mxu0
        %v2879 = vadd.f32 0.0, %v2878
        %v2880 = vpop.f32.mrf.mxu0
        %v2881 = vpop.f32.mrf.mxu0
        %v2882 = vpop.f32.mrf.mxu0
        %2883 = vdwg.mxu0
        %2884 = vrot.lane.b32.xlu0 %v2362, 32
        %v2885 = vpop.permute.xlu0 %2884
        %2886 = vrot.lane.b32.xlu0 %v2363, 32
        %v2887 = vpop.permute.xlu0 %2886
        %v2889 = vsel %vm1673, %v2885, 0
        %v2892 = vsel %vm1673, %v2887, 0
        %2894 = vmatprep.subr.bf16.mxu0 0
        %2895 = vmatpush1.bf16.msra.mxu0 0
        %2896 = vmatprep.subr.bf16.mxu0 0
        %2897 = vmatpush1.bf16.msra.mxu0 0
        %2898 = vmatprep.subr.bf16.mxu0 0
        %2899 = vmatpush1.bf16.msra.mxu0 0
        %2900 = vmatprep.subr.bf16.mxu0 0
        %2901 = vmatpush1.bf16.msra.mxu0 0
        %2902 = vmatprep.subr.bf16.mxu0 0
        %2903 = vmatpush1.bf16.msra.mxu0 0
        %2904 = vmatprep.subr.bf16.mxu0 0
        %2905 = vmatpush1.bf16.msra.mxu0 0
        %2906 = vmatprep.subr.bf16.mxu0 0
        %2907 = vmatpush1.bf16.msra.mxu0 %v2403
        %2908 = vmatprep.subr.bf16.mxu0 0
        %2909 = vmatpush1.bf16.msra.mxu0 %v2402
        %2910 = vmatprep.subr.bf16.mxu0 0
        %2911 = vmatpush2.bf16.msra.mxu0 0
        %2912 = vmatprep.subr.bf16.mxu0 0
        %2913 = vmatpush2.bf16.msra.mxu0 0
        %2914 = vmatprep.subr.bf16.mxu0 0
        %2915 = vmatpush2.bf16.msra.mxu0 0
        %2916 = vmatprep.subr.bf16.mxu0 0
        %2917 = vmatpush2.bf16.msra.mxu0 0
        %2918 = vmatprep.subr.bf16.mxu0 0
        %2919 = vmatpush2.bf16.msra.mxu0 0
        %2920 = vmatprep.subr.bf16.mxu0 0
        %2921 = vmatpush2.bf16.msra.mxu0 0
        %2922 = vmatprep.subr.bf16.mxu0 0
        %2923 = vmatpush2.bf16.msra.mxu0 0
        %2924 = vmatprep.subr.bf16.mxu0 0
        %2925 = vmatpush2.bf16.msra.mxu0 0
        %2926 = vmatprep.mubr.bf16.mxu0 0
        %2927 = vmatmul.mubr.bf16.gmra.mxu0 %v2889
        %v2928 = vpop.f32.mrf.mxu0
        %v2929 = vadd.f32 0.0, %v2928
        %v2930 = vpop.f32.mrf.mxu0
        %v2931 = vpop.f32.mrf.mxu0
        %v2932 = vadd.f32 0.0, %v2931
        %v2933 = vpop.f32.mrf.mxu0
        %2934 = vmatprep.mubr.bf16.mxu0 0
        %2935 = vmatmul.mubr.bf16.gmra.mxu0 %v2892
        %v2936 = vpop.f32.mrf.mxu0
        %v2937 = vadd.f32 0.0, %v2936
        %v2938 = vpop.f32.mrf.mxu0
        %v2939 = vpop.f32.mrf.mxu0
        %v2940 = vpop.f32.mrf.mxu0
        %2941 = vdwg.mxu0
        %v2942 = vmul.f32 %v2929, 0.17677669
        %v2943 = vmul.f32 %v2932, 0.17677669
        %v2944 = vmul.f32 %v2937, 0.17677669
        %v2945 = vadd.f32 %v2942, %v1628
        %v2946 = vadd.f32 %v2943, %v1628
        %v2947 = vadd.f32 %v2944, %v1628
        %v2948 = vsel %vm1734, %v2945, -inf
        %2949 = vmax.xlane.f32.xlu0 %v2948
        %v2950 = vpop.xlane.xlu0 %2949
        %v2951 = vsel %vm1734, %v2946, -inf
        %2952 = vmax.xlane.f32.xlu0 %v2951
        %v2953 = vpop.xlane.xlu0 %2952
        %v2954 = vsel %vm1734, %v2947, -inf
        %2955 = vmax.xlane.f32.xlu0 %v2954
        %v2956 = vpop.xlane.xlu0 %2955
        %v2957 = vsub.f32 %v2945, %v2950
        %v2958 = vsub.f32 %v2946, %v2953
        %v2959 = vsub.f32 %v2947, %v2956
        %v2960 = vmul.f32 %v2957, 1.442695
        %v2961 = vpow.pop %v2960
        %v2962 = vmul.f32 %v2958, 1.442695
        %v2963 = vpow.pop %v2962
        %v2964 = vmul.f32 %v2959, 1.442695
        %v2965 = vpow.pop %v2964
        %v2966 = vsel %vm1734, %v2961, 0.0
        %2967 = vadd.xlane.f32.xlu0 %v2966
        %v2968 = vpop.xlane.xlu0 %2967
        %v2969 = vsel %vm1734, %v2963, 0.0
        %2970 = vadd.xlane.f32.xlu0 %v2969
        %v2971 = vpop.xlane.xlu0 %2970
        %v2972 = vsel %vm1734, %v2965, 0.0
        %2973 = vadd.xlane.f32.xlu0 %v2972
        %v2974 = vpop.xlane.xlu0 %2973
        %v2975 = vrcp.pop %v2968
        %v2976 = vmul.f32 %v2961, %v2975
        %v2977 = vrcp.pop %v2971
        %v2978 = vmul.f32 %v2963, %v2977
        %v2979 = vrcp.pop %v2974
        %v2980 = vmul.f32 %v2965, %v2979
        %v2981 = vpack.c.bf16 %v2978, %v2976
        %v2982 = vpack.c.bf16 %v2980, %v2980
        %2983 = vrot.lane.b32.xlu0 %v2404, 32
        %v2984 = vpop.permute.xlu0 %2983
        %2985 = vrot.lane.b32.xlu0 %v2405, 32
        %v2986 = vpop.permute.xlu0 %2985
        %v2989 = vsel %vm1734, %v2981, 0
        %v2992 = vsel %vm1734, %v2982, 0
        %v2995 = vsel %vm1776, %v2986, 0
        %2997 = vmatprep.subr.bf16.mxu0 0
        %2998 = vmatpush1.bf16.msra.mxu0 0
        %2999 = vmatprep.subr.bf16.mxu0 0
        %3000 = vmatpush1.bf16.msra.mxu0 0
        %3001 = vmatprep.subr.bf16.mxu0 0
        %3002 = vmatpush1.bf16.msra.mxu0 0
        %3003 = vmatprep.subr.bf16.mxu0 0
        %3004 = vmatpush1.bf16.msra.mxu0 0
        %3005 = vmatprep.subr.bf16.mxu0 0
        %3006 = vmatpush1.bf16.msra.mxu0 0
        %3007 = vmatprep.subr.bf16.mxu0 0
        %3008 = vmatpush1.bf16.msra.mxu0 0
        %3009 = vmatprep.subr.bf16.mxu0 0
        %3010 = vmatpush1.bf16.msra.mxu0 %v2995
        %3011 = vmatprep.subr.bf16.mxu0 0
        %3012 = vmatpush1.bf16.msra.mxu0 %v2984
        %3013 = vmatprep.subr.bf16.mxu0 0
        %3014 = vmatpush2.bf16.msra.mxu0 0
        %3015 = vmatprep.subr.bf16.mxu0 0
        %3016 = vmatpush2.bf16.msra.mxu0 0
        %3017 = vmatprep.subr.bf16.mxu0 0
        %3018 = vmatpush2.bf16.msra.mxu0 0
        %3019 = vmatprep.subr.bf16.mxu0 0
        %3020 = vmatpush2.bf16.msra.mxu0 0
        %3021 = vmatprep.subr.bf16.mxu0 0
        %3022 = vmatpush2.bf16.msra.mxu0 0
        %3023 = vmatprep.subr.bf16.mxu0 0
        %3024 = vmatpush2.bf16.msra.mxu0 0
        %3025 = vmatprep.subr.bf16.mxu0 0
        %3026 = vmatpush2.bf16.msra.mxu0 0
        %3027 = vmatprep.subr.bf16.mxu0 0
        %3028 = vmatpush2.bf16.msra.mxu0 0
        %3029 = vmatprep.mubr.bf16.mxu0 0
        %3030 = vmatmul.mubr.bf16.gmra.mxu0 %v2989
        %v3031 = vpop.f32.mrf.mxu0
        %v3032 = vadd.f32 0.0, %v3031
        %v3033 = vpop.f32.mrf.mxu0
        %v3034 = vpop.f32.mrf.mxu0
        %v3035 = vadd.f32 0.0, %v3034
        %v3036 = vpop.f32.mrf.mxu0
        %3037 = vmatprep.mubr.bf16.mxu0 0
        %3038 = vmatmul.mubr.bf16.gmra.mxu0 %v2992
        %v3039 = vpop.f32.mrf.mxu0
        %v3040 = vadd.f32 0.0, %v3039
        %v3041 = vpop.f32.mrf.mxu0
        %v3042 = vpop.f32.mrf.mxu0
        %v3043 = vpop.f32.mrf.mxu0
        %3044 = vdwg.mxu0
        %3048 = vrot.lane.b32.xlu0 %v2710, 32
        %v3049 = vpop.permute.xlu0 %3048
        %3050 = vrot.lane.b32.xlu0 %v2713, 32
        %v3051 = vpop.permute.xlu0 %3050
        %3052 = vrot.lane.b32.xlu0 %v2718, 32
        %v3053 = vpop.permute.xlu0 %3052
        %3060 = vrot.lane.b32.xlu0 %v2871, 64
        %v3061 = vpop.permute.xlu0 %3060
        %3062 = vrot.lane.b32.xlu0 %v2874, 64
        %v3063 = vpop.permute.xlu0 %3062
        %3064 = vrot.lane.b32.xlu0 %v2879, 64
        %v3065 = vpop.permute.xlu0 %3064
        %3072 = vrot.lane.b32.xlu0 %v3032, 96
        %v3073 = vpop.permute.xlu0 %3072
        %3074 = vrot.lane.b32.xlu0 %v3035, 96
        %v3075 = vpop.permute.xlu0 %3074
        %3076 = vrot.lane.b32.xlu0 %v3040, 96
        %v3077 = vpop.permute.xlu0 %3076
        %v3081 = vsel %vm1673, %v2545, %v3049
        %v3082 = vsel %vm1673, %v2548, %v3051
        %v3083 = vsel %vm1673, %v2553, %v3053
        %v3084 = vsel %vm2354, %v3081, %v3061
        %v3085 = vsel %vm2354, %v3082, %v3063
        %v3086 = vsel %vm2354, %v3083, %v3065
        %v3087 = vsel %vm2358, %v3084, %v3073
        %v3088 = vsel %vm2358, %v3085, %v3075
        %v3089 = vsel %vm2358, %v3086, %v3077
        %v3090 = vpack.c.bf16 %v2360, %v2359
        %v3091 = vpack.c.bf16 %v3087, %v2361
        %v3092 = vpack.c.bf16 %v3089, %v3088
        %v3093 = vld [vmem:[%s886] sm:$0xf]
        %v3094 = vld [vmem:[%s886 + $0x4] sm:$0xf]
        %v3095 = vld [vmem:[%s886 + $0x8] sm:$0xf]
        %v3096 = vld [vmem:[%s886 + $0xc] sm:$0xf]
        %v3097 = vld [vmem:[%s886 + $0x10] sm:$0xf]
        %v3098 = vld [vmem:[%s886 + $0x14] sm:$0xf]
        %v3099 = vld [vmem:[%s886 + $0x18] sm:$0xf]
        %v3100 = vld [vmem:[%s886 + $0x1c] sm:$0xf]
        %v3101 = vld [vmem:[%s886 + $0x20] sm:$0xf]
        %v3102 = vld [vmem:[%s886 + $0x24] sm:$0xf]
        %v3103 = vld [vmem:[%s886 + $0x28] sm:$0xf]
        %v3104 = vld [vmem:[%s886 + $0x2c] sm:$0xf]
        %v3105 = vld [vmem:[%s886 + $0x30] sm:$0xf]
        %v3106 = vld [vmem:[%s886 + $0x34] sm:$0xf]
        %v3107 = vld [vmem:[%s886 + $0x38] sm:$0xf]
        %v3108 = vld [vmem:[%s886 + $0x3c] sm:$0xf]
        %v3109 = vld [vmem:[%s1015] sm:$0x1]
        %v3111 = vlaneseq
        %v3112 = vshrl.u32 %v3111, 7
        %v3113 = vsub.s32 0, %v3112
        %v3114 = vrot.slane %v3109, %v3113
        %v3132 = vunpack.c.l.b16 %v3093
        %v3133 = vunpack.c.l.b16 %v3094
        %v3134 = vunpack.c.l.b16 %v3095
        %v3135 = vunpack.c.l.b16 %v3096
        %v3136 = vunpack.c.l.b16 %v3097
        %v3137 = vunpack.c.l.b16 %v3098
        %v3138 = vunpack.c.l.b16 %v3099
        %v3139 = vunpack.c.l.b16 %v3100
        %v3140 = vunpack.c.l.b16 %v3101
        %v3141 = vunpack.c.l.b16 %v3102
        %v3142 = vunpack.c.l.b16 %v3103
        %v3143 = vunpack.c.l.b16 %v3104
        %v3144 = vunpack.c.l.b16 %v3105
        %v3145 = vunpack.c.l.b16 %v3106
        %v3146 = vunpack.c.l.b16 %v3107
        %v3147 = vunpack.c.l.b16 %v3108
        %v3148 = vpack.c.b16 %v3133, %v3132
        %v3149 = vpack.c.b16 %v3135, %v3134
        %v3150 = vpack.c.b16 %v3137, %v3136
        %v3151 = vpack.c.b16 %v3139, %v3138
        %v3152 = vpack.c.b16 %v3141, %v3140
        %v3153 = vpack.c.b16 %v3143, %v3142
        %v3154 = vpack.c.b16 %v3145, %v3144
        %v3155 = vpack.c.b16 %v3147, %v3146
        %3164 = vmatprep.subr.bf16.mxu0 0
        %3165 = vmatpush1.bf16.msra.mxu0 %v3155
        %3166 = vmatprep.subr.bf16.mxu0 0
        %3167 = vmatpush1.bf16.msra.mxu0 %v3154
        %3168 = vmatprep.subr.bf16.mxu0 0
        %3169 = vmatpush1.bf16.msra.mxu0 %v3153
        %3170 = vmatprep.subr.bf16.mxu0 0
        %3171 = vmatpush1.bf16.msra.mxu0 %v3152
        %3172 = vmatprep.subr.bf16.mxu0 0
        %3173 = vmatpush1.bf16.msra.mxu0 %v3151
        %3174 = vmatprep.subr.bf16.mxu0 0
        %3175 = vmatpush1.bf16.msra.mxu0 %v3150
        %3176 = vmatprep.subr.bf16.mxu0 0
        %3177 = vmatpush1.bf16.msra.mxu0 %v3149
        %3178 = vmatprep.subr.bf16.mxu0 0
        %3179 = vmatpush1.bf16.msra.mxu0 %v3148
        %3180 = vmatprep.subr.bf16.mxu0 0
        %3181 = vmatpush2.bf16.msra.mxu0 0
        %3182 = vmatprep.subr.bf16.mxu0 0
        %3183 = vmatpush2.bf16.msra.mxu0 0
        %3184 = vmatprep.subr.bf16.mxu0 0
        %3185 = vmatpush2.bf16.msra.mxu0 0
        %3186 = vmatprep.subr.bf16.mxu0 0
        %3187 = vmatpush2.bf16.msra.mxu0 0
        %3188 = vmatprep.subr.bf16.mxu0 0
        %3189 = vmatpush2.bf16.msra.mxu0 0
        %3190 = vmatprep.subr.bf16.mxu0 0
        %3191 = vmatpush2.bf16.msra.mxu0 0
        %3192 = vmatprep.subr.bf16.mxu0 0
        %3193 = vmatpush2.bf16.msra.mxu0 0
        %3194 = vmatprep.subr.bf16.mxu0 0
        %3195 = vmatpush2.bf16.msra.mxu0 0
        %3196 = vmatprep.mubr.bf16.mxu0 0
        %3197 = vmatmul.mubr.bf16.gmra.mxu0 %v3090
        %v3198 = vpop.f32.mrf.mxu0
        %v3199 = vadd.f32 %v3114, %v3198
        %v3200 = vpop.f32.mrf.mxu0
        %v3201 = vpop.f32.mrf.mxu0
        %v3202 = vadd.f32 %v3114, %v3201
        %v3203 = vpop.f32.mrf.mxu0
        %3204 = vmatprep.mubr.bf16.mxu0 0
        %3205 = vmatmul.mubr.bf16.gmra.mxu0 %v3091
        %v3206 = vpop.f32.mrf.mxu0
        %v3207 = vadd.f32 %v3114, %v3206
        %v3208 = vpop.f32.mrf.mxu0
        %v3209 = vpop.f32.mrf.mxu0
        %v3210 = vadd.f32 %v3114, %v3209
        %v3211 = vpop.f32.mrf.mxu0
        %3212 = vmatprep.mubr.bf16.mxu0 0
        %3213 = vmatmul.mubr.bf16.gmra.mxu0 %v3092
        %v3214 = vpop.f32.mrf.mxu0
        %v3215 = vadd.f32 %v3114, %v3214
        %v3216 = vpop.f32.mrf.mxu0
        %v3217 = vpop.f32.mrf.mxu0
        %v3218 = vadd.f32 %v3114, %v3217
        %v3219 = vpop.f32.mrf.mxu0
        %3220 = vdwg.mxu0
        %v3221 = vadd.f32 %v1226, %v3199
        %v3222 = vadd.f32 %v1227, %v3202
        %v3223 = vadd.f32 %v1228, %v3207
        %v3224 = vadd.f32 %v1229, %v3210
        %v3225 = vadd.f32 %v1230, %v3215
        %v3226 = vadd.f32 %v1231, %v3218
        %v3227 = vld [vmem:[%s1018] sm:$0x1]
        %v3228 = vld [vmem:[%s1021] sm:$0x1]
        %3229 = vadd.xlane.f32.xlu0 %v3221
        %v3230 = vpop.xlane.xlu0 %3229
        %3231 = vadd.xlane.f32.xlu0 %v3222
        %v3232 = vpop.xlane.xlu0 %3231
        %3233 = vadd.xlane.f32.xlu0 %v3223
        %v3234 = vpop.xlane.xlu0 %3233
        %3235 = vadd.xlane.f32.xlu0 %v3224
        %v3236 = vpop.xlane.xlu0 %3235
        %3237 = vadd.xlane.f32.xlu0 %v3225
        %v3238 = vpop.xlane.xlu0 %3237
        %3239 = vadd.xlane.f32.xlu0 %v3226
        %v3240 = vpop.xlane.xlu0 %3239
        %v3241 = vmul.f32 %v3230, %v1246
        %v3242 = vmul.f32 %v3232, %v1246
        %v3243 = vmul.f32 %v3234, %v1246
        %v3244 = vmul.f32 %v3236, %v1246
        %v3245 = vmul.f32 %v3238, %v1246
        %v3246 = vmul.f32 %v3240, %v1246
        %v3247 = vsub.f32 %v3221, %v3241
        %v3248 = vsub.f32 %v3222, %v3242
        %v3249 = vsub.f32 %v3223, %v3243
        %v3250 = vsub.f32 %v3224, %v3244
        %v3251 = vsub.f32 %v3225, %v3245
        %v3252 = vsub.f32 %v3226, %v3246
        %v3253 = vmul.f32 %v3247, %v3247
        %v3254 = vmul.f32 %v3248, %v3248
        %v3255 = vmul.f32 %v3249, %v3249
        %v3256 = vmul.f32 %v3250, %v3250
        %v3257 = vmul.f32 %v3251, %v3251
        %v3258 = vmul.f32 %v3252, %v3252
        %3259 = vadd.xlane.f32.xlu0 %v3253
        %v3260 = vpop.xlane.xlu0 %3259
        %3261 = vadd.xlane.f32.xlu0 %v3254
        %v3262 = vpop.xlane.xlu0 %3261
        %3263 = vadd.xlane.f32.xlu0 %v3255
        %v3264 = vpop.xlane.xlu0 %3263
        %3265 = vadd.xlane.f32.xlu0 %v3256
        %v3266 = vpop.xlane.xlu0 %3265
        %3267 = vadd.xlane.f32.xlu0 %v3257
        %v3268 = vpop.xlane.xlu0 %3267
        %3269 = vadd.xlane.f32.xlu0 %v3258
        %v3270 = vpop.xlane.xlu0 %3269
        %v3271 = vmul.f32 %v3260, %v1246
        %v3272 = vmul.f32 %v3262, %v1246
        %v3273 = vmul.f32 %v3264, %v1246
        %v3274 = vmul.f32 %v3266, %v1246
        %v3275 = vmul.f32 %v3268, %v1246
        %v3276 = vmul.f32 %v3270, %v1246
        %v3277 = vadd.f32 %v3271, 1e-06
        %v3278 = vadd.f32 %v3272, 1e-06
        %v3279 = vadd.f32 %v3273, 1e-06
        %v3280 = vadd.f32 %v3274, 1e-06
        %v3281 = vadd.f32 %v3275, 1e-06
        %v3282 = vadd.f32 %v3276, 1e-06
        %v3283 = vrsqrt.pop %v3277
        %v3284 = vrsqrt.pop %v3278
        %v3285 = vrsqrt.pop %v3279
        %v3286 = vrsqrt.pop %v3280
        %v3287 = vrsqrt.pop %v3281
        %v3288 = vrsqrt.pop %v3282
        %v3289 = vmul.f32 %v3247, %v3283
        %v3290 = vmul.f32 %v3248, %v3284
        %v3291 = vmul.f32 %v3249, %v3285
        %v3292 = vmul.f32 %v3250, %v3286
        %v3293 = vmul.f32 %v3251, %v3287
        %v3294 = vmul.f32 %v3252, %v3288
        %v3296 = vlaneseq
        %v3297 = vshrl.u32 %v3296, 7
        %v3298 = vsub.s32 0, %v3297
        %v3299 = vrot.slane %v3227, %v3298
        %v3301 = vmul.f32 %v3289, %v3299
        %v3302 = vmul.f32 %v3290, %v3299
        %v3303 = vmul.f32 %v3291, %v3299
        %v3304 = vmul.f32 %v3292, %v3299
        %v3305 = vmul.f32 %v3293, %v3299
        %v3306 = vmul.f32 %v3294, %v3299
        %v3308 = vlaneseq
        %v3309 = vshrl.u32 %v3308, 7
        %v3310 = vsub.s32 0, %v3309
        %v3311 = vrot.slane %v3228, %v3310
        %v3313 = vadd.f32 %v3301, %v3311
        %v3314 = vadd.f32 %v3302, %v3311
        %v3315 = vadd.f32 %v3303, %v3311
        %v3316 = vadd.f32 %v3304, %v3311
        %v3317 = vadd.f32 %v3305, %v3311
        %v3318 = vadd.f32 %v3306, %v3311
        %v3319 = vpack.c.bf16 %v3314, %v3313
        %v3320 = vpack.c.bf16 %v3316, %v3315
        %v3321 = vpack.c.bf16 %v3318, %v3317
        %v3322 = vld [vmem:[%s895] sm:$0xff]
        %v3323 = vld [vmem:[%s895 + $0x8] sm:$0xff]
        %v3324 = vld [vmem:[%s895 + $0x10] sm:$0xff]
        %v3325 = vld [vmem:[%s895 + $0x18] sm:$0xff]
        %v3326 = vld [vmem:[%s895 + $0x20] sm:$0xff]
        %v3327 = vld [vmem:[%s895 + $0x28] sm:$0xff]
        %v3328 = vld [vmem:[%s895 + $0x30] sm:$0xff]
        %v3329 = vld [vmem:[%s895 + $0x38] sm:$0xff]
        %v3330 = vld [vmem:[%s895 + $0x40] sm:$0xff]
        %v3331 = vld [vmem:[%s895 + $0x48] sm:$0xff]
        %v3332 = vld [vmem:[%s895 + $0x50] sm:$0xff]
        %v3333 = vld [vmem:[%s895 + $0x58] sm:$0xff]
        %v3334 = vld [vmem:[%s895 + $0x60] sm:$0xff]
        %v3335 = vld [vmem:[%s895 + $0x68] sm:$0xff]
        %v3336 = vld [vmem:[%s895 + $0x70] sm:$0xff]
        %v3337 = vld [vmem:[%s895 + $0x78] sm:$0xff]
        %v3338 = vld [vmem:[%s1025] sm:$0x3]
        %v3340 = vlaneseq
        %v3341 = vshrl.u32 %v3340, 7
        %v3342 = vsub.s32 0, %v3341
        %v3343 = vrot.slane %v3338, %v3342
        %v3344 = vlaneseq
        %v3345 = vshrl.u32 %v3344, 7
        %v3346 = vsub.s32 1, %v3345
        %v3347 = vrot.slane %v3338, %v3346
        %v3366 = vunpack.c.l.b16 %v3322
        %v3367 = vunpack.c.h.b16 %v3322
        %v3368 = vunpack.c.l.b16 %v3323
        %v3369 = vunpack.c.h.b16 %v3323
        %v3370 = vunpack.c.l.b16 %v3324
        %v3371 = vunpack.c.h.b16 %v3324
        %v3372 = vunpack.c.l.b16 %v3325
        %v3373 = vunpack.c.h.b16 %v3325
        %v3374 = vunpack.c.l.b16 %v3326
        %v3375 = vunpack.c.h.b16 %v3326
        %v3376 = vunpack.c.l.b16 %v3327
        %v3377 = vunpack.c.h.b16 %v3327
        %v3378 = vunpack.c.l.b16 %v3328
        %v3379 = vunpack.c.h.b16 %v3328
        %v3380 = vunpack.c.l.b16 %v3329
        %v3381 = vunpack.c.h.b16 %v3329
        %v3382 = vunpack.c.l.b16 %v3330
        %v3383 = vunpack.c.h.b16 %v3330
        %v3384 = vunpack.c.l.b16 %v3331
        %v3385 = vunpack.c.h.b16 %v3331
        %v3386 = vunpack.c.l.b16 %v3332
        %v3387 = vunpack.c.h.b16 %v3332
        %v3388 = vunpack.c.l.b16 %v3333
        %v3389 = vunpack.c.h.b16 %v3333
        %v3390 = vunpack.c.l.b16 %v3334
        %v3391 = vunpack.c.h.b16 %v3334
        %v3392 = vunpack.c.l.b16 %v3335
        %v3393 = vunpack.c.h.b16 %v3335
        %v3394 = vunpack.c.l.b16 %v3336
        %v3395 = vunpack.c.h.b16 %v3336
        %v3396 = vunpack.c.l.b16 %v3337
        %v3397 = vunpack.c.h.b16 %v3337
        %v3398 = vpack.c.b16 %v3368, %v3366
        %v3399 = vpack.c.b16 %v3369, %v3367
        %v3400 = vpack.c.b16 %v3372, %v3370
        %v3401 = vpack.c.b16 %v3373, %v3371
        %v3402 = vpack.c.b16 %v3376, %v3374
        %v3403 = vpack.c.b16 %v3377, %v3375
        %v3404 = vpack.c.b16 %v3380, %v3378
        %v3405 = vpack.c.b16 %v3381, %v3379
        %v3406 = vpack.c.b16 %v3384, %v3382
        %v3407 = vpack.c.b16 %v3385, %v3383
        %v3408 = vpack.c.b16 %v3388, %v3386
        %v3409 = vpack.c.b16 %v3389, %v3387
        %v3410 = vpack.c.b16 %v3392, %v3390
        %v3411 = vpack.c.b16 %v3393, %v3391
        %v3412 = vpack.c.b16 %v3396, %v3394
        %v3413 = vpack.c.b16 %v3397, %v3395
        %3430 = vmatprep.subr.bf16.mxu0 %v3413
        %3431 = vmatpush1.bf16.msra.mxu0 %v3412
        %3432 = vmatprep.subr.bf16.mxu0 %v3411
        %3433 = vmatpush1.bf16.msra.mxu0 %v3410
        %3434 = vmatprep.subr.bf16.mxu0 %v3409
        %3435 = vmatpush1.bf16.msra.mxu0 %v3408
        %3436 = vmatprep.subr.bf16.mxu0 %v3407
        %3437 = vmatpush1.bf16.msra.mxu0 %v3406
        %3438 = vmatprep.subr.bf16.mxu0 %v3405
        %3439 = vmatpush1.bf16.msra.mxu0 %v3404
        %3440 = vmatprep.subr.bf16.mxu0 %v3403
        %3441 = vmatpush1.bf16.msra.mxu0 %v3402
        %3442 = vmatprep.subr.bf16.mxu0 %v3401
        %3443 = vmatpush1.bf16.msra.mxu0 %v3400
        %3444 = vmatprep.subr.bf16.mxu0 %v3399
        %3445 = vmatpush1.bf16.msra.mxu0 %v3398
        %3446 = vmatprep.subr.bf16.mxu0 0
        %3447 = vmatpush2.bf16.msra.mxu0 0
        %3448 = vmatprep.subr.bf16.mxu0 0
        %3449 = vmatpush2.bf16.msra.mxu0 0
        %3450 = vmatprep.subr.bf16.mxu0 0
        %3451 = vmatpush2.bf16.msra.mxu0 0
        %3452 = vmatprep.subr.bf16.mxu0 0
        %3453 = vmatpush2.bf16.msra.mxu0 0
        %3454 = vmatprep.subr.bf16.mxu0 0
        %3455 = vmatpush2.bf16.msra.mxu0 0
        %3456 = vmatprep.subr.bf16.mxu0 0
        %3457 = vmatpush2.bf16.msra.mxu0 0
        %3458 = vmatprep.subr.bf16.mxu0 0
        %3459 = vmatpush2.bf16.msra.mxu0 0
        %3460 = vmatprep.subr.bf16.mxu0 0
        %3461 = vmatpush2.bf16.msra.mxu0 0
        %3462 = vmatprep.mubr.bf16.mxu0 0
        %3463 = vmatmul.mubr.bf16.gmra.mxu0 %v3319
        %v3464 = vpop.f32.mrf.mxu0
        %v3465 = vadd.f32 %v3343, %v3464
        %v3466 = vpop.f32.mrf.mxu0
        %v3467 = vadd.f32 %v3347, %v3466
        %v3468 = vpop.f32.mrf.mxu0
        %v3469 = vadd.f32 %v3343, %v3468
        %v3470 = vpop.f32.mrf.mxu0
        %v3471 = vadd.f32 %v3347, %v3470
        %3472 = vmatprep.mubr.bf16.mxu0 0
        %3473 = vmatmul.mubr.bf16.gmra.mxu0 %v3320
        %v3474 = vpop.f32.mrf.mxu0
        %v3475 = vadd.f32 %v3343, %v3474
        %v3476 = vpop.f32.mrf.mxu0
        %v3477 = vadd.f32 %v3347, %v3476
        %v3478 = vpop.f32.mrf.mxu0
        %v3479 = vadd.f32 %v3343, %v3478
        %v3480 = vpop.f32.mrf.mxu0
        %v3481 = vadd.f32 %v3347, %v3480
        %3482 = vmatprep.mubr.bf16.mxu0 0
        %3483 = vmatmul.mubr.bf16.gmra.mxu0 %v3321
        %v3484 = vpop.f32.mrf.mxu0
        %v3485 = vadd.f32 %v3343, %v3484
        %v3486 = vpop.f32.mrf.mxu0
        %v3487 = vadd.f32 %v3347, %v3486
        %v3488 = vpop.f32.mrf.mxu0
        %v3489 = vadd.f32 %v3343, %v3488
        %v3490 = vpop.f32.mrf.mxu0
        %v3491 = vadd.f32 %v3347, %v3490
        %3492 = vdwg.mxu0
        %v3493 = vmul.f32 %v3465, 0.5
        %v3494 = vmul.f32 %v3467, 0.5
        %v3495 = vmul.f32 %v3469, 0.5
        %v3496 = vmul.f32 %v3471, 0.5
        %v3497 = vmul.f32 %v3475, 0.5
        %v3498 = vmul.f32 %v3477, 0.5
        %v3499 = vmul.f32 %v3479, 0.5
        %v3500 = vmul.f32 %v3481, 0.5
        %v3501 = vmul.f32 %v3485, 0.5
        %v3502 = vmul.f32 %v3487, 0.5
        %v3503 = vmul.f32 %v3489, 0.5
        %v3504 = vmul.f32 %v3491, 0.5
        %v3505 = vmul.f32 %v3465, 0.044715
        %v3506 = vmul.f32 %v3467, 0.044715
        %v3507 = vmul.f32 %v3469, 0.044715
        %v3508 = vmul.f32 %v3471, 0.044715
        %v3509 = vmul.f32 %v3475, 0.044715
        %v3510 = vmul.f32 %v3477, 0.044715
        %v3511 = vmul.f32 %v3479, 0.044715
        %v3512 = vmul.f32 %v3481, 0.044715
        %v3513 = vmul.f32 %v3485, 0.044715
        %v3514 = vmul.f32 %v3487, 0.044715
        %v3515 = vmul.f32 %v3489, 0.044715
        %v3516 = vmul.f32 %v3491, 0.044715
        %v3517 = vmul.f32 %v3505, %v3465
        %v3518 = vmul.f32 %v3506, %v3467
        %v3519 = vmul.f32 %v3507, %v3469
        %v3520 = vmul.f32 %v3508, %v3471
        %v3521 = vmul.f32 %v3509, %v3475
        %v3522 = vmul.f32 %v3510, %v3477
        %v3523 = vmul.f32 %v3511, %v3479
        %v3524 = vmul.f32 %v3512, %v3481
        %v3525 = vmul.f32 %v3513, %v3485
        %v3526 = vmul.f32 %v3514, %v3487
        %v3527 = vmul.f32 %v3515, %v3489
        %v3528 = vmul.f32 %v3516, %v3491
        %v3529 = vmul.f32 %v3517, %v3465
        %v3530 = vmul.f32 %v3518, %v3467
        %v3531 = vmul.f32 %v3519, %v3469
        %v3532 = vmul.f32 %v3520, %v3471
        %v3533 = vmul.f32 %v3521, %v3475
        %v3534 = vmul.f32 %v3522, %v3477
        %v3535 = vmul.f32 %v3523, %v3479
        %v3536 = vmul.f32 %v3524, %v3481
        %v3537 = vmul.f32 %v3525, %v3485
        %v3538 = vmul.f32 %v3526, %v3487
        %v3539 = vmul.f32 %v3527, %v3489
        %v3540 = vmul.f32 %v3528, %v3491
        %v3541 = vadd.f32 %v3465, %v3529
        %v3542 = vadd.f32 %v3467, %v3530
        %v3543 = vadd.f32 %v3469, %v3531
        %v3544 = vadd.f32 %v3471, %v3532
        %v3545 = vadd.f32 %v3475, %v3533
        %v3546 = vadd.f32 %v3477, %v3534
        %v3547 = vadd.f32 %v3479, %v3535
        %v3548 = vadd.f32 %v3481, %v3536
        %v3549 = vadd.f32 %v3485, %v3537
        %v3550 = vadd.f32 %v3487, %v3538
        %v3551 = vadd.f32 %v3489, %v3539
        %v3552 = vadd.f32 %v3491, %v3540
        %v3553 = vmul.f32 %v3541, 0.7978846
        %v3554 = vmul.f32 %v3542, 0.7978846
        %v3555 = vmul.f32 %v3543, 0.7978846
        %v3556 = vmul.f32 %v3544, 0.7978846
        %v3557 = vmul.f32 %v3545, 0.7978846
        %v3558 = vmul.f32 %v3546, 0.7978846
        %v3559 = vmul.f32 %v3547, 0.7978846
        %v3560 = vmul.f32 %v3548, 0.7978846
        %v3561 = vmul.f32 %v3549, 0.7978846
        %v3562 = vmul.f32 %v3550, 0.7978846
        %v3563 = vmul.f32 %v3551, 0.7978846
        %v3564 = vmul.f32 %v3552, 0.7978846
        %v3565 = vtanh.pop %v3553
        %v3566 = vtanh.pop %v3554
        %v3567 = vtanh.pop %v3555
        %v3568 = vtanh.pop %v3556
        %v3569 = vtanh.pop %v3557
        %v3570 = vtanh.pop %v3558
        %v3571 = vtanh.pop %v3559
        %v3572 = vtanh.pop %v3560
        %v3573 = vtanh.pop %v3561
        %v3574 = vtanh.pop %v3562
        %v3575 = vtanh.pop %v3563
        %v3576 = vtanh.pop %v3564
        %v3577 = vadd.f32 %v3565, 1.0
        %v3578 = vadd.f32 %v3566, 1.0
        %v3579 = vadd.f32 %v3567, 1.0
        %v3580 = vadd.f32 %v3568, 1.0
        %v3581 = vadd.f32 %v3569, 1.0
        %v3582 = vadd.f32 %v3570, 1.0
        %v3583 = vadd.f32 %v3571, 1.0
        %v3584 = vadd.f32 %v3572, 1.0
        %v3585 = vadd.f32 %v3573, 1.0
        %v3586 = vadd.f32 %v3574, 1.0
        %v3587 = vadd.f32 %v3575, 1.0
        %v3588 = vadd.f32 %v3576, 1.0
        %v3589 = vmul.f32 %v3493, %v3577
        %v3590 = vmul.f32 %v3494, %v3578
        %v3591 = vmul.f32 %v3495, %v3579
        %v3592 = vmul.f32 %v3496, %v3580
        %v3593 = vmul.f32 %v3497, %v3581
        %v3594 = vmul.f32 %v3498, %v3582
        %v3595 = vmul.f32 %v3499, %v3583
        %v3596 = vmul.f32 %v3500, %v3584
        %v3597 = vmul.f32 %v3501, %v3585
        %v3598 = vmul.f32 %v3502, %v3586
        %v3599 = vmul.f32 %v3503, %v3587
        %v3600 = vmul.f32 %v3504, %v3588
        %v3601 = vpack.c.bf16 %v3591, %v3589
        %v3602 = vpack.c.bf16 %v3592, %v3590
        %v3603 = vpack.c.bf16 %v3595, %v3593
        %v3604 = vpack.c.bf16 %v3596, %v3594
        %v3605 = vpack.c.bf16 %v3599, %v3597
        %v3606 = vpack.c.bf16 %v3600, %v3598
        %v3607 = vld [vmem:[%s904] sm:$0xf]
        %v3608 = vld [vmem:[%s904 + $0x4] sm:$0xf]
        %v3609 = vld [vmem:[%s904 + $0x8] sm:$0xf]
        %v3610 = vld [vmem:[%s904 + $0xc] sm:$0xf]
        %v3611 = vld [vmem:[%s904 + $0x10] sm:$0xf]
        %v3612 = vld [vmem:[%s904 + $0x14] sm:$0xf]
        %v3613 = vld [vmem:[%s904 + $0x18] sm:$0xf]
        %v3614 = vld [vmem:[%s904 + $0x1c] sm:$0xf]
        %v3615 = vld [vmem:[%s904 + $0x20] sm:$0xf]
        %v3616 = vld [vmem:[%s904 + $0x24] sm:$0xf]
        %v3617 = vld [vmem:[%s904 + $0x28] sm:$0xf]
        %v3618 = vld [vmem:[%s904 + $0x2c] sm:$0xf]
        %v3619 = vld [vmem:[%s904 + $0x30] sm:$0xf]
        %v3620 = vld [vmem:[%s904 + $0x34] sm:$0xf]
        %v3621 = vld [vmem:[%s904 + $0x38] sm:$0xf]
        %v3622 = vld [vmem:[%s904 + $0x3c] sm:$0xf]
        %v3623 = vld [vmem:[%s904 + $0x40] sm:$0xf]
        %v3624 = vld [vmem:[%s904 + $0x44] sm:$0xf]
        %v3625 = vld [vmem:[%s904 + $0x48] sm:$0xf]
        %v3626 = vld [vmem:[%s904 + $0x4c] sm:$0xf]
        %v3627 = vld [vmem:[%s904 + $0x50] sm:$0xf]
        %v3628 = vld [vmem:[%s904 + $0x54] sm:$0xf]
        %v3629 = vld [vmem:[%s904 + $0x58] sm:$0xf]
        %v3630 = vld [vmem:[%s904 + $0x5c] sm:$0xf]
        %v3631 = vld [vmem:[%s904 + $0x60] sm:$0xf]
        %v3632 = vld [vmem:[%s904 + $0x64] sm:$0xf]
        %v3633 = vld [vmem:[%s904 + $0x68] sm:$0xf]
        %v3634 = vld [vmem:[%s904 + $0x6c] sm:$0xf]
        %v3635 = vld [vmem:[%s904 + $0x70] sm:$0xf]
        %v3636 = vld [vmem:[%s904 + $0x74] sm:$0xf]
        %v3637 = vld [vmem:[%s904 + $0x78] sm:$0xf]
        %v3638 = vld [vmem:[%s904 + $0x7c] sm:$0xf]
        %v3639 = vld [vmem:[%s1028] sm:$0x1]
        %v3641 = vlaneseq
        %v3642 = vshrl.u32 %v3641, 7
        %v3643 = vsub.s32 0, %v3642
        %v3644 = vrot.slane %v3639, %v3643
        %v3678 = vunpack.c.l.b16 %v3607
        %v3679 = vunpack.c.l.b16 %v3608
        %v3680 = vunpack.c.l.b16 %v3609
        %v3681 = vunpack.c.l.b16 %v3610
        %v3682 = vunpack.c.l.b16 %v3611
        %v3683 = vunpack.c.l.b16 %v3612
        %v3684 = vunpack.c.l.b16 %v3613
        %v3685 = vunpack.c.l.b16 %v3614
        %v3686 = vunpack.c.l.b16 %v3615
        %v3687 = vunpack.c.l.b16 %v3616
        %v3688 = vunpack.c.l.b16 %v3617
        %v3689 = vunpack.c.l.b16 %v3618
        %v3690 = vunpack.c.l.b16 %v3619
        %v3691 = vunpack.c.l.b16 %v3620
        %v3692 = vunpack.c.l.b16 %v3621
        %v3693 = vunpack.c.l.b16 %v3622
        %v3694 = vunpack.c.l.b16 %v3623
        %v3695 = vunpack.c.l.b16 %v3624
        %v3696 = vunpack.c.l.b16 %v3625
        %v3697 = vunpack.c.l.b16 %v3626
        %v3698 = vunpack.c.l.b16 %v3627
        %v3699 = vunpack.c.l.b16 %v3628
        %v3700 = vunpack.c.l.b16 %v3629
        %v3701 = vunpack.c.l.b16 %v3630
        %v3702 = vunpack.c.l.b16 %v3631
        %v3703 = vunpack.c.l.b16 %v3632
        %v3704 = vunpack.c.l.b16 %v3633
        %v3705 = vunpack.c.l.b16 %v3634
        %v3706 = vunpack.c.l.b16 %v3635
        %v3707 = vunpack.c.l.b16 %v3636
        %v3708 = vunpack.c.l.b16 %v3637
        %v3709 = vunpack.c.l.b16 %v3638
        %v3710 = vpack.c.b16 %v3679, %v3678
        %v3711 = vpack.c.b16 %v3681, %v3680
        %v3712 = vpack.c.b16 %v3683, %v3682
        %v3713 = vpack.c.b16 %v3685, %v3684
        %v3714 = vpack.c.b16 %v3687, %v3686
        %v3715 = vpack.c.b16 %v3689, %v3688
        %v3716 = vpack.c.b16 %v3691, %v3690
        %v3717 = vpack.c.b16 %v3693, %v3692
        %v3718 = vpack.c.b16 %v3695, %v3694
        %v3719 = vpack.c.b16 %v3697, %v3696
        %v3720 = vpack.c.b16 %v3699, %v3698
        %v3721 = vpack.c.b16 %v3701, %v3700
        %v3722 = vpack.c.b16 %v3703, %v3702
        %v3723 = vpack.c.b16 %v3705, %v3704
        %v3724 = vpack.c.b16 %v3707, %v3706
        %v3725 = vpack.c.b16 %v3709, %v3708
        %3742 = vmatprep.subr.bf16.mxu0 0
        %3743 = vmatpush1.bf16.msra.mxu0 %v3717
        %3744 = vmatprep.subr.bf16.mxu0 0
        %3745 = vmatpush1.bf16.msra.mxu0 %v3716
        %3746 = vmatprep.subr.bf16.mxu0 0
        %3747 = vmatpush1.bf16.msra.mxu0 %v3715
        %3748 = vmatprep.subr.bf16.mxu0 0
        %3749 = vmatpush1.bf16.msra.mxu0 %v3714
        %3750 = vmatprep.subr.bf16.mxu0 0
        %3751 = vmatpush1.bf16.msra.mxu0 %v3713
        %3752 = vmatprep.subr.bf16.mxu0 0
        %3753 = vmatpush1.bf16.msra.mxu0 %v3712
        %3754 = vmatprep.subr.bf16.mxu0 0
        %3755 = vmatpush1.bf16.msra.mxu0 %v3711
        %3756 = vmatprep.subr.bf16.mxu0 0
        %3757 = vmatpush1.bf16.msra.mxu0 %v3710
        %3758 = vmatprep.subr.bf16.mxu0 0
        %3759 = vmatpush2.bf16.msra.mxu0 %v3725
        %3760 = vmatprep.subr.bf16.mxu0 0
        %3761 = vmatpush2.bf16.msra.mxu0 %v3724
        %3762 = vmatprep.subr.bf16.mxu0 0
        %3763 = vmatpush2.bf16.msra.mxu0 %v3723
        %3764 = vmatprep.subr.bf16.mxu0 0
        %3765 = vmatpush2.bf16.msra.mxu0 %v3722
        %3766 = vmatprep.subr.bf16.mxu0 0
        %3767 = vmatpush2.bf16.msra.mxu0 %v3721
        %3768 = vmatprep.subr.bf16.mxu0 0
        %3769 = vmatpush2.bf16.msra.mxu0 %v3720
        %3770 = vmatprep.subr.bf16.mxu0 0
        %3771 = vmatpush2.bf16.msra.mxu0 %v3719
        %3772 = vmatprep.subr.bf16.mxu0 0
        %3773 = vmatpush2.bf16.msra.mxu0 %v3718
        %3774 = vmatprep.mubr.bf16.mxu0 %v3602
        %3775 = vmatmul.mubr.bf16.gmra.mxu0 %v3601
        %v3776 = vpop.f32.mrf.mxu0
        %v3777 = vadd.f32 %v3644, %v3776
        %v3778 = vpop.f32.mrf.mxu0
        %v3779 = vpop.f32.mrf.mxu0
        %v3780 = vadd.f32 %v3644, %v3779
        %v3781 = vpop.f32.mrf.mxu0
        %3782 = vmatprep.mubr.bf16.mxu0 %v3604
        %3783 = vmatmul.mubr.bf16.gmra.mxu0 %v3603
        %v3784 = vpop.f32.mrf.mxu0
        %v3785 = vadd.f32 %v3644, %v3784
        %v3786 = vpop.f32.mrf.mxu0
        %v3787 = vpop.f32.mrf.mxu0
        %v3788 = vadd.f32 %v3644, %v3787
        %v3789 = vpop.f32.mrf.mxu0
        %3790 = vmatprep.mubr.bf16.mxu0 %v3606
        %3791 = vmatmul.mubr.bf16.gmra.mxu0 %v3605
        %v3792 = vpop.f32.mrf.mxu0
        %v3793 = vadd.f32 %v3644, %v3792
        %v3794 = vpop.f32.mrf.mxu0
        %v3795 = vpop.f32.mrf.mxu0
        %v3796 = vadd.f32 %v3644, %v3795
        %v3797 = vpop.f32.mrf.mxu0
        %3798 = vdwg.mxu0
        %v3799 = vadd.f32 %v3221, %v3777
        %v3800 = vadd.f32 %v3222, %v3780
        %v3801 = vadd.f32 %v3223, %v3785
        %v3802 = vadd.f32 %v3224, %v3788
        %v3803 = vadd.f32 %v3225, %v3793
        %v3804 = vadd.f32 %v3226, %v3796
        %3805 = vst [vmem:[#allocation2] sm:$0xff] %v3799
        %3806 = vst [vmem:[#allocation2 + $0x8] sm:$0xff] %v3800
        %3807 = vst [vmem:[#allocation2 + $0x10] sm:$0xff] %v3801
        %3808 = vst [vmem:[#allocation2 + $0x18] sm:$0xff] %v3802
        %3809 = vst [vmem:[#allocation2 + $0x20] sm:$0xff] %v3803
        %3810 = vst [vmem:[#allocation2 + $0x28] sm:$0xff] %v3804
        %p3811 = scmp.eq.s32.totalorder %s38, 1
        // Predicated region
        $region161: #{tpu_custom_call.1} parent=107 // pred_check
          %p3812 = pneg %p3811
        $region162: #{tpu_custom_call.1} parent=107 // pred_check_branch
          %3814 = sbr.rel (%p3812) target = $region164
        $region163: #{tpu_custom_call.1} parent=107 // pred_region
          %v3815 = vld [vmem:[#allocation2] sm:$0xff]
          %v3816 = vld [vmem:[#allocation2 + $0x8] sm:$0xff]
          %v3817 = vld [vmem:[#allocation2 + $0x10] sm:$0xff]
          %v3818 = vld [vmem:[#allocation2 + $0x18] sm:$0xff]
          %v3819 = vld [vmem:[#allocation2 + $0x20] sm:$0xff]
          %v3820 = vld [vmem:[#allocation2 + $0x28] sm:$0xff]
          %v3821 = vld [vmem:[%s18] sm:$0x1]
          %v3822 = vld [vmem:[%s19] sm:$0x1]
          %3823 = vadd.xlane.f32.xlu0 %v3815
          %v3824 = vpop.xlane.xlu0 %3823
          %3825 = vadd.xlane.f32.xlu0 %v3816
          %v3826 = vpop.xlane.xlu0 %3825
          %3827 = vadd.xlane.f32.xlu0 %v3817
          %v3828 = vpop.xlane.xlu0 %3827
          %3829 = vadd.xlane.f32.xlu0 %v3818
          %v3830 = vpop.xlane.xlu0 %3829
          %3831 = vadd.xlane.f32.xlu0 %v3819
          %v3832 = vpop.xlane.xlu0 %3831
          %3833 = vadd.xlane.f32.xlu0 %v3820
          %v3834 = vpop.xlane.xlu0 %3833
          %v3835 = vmul.f32 %v3824, %v1246
          %v3836 = vmul.f32 %v3826, %v1246
          %v3837 = vmul.f32 %v3828, %v1246
          %v3838 = vmul.f32 %v3830, %v1246
          %v3839 = vmul.f32 %v3832, %v1246
          %v3840 = vmul.f32 %v3834, %v1246
          %v3841 = vsub.f32 %v3815, %v3835
          %v3842 = vsub.f32 %v3816, %v3836
          %v3843 = vsub.f32 %v3817, %v3837
          %v3844 = vsub.f32 %v3818, %v3838
          %v3845 = vsub.f32 %v3819, %v3839
          %v3846 = vsub.f32 %v3820, %v3840
          %v3847 = vmul.f32 %v3841, %v3841
          %v3848 = vmul.f32 %v3842, %v3842
          %v3849 = vmul.f32 %v3843, %v3843
          %v3850 = vmul.f32 %v3844, %v3844
          %v3851 = vmul.f32 %v3845, %v3845
          %v3852 = vmul.f32 %v3846, %v3846
          %3853 = vadd.xlane.f32.xlu0 %v3847
          %v3854 = vpop.xlane.xlu0 %3853
          %3855 = vadd.xlane.f32.xlu0 %v3848
          %v3856 = vpop.xlane.xlu0 %3855
          %3857 = vadd.xlane.f32.xlu0 %v3849
          %v3858 = vpop.xlane.xlu0 %3857
          %3859 = vadd.xlane.f32.xlu0 %v3850
          %v3860 = vpop.xlane.xlu0 %3859
          %3861 = vadd.xlane.f32.xlu0 %v3851
          %v3862 = vpop.xlane.xlu0 %3861
          %3863 = vadd.xlane.f32.xlu0 %v3852
          %v3864 = vpop.xlane.xlu0 %3863
          %v3865 = vmul.f32 %v3854, %v1246
          %v3866 = vmul.f32 %v3856, %v1246
          %v3867 = vmul.f32 %v3858, %v1246
          %v3868 = vmul.f32 %v3860, %v1246
          %v3869 = vmul.f32 %v3862, %v1246
          %v3870 = vmul.f32 %v3864, %v1246
          %v3871 = vadd.f32 %v3865, 1e-06
          %v3872 = vadd.f32 %v3866, 1e-06
          %v3873 = vadd.f32 %v3867, 1e-06
          %v3874 = vadd.f32 %v3868, 1e-06
          %v3875 = vadd.f32 %v3869, 1e-06
          %v3876 = vadd.f32 %v3870, 1e-06
          %v3877 = vrsqrt.pop %v3871
          %v3878 = vrsqrt.pop %v3872
          %v3879 = vrsqrt.pop %v3873
          %v3880 = vrsqrt.pop %v3874
          %v3881 = vrsqrt.pop %v3875
          %v3882 = vrsqrt.pop %v3876
          %v3883 = vmul.f32 %v3841, %v3877
          %v3884 = vmul.f32 %v3842, %v3878
          %v3885 = vmul.f32 %v3843, %v3879
          %v3886 = vmul.f32 %v3844, %v3880
          %v3887 = vmul.f32 %v3845, %v3881
          %v3888 = vmul.f32 %v3846, %v3882
          %v3890 = vlaneseq
          %v3891 = vshrl.u32 %v3890, 7
          %v3892 = vsub.s32 0, %v3891
          %v3893 = vrot.slane %v3821, %v3892
          %v3895 = vmul.f32 %v3883, %v3893
          %v3896 = vmul.f32 %v3884, %v3893
          %v3897 = vmul.f32 %v3885, %v3893
          %v3898 = vmul.f32 %v3886, %v3893
          %v3899 = vmul.f32 %v3887, %v3893
          %v3900 = vmul.f32 %v3888, %v3893
          %v3902 = vlaneseq
          %v3903 = vshrl.u32 %v3902, 7
          %v3904 = vsub.s32 0, %v3903
          %v3905 = vrot.slane %v3822, %v3904
          %v3907 = vadd.f32 %v3895, %v3905
          %v3908 = vadd.f32 %v3896, %v3905
          %v3909 = vadd.f32 %v3897, %v3905
          %v3910 = vadd.f32 %v3898, %v3905
          %v3911 = vadd.f32 %v3899, %v3905
          %v3912 = vadd.f32 %v3900, %v3905
          %v3913 = vpack.c.bf16 %v3908, %v3907
          %v3914 = vpack.c.bf16 %v3910, %v3909
          %v3915 = vpack.c.bf16 %v3912, %v3911
          %v3916 = vld [vmem:[#allocation19] sm:$0xf]
          %v3917 = vld [vmem:[#allocation19 + $0x4] sm:$0xf]
          %v3918 = vld [vmem:[#allocation19 + $0x8] sm:$0xf]
          %v3919 = vld [vmem:[#allocation19 + $0xc] sm:$0xf]
          %v3920 = vld [vmem:[#allocation19 + $0x10] sm:$0xf]
          %v3921 = vld [vmem:[#allocation19 + $0x14] sm:$0xf]
          %v3922 = vld [vmem:[#allocation19 + $0x18] sm:$0xf]
          %v3923 = vld [vmem:[#allocation19 + $0x1c] sm:$0xf]
          %v3924 = vld [vmem:[#allocation19 + $0x20] sm:$0xf]
          %v3925 = vld [vmem:[#allocation19 + $0x24] sm:$0xf]
          %v3926 = vld [vmem:[#allocation19 + $0x28] sm:$0xf]
          %v3927 = vld [vmem:[#allocation19 + $0x2c] sm:$0xf]
          %v3928 = vld [vmem:[#allocation19 + $0x30] sm:$0xf]
          %v3929 = vld [vmem:[#allocation19 + $0x34] sm:$0xf]
          %v3930 = vld [vmem:[#allocation19 + $0x38] sm:$0xf]
          %v3931 = vld [vmem:[#allocation19 + $0x3c] sm:$0xf]
          %v3932 = vld [vmem:[%s21] sm:$0x1]
          %v3934 = vlaneseq
          %v3935 = vshrl.u32 %v3934, 7
          %v3936 = vsub.s32 0, %v3935
          %v3937 = vrot.slane %v3932, %v3936
          %v3955 = vunpack.c.l.b16 %v3916
          %v3956 = vunpack.c.l.b16 %v3917
          %v3957 = vunpack.c.l.b16 %v3918
          %v3958 = vunpack.c.l.b16 %v3919
          %v3959 = vunpack.c.l.b16 %v3920
          %v3960 = vunpack.c.l.b16 %v3921
          %v3961 = vunpack.c.l.b16 %v3922
          %v3962 = vunpack.c.l.b16 %v3923
          %v3963 = vunpack.c.l.b16 %v3924
          %v3964 = vunpack.c.l.b16 %v3925
          %v3965 = vunpack.c.l.b16 %v3926
          %v3966 = vunpack.c.l.b16 %v3927
          %v3967 = vunpack.c.l.b16 %v3928
          %v3968 = vunpack.c.l.b16 %v3929
          %v3969 = vunpack.c.l.b16 %v3930
          %v3970 = vunpack.c.l.b16 %v3931
          %v3971 = vpack.c.b16 %v3956, %v3955
          %v3972 = vpack.c.b16 %v3958, %v3957
          %v3973 = vpack.c.b16 %v3960, %v3959
          %v3974 = vpack.c.b16 %v3962, %v3961
          %v3975 = vpack.c.b16 %v3964, %v3963
          %v3976 = vpack.c.b16 %v3966, %v3965
          %v3977 = vpack.c.b16 %v3968, %v3967
          %v3978 = vpack.c.b16 %v3970, %v3969
          %3987 = vmatprep.subr.bf16.mxu0 0
          %3988 = vmatpush1.bf16.msra.mxu0 %v3978
          %3989 = vmatprep.subr.bf16.mxu0 0
          %3990 = vmatpush1.bf16.msra.mxu0 %v3977
          %3991 = vmatprep.subr.bf16.mxu0 0
          %3992 = vmatpush1.bf16.msra.mxu0 %v3976
          %3993 = vmatprep.subr.bf16.mxu0 0
          %3994 = vmatpush1.bf16.msra.mxu0 %v3975
          %3995 = vmatprep.subr.bf16.mxu0 0
          %3996 = vmatpush1.bf16.msra.mxu0 %v3974
          %3997 = vmatprep.subr.bf16.mxu0 0
          %3998 = vmatpush1.bf16.msra.mxu0 %v3973
          %3999 = vmatprep.subr.bf16.mxu0 0
          %4000 = vmatpush1.bf16.msra.mxu0 %v3972
          %4001 = vmatprep.subr.bf16.mxu0 0
          %4002 = vmatpush1.bf16.msra.mxu0 %v3971
          %4003 = vmatprep.subr.bf16.mxu0 0
          %4004 = vmatpush2.bf16.msra.mxu0 0
          %4005 = vmatprep.subr.bf16.mxu0 0
          %4006 = vmatpush2.bf16.msra.mxu0 0
          %4007 = vmatprep.subr.bf16.mxu0 0
          %4008 = vmatpush2.bf16.msra.mxu0 0
          %4009 = vmatprep.subr.bf16.mxu0 0
          %4010 = vmatpush2.bf16.msra.mxu0 0
          %4011 = vmatprep.subr.bf16.mxu0 0
          %4012 = vmatpush2.bf16.msra.mxu0 0
          %4013 = vmatprep.subr.bf16.mxu0 0
          %4014 = vmatpush2.bf16.msra.mxu0 0
          %4015 = vmatprep.subr.bf16.mxu0 0
          %4016 = vmatpush2.bf16.msra.mxu0 0
          %4017 = vmatprep.subr.bf16.mxu0 0
          %4018 = vmatpush2.bf16.msra.mxu0 0
          %4019 = vmatprep.mubr.bf16.mxu0 0
          %4020 = vmatmul.mubr.bf16.gmra.mxu0 %v3913
          %v4021 = vpop.f32.mrf.mxu0
          %v4022 = vadd.f32 %v3937, %v4021
          %v4023 = vpop.f32.mrf.mxu0
          %v4024 = vpop.f32.mrf.mxu0
          %v4025 = vadd.f32 %v3937, %v4024
          %v4026 = vpop.f32.mrf.mxu0
          %4027 = vmatprep.mubr.bf16.mxu0 0
          %4028 = vmatmul.mubr.bf16.gmra.mxu0 %v3914
          %v4029 = vpop.f32.mrf.mxu0
          %v4030 = vadd.f32 %v3937, %v4029
          %v4031 = vpop.f32.mrf.mxu0
          %v4032 = vpop.f32.mrf.mxu0
          %v4033 = vadd.f32 %v3937, %v4032
          %v4034 = vpop.f32.mrf.mxu0
          %4035 = vmatprep.mubr.bf16.mxu0 0
          %4036 = vmatmul.mubr.bf16.gmra.mxu0 %v3915
          %v4037 = vpop.f32.mrf.mxu0
          %v4038 = vadd.f32 %v3937, %v4037
          %v4039 = vpop.f32.mrf.mxu0
          %v4040 = vpop.f32.mrf.mxu0
          %v4041 = vadd.f32 %v3937, %v4040
          %v4042 = vpop.f32.mrf.mxu0
          %4043 = vdwg.mxu0
          %4044 = vst [vmem:[#allocation20] sm:$0xff] %v4022
          %4045 = vst [vmem:[#allocation20 + $0x8] sm:$0xff] %v4025
          %4046 = vst [vmem:[#allocation20 + $0x10] sm:$0xff] %v4030
          %4047 = vst [vmem:[#allocation20 + $0x18] sm:$0xff] %v4033
          %4048 = vst [vmem:[#allocation20 + $0x20] sm:$0xff] %v4038
          %4049 = vst [vmem:[#allocation20 + $0x28] sm:$0xff] %v4041
        $region164: #{tpu_custom_call.1} parent=107 // pred_fallthru
          _
        // Predicated region
        $region165: #{tpu_custom_call.1} parent=107 // pred_check
          %p4050 = pneg %p573
        $region166: #{tpu_custom_call.1} parent=107 // pred_check_branch
          %4052 = sbr.rel (%p4050) target = $region168
        $region167: #{tpu_custom_call.1} parent=107 // pred_region
          %s4054 = ssub.s32 768, 768
          %4055 = vsyncadd [#allocation5], %s4054
          %s4056 = sshll.u32 [#allocation20], 4
          %s4057 = int_to_ptr.vmem [resolvable:$true] %s4056
          %4062 = dma.vmem_to_hbm [thread:$0]  %s4057, 768, %s22, [#allocation5], 128, 128, 8
        $region168: #{tpu_custom_call.1} parent=107 // pred_fallthru
          _
        // Predicated region
        $region169: #{tpu_custom_call.1} parent=107 // pred_check
          %p4063 = pneg %p573
        $region170: #{tpu_custom_call.1} parent=107 // pred_check_branch
          %4065 = sbr.rel (%p4063) target = $region172
        $region171: #{tpu_custom_call.1} parent=107 // pred_region
          %4066 = dma.done [#allocation5], 768
        $region172: #{tpu_custom_call.1} parent=107 // pred_fallthru
          _
      $region108: #{tpu_custom_call.1} parent=5 // pred_fallthru
        _
      %p4067 = scmp.le.s32.totalorder 2, %s33
      // Predicated region
      $region173: #{tpu_custom_call.1} parent=5 // pred_check
        %p4068 = pneg %p4067
      $region174: #{tpu_custom_call.1} parent=5 // pred_check_branch
        %4070 = sbr.rel (%p4068) target = $region176
      $region175: #{tpu_custom_call.1} parent=5 // pred_region
        %s4071 = ssub.s32 %s33, 2
      $region176: #{tpu_custom_call.1} parent=5 // pred_fallthru
        _
    $region6: #{tpu_custom_call.1} parent=1 // loop_footer
      %s37 = sadd.s32 1, %s33
    $region7: #{tpu_custom_call.1} parent=1 // loop_footer_branch
      %32 = sbr.rel target = $region3
    $region8: #{tpu_custom_call.1} parent=1 // loop_exit
      _
    %4072 = vsyncpa [#allocation4], 1
    %s4073 = scalar_lea.sflag [#allocation4], 1
    %4074 = vsyncpa %s4073, 1
    %4075 = vsyncpa [#allocation7], 1
    %4076 = vsyncpa [#allocation10], 1
    %4077 = vsyncpa [#allocation13], 1
    %4078 = vsyncpa [#allocation5], 1
    %s4079 = scalar_lea.sflag [#allocation5], 1
    %4080 = vsyncpa %s4079, 1

</llo_original>
